<compile_context>
chip_gen: v5e
topology: v5e:2x2
jax: 0.10.0
libtpu: 0.0.40
codegen_flags: <defaults>
</compile_context>

<pallas_src>
import functools

import jax
import jax.numpy as jnp
from jax.experimental import pallas as pl
from jax.experimental.pallas import tpu as pltpu


# --------------------------- small shared helpers --------------------------- #

def _default_tiles():
    """(row_tile, src_tile) per TPU generation (v7x has only 64 MiB VMEM)."""
    try:
        kind = jax.devices()[0].device_kind.lower()
    except Exception:
        kind = ""
    if "v7" in kind:
        return 256, 512
    return 512, 512


def _padded_block_bytes(shape, dtype):
    """VMEM bytes of one block after padding: last dim -> 128 lanes,
    second-to-last -> sublane tile for the dtype."""
    item = jnp.dtype(dtype).itemsize
    sub = {4: 8, 2: 16, 1: 32}.get(item, 8)
    dims = list(shape)
    if dims:
        dims[-1] = -(-dims[-1] // 128) * 128
    if len(dims) >= 2:
        dims[-2] = -(-dims[-2] // sub) * sub
    n = 1
    for d in dims:
        n *= int(d)
    return n * item


# ------------------------------ linear kernel ------------------------------- #

def _linear_kernel(x_ref, w_ref, b_ref, o_ref):
    o_ref[...] = (jnp.dot(x_ref[...], w_ref[...],
                          preferred_element_type=jnp.float32)
                  + b_ref[...]).astype(o_ref.dtype)


def linear(x, w, b, *, row_tile=512):
    """Row-tiled x:[M,K] @ w:[K,F] + b:[F] -> [M,F]."""
    M, K = x.shape
    F = w.shape[1]
    tm = M if M <= row_tile else row_tile
    assert M % tm == 0, "row tile must divide M"
    return pl.pallas_call(
        _linear_kernel,
        out_shape=jax.ShapeDtypeStruct((M, F), jnp.float32),
        grid=(M // tm,),
        in_specs=[
            pl.BlockSpec((tm, K), lambda i: (i, 0)),
            pl.BlockSpec((K, F), lambda i: (0, 0)),
            pl.BlockSpec((1, F), lambda i: (0, 0)),
        ],
        out_specs=pl.BlockSpec((tm, F), lambda i: (i, 0)),
        compiler_params=pltpu.CompilerParams(
            dimension_semantics=("parallel",)),
    )(x, w, b.reshape(1, F))


# --------------------------- GATv2 attention kernel ------------------------- #

def _gatv2_attn_kernel(xr_ref, xlT_ref, xl_ref, ea_ref, mask_ref,
                       we_ref, att_ref, bias_ref, *rest,
                       heads, out_ch, edge_dim, fuse_linear):
    """One (target-row-tile i, source-tile j) block; heads looped in-kernel.

    xr_ref   : [H, TI, C]   target projections (W_r x + b_r), resident over j
    xlT_ref  : [H, C, TJ]   source projections, channel-major (lane-dense rows)
    xl_ref   : [H, TJ, C]   source projections for the alpha @ x_l MXU matmul
    ea_ref   : [ED, TI, TJ] edge attrs, channel-major, bf16
    mask_ref : [TI, TJ]     adjacency incl. self loops, bf16
    we_ref   : SMEM [H*ED*C]   lin_edge weights (scalar reads)
    att_ref  : SMEM [H*C]      attention vectors (scalar reads)
    bias_ref : [H, C]          conv output bias
    rest     : (+ lin_w [C, OC], lin_b [1, OC] when fuse_linear,)
               out_ref, m_sc [TI, H], l_sc [TI, H], acc_sc [TI, H*C]
    """
    if fuse_linear:
        lw_ref, lb_ref, o_ref, m_sc, l_sc, acc_sc = rest
    else:
        o_ref, m_sc, l_sc, acc_sc = rest

    H, C, ED = heads, out_ch, edge_dim
    j = pl.program_id(1)
    last_j = pl.num_programs(1) - 1
    neg_big = jnp.float32(-1e30)

    @pl.when(j == 0)
    def _init():
        m_sc[...] = jnp.full(m_sc.shape, neg_big, jnp.float32)
        l_sc[...] = jnp.zeros(l_sc.shape, jnp.float32)
        acc_sc[...] = jnp.zeros(acc_sc.shape, jnp.float32)

    # O(N^2) streams arrive as bf16 (half HBM traffic); upcast once per block
    # (f32 elementwise math everywhere -> also correct on v5e's f32-only VPU).
    ea = ea_ref[...].astype(jnp.float32)                 # [ED, TI, TJ]
    valid = mask_ref[...].astype(jnp.float32) > 0.0      # [TI, TJ]

    for h in range(H):                                    # H is 1 or 2: unrolled
        xr_h = xr_ref[h]                                  # [TI, C]
        xlT_h = xlT_ref[h]                                # [C, TJ]

        # Per-channel accumulation keeps N (TJ) on the 128-lane axis:
        # every op below is a full-width [TI, TJ] vreg op.
        logits = None
        for c in range(C):
            ed_c = ea[0] * we_ref[h * ED * C + c]
            for d in range(1, ED):
                ed_c = ed_c + ea[d] * we_ref[h * ED * C + d * C + c]
            s_c = xr_h[:, c:c + 1] + xlT_h[c:c + 1, :] + ed_c      # [TI, TJ]
            s_c = jnp.where(s_c > 0, s_c, 0.2 * s_c)               # LeakyReLU(0.2)
            contrib = s_c * att_ref[h * C + c]
            logits = contrib if logits is None else logits + contrib

        logits = jnp.where(valid, logits, neg_big)

        # Online (flash-style) softmax over source tiles.
        m_prev = m_sc[:, h:h + 1]                                  # [TI, 1]
        m_new = jnp.maximum(m_prev, jnp.max(logits, axis=1, keepdims=True))
        scale = jnp.exp(m_prev - m_new)
        # Explicitly zero masked entries: robust even for fully-masked tiles.
        p = jnp.where(valid, jnp.exp(logits - m_new), 0.0)
        l_sc[:, h:h + 1] = scale * l_sc[:, h:h + 1] + jnp.sum(p, axis=1,
                                                              keepdims=True)
        acc_sc[:, h * C:(h + 1) * C] = (
            scale * acc_sc[:, h * C:(h + 1) * C]
            + jnp.dot(p, xl_ref[h], preferred_element_type=jnp.float32))
        m_sc[:, h:h + 1] = m_new

    @pl.when(j == last_j)
    def _finalize():
        def elu(v):
            return jnp.where(v > 0, v, jnp.exp(jnp.minimum(v, 0.0)) - 1.0)

        if fuse_linear:
            # single head: mean over heads == identity; bias + ELU + Linear fused
            inv = pl.reciprocal(jnp.maximum(l_sc[:, 0:1], 1e-30), approx=False)
            v = elu(acc_sc[:, 0:C] * inv + bias_ref[0:1, :])
            o_ref[...] = (jnp.dot(v, lw_ref[...],
                                  preferred_element_type=jnp.float32)
                          + lb_ref[...]).astype(o_ref.dtype)
        else:
            # concat heads: per-head (bias + ELU), write [TI, H*C] directly.
            for h in range(H):
                inv = pl.reciprocal(jnp.maximum(l_sc[:, h:h + 1], 1e-30),
                                    approx=False)
                v = elu(acc_sc[:, h * C:(h + 1) * C] * inv + bias_ref[h:h + 1, :])
                o_ref[:, h * C:(h + 1) * C] = v.astype(o_ref.dtype)


def gatv2_attention(xr, xlT, xl, ea_cm, mask, we_flat, att_flat, bias, *,
                    heads, out_ch, lin_w=None, lin_b=None,
                    row_tile=None, src_tile=None):
    """xr/xl: [H, N, C]; xlT: [H, C, N]; ea_cm: [ED, N, N] bf16; mask: [N, N]
    bf16; we_flat: [H*ED*C]; att_flat: [H*C]; bias: [H, C] -> [N, H*C]
    (or [N, OC] when the final Linear is fused)."""
    H, N, C = xr.shape
    ED = ea_cm.shape[0]
    fuse_linear = lin_w is not None
    out_dim = int(lin_w.shape[1]) if fuse_linear else H * C

    ti_d, tj_d = _default_tiles()
    ti = row_tile if row_tile is not None else min(N, ti_d)
    tj = src_tile if src_tile is not None else min(N, tj_d)
    assert N % ti == 0 and N % tj == 0, "tiles must divide N"
    assert ti == N or ti % 16 == 0, "row tile must be multiple of 16 (bf16)"
    assert tj == N or tj % 128 == 0, "src tile must be multiple of 128 lanes"

    # VMEM budget from padded block shapes, double-buffered, plus scratch.
    in_blocks = [((H, ti, C), jnp.float32), ((H, C, tj), jnp.float32),
                 ((H, tj, C), jnp.float32), ((ED, ti, tj), ea_cm.dtype),
                 ((ti, tj), mask.dtype), ((H, C), jnp.float32)]
    if fuse_linear:
        in_blocks += [((C, out_dim), jnp.float32), ((1, out_dim), jnp.float32)]
    blk = sum(_padded_block_bytes(s, d) for s, d in in_blocks)
    blk += _padded_block_bytes((ti, out_dim), jnp.float32)
    scratch_bytes = (2 * _padded_block_bytes((ti, H), jnp.float32)
                     + _padded_block_bytes((ti, H * C), jnp.float32))
    vmem_limit = int(min(max(2 * blk + scratch_bytes + (2 << 20), 16 << 20),
                         60 << 20))

    in_specs = [
        pl.BlockSpec((H, ti, C), lambda i, j: (0, i, 0)),    # x_r (resident over j)
        pl.BlockSpec((H, C, tj), lambda i, j: (0, 0, j)),    # x_l channel-major
        pl.BlockSpec((H, tj, C), lambda i, j: (0, j, 0)),    # x_l for MXU matmul
        pl.BlockSpec((ED, ti, tj), lambda i, j: (0, i, j)),  # edge attrs (bf16)
        pl.BlockSpec((ti, tj), lambda i, j: (i, j)),         # adjacency (bf16)
        pl.BlockSpec(memory_space=pltpu.MemorySpace.SMEM),   # lin_edge scalars
        pl.BlockSpec(memory_space=pltpu.MemorySpace.SMEM),   # att scalars
        pl.BlockSpec((H, C), lambda i, j: (0, 0)),           # conv bias
    ]
    args = [xr, xlT, xl, ea_cm, mask, we_flat, att_flat, bias]
    if fuse_linear:
        in_specs += [pl.BlockSpec((C, out_dim), lambda i, j: (0, 0)),
                     pl.BlockSpec((1, out_dim), lambda i, j: (0, 0))]
        args += [lin_w, lin_b.reshape(1, out_dim)]

    kernel = functools.partial(_gatv2_attn_kernel, heads=H, out_ch=C,
                               edge_dim=ED, fuse_linear=fuse_linear)
    return pl.pallas_call(
        kernel,
        out_shape=jax.ShapeDtypeStruct((N, out_dim), jnp.float32),
        grid=(N // ti, N // tj),
        in_specs=in_specs,
        out_specs=pl.BlockSpec((ti, out_dim), lambda i, j: (i, 0)),
        scratch_shapes=[pltpu.VMEM((ti, H), jnp.float32),      # running max m
                        pltpu.VMEM((ti, H), jnp.float32),      # running sum l
                        pltpu.VMEM((ti, H * C), jnp.float32)], # running acc
        compiler_params=pltpu.CompilerParams(
            dimension_semantics=("parallel", "arbitrary"),
            vmem_limit_bytes=vmem_limit),
    )(*args)


# ------------------------------- model glue --------------------------------- #

def to_dense(edge_index, edge_attr, num_nodes):
    """Dense adjacency + channel-major dense edge attrs with PyG self loops."""
    # TODO(synk): assumes no duplicate edges / pre-existing self loops
    #             (PyG's GATv2Conv removes then re-adds self loops).
    src, dst = edge_index[0], edge_index[1]
    N, ED = num_nodes, edge_attr.shape[-1]
    adj = jnp.zeros((N, N), jnp.float32).at[dst, src].set(1.0)
    ea = jnp.zeros((N, N, ED), jnp.float32).at[dst, src].set(edge_attr)
    deg = jnp.zeros((N,), jnp.float32).at[dst].add(1.0)
    ssum = jnp.zeros((N, ED), jnp.float32).at[dst].add(edge_attr)
    loop_attr = jnp.where(deg[:, None] > 0,
                          ssum / jnp.maximum(deg, 1.0)[:, None], 0.0)
    idx = jnp.arange(N)
    adj = adj.at[idx, idx].set(1.0)               # add_self_loops
    ea = ea.at[idx, idx].set(loop_attr)           # fill_value='mean'
    # Channel-major [ED, N, N] + bf16: the O(N^2) streams are lane-dense in N
    # and cost half the HBM traffic.
    return adj.astype(jnp.bfloat16), ea.transpose(2, 0, 1).astype(jnp.bfloat16)


def gatv2_conv(x, adj, ea_cm, p, heads, out_ch, concat, lin_w=None, lin_b=None):
    """One GATv2Conv layer with fused bias + ELU (and optionally the final
    Linear when concat=False / single head)."""
    N = x.shape[0]
    H, C = heads, out_ch
    if not concat:
        assert H == 1, "in-kernel ELU/Linear fusion requires a single head"
    # Single wide fused (lin_l | lin_r) projection; tiny reshapes via XLA.
    proj = linear(x, p["w_all"], p["b_all"]).reshape(N, H, 2, C)
    xl = jnp.transpose(proj[:, :, 0, :], (1, 0, 2))    # [H, N, C] source side
    xr = jnp.transpose(proj[:, :, 1, :], (1, 0, 2))    # [H, N, C] target side
    xlT = jnp.transpose(xl, (0, 2, 1))                 # [H, C, N] channel-major
    return gatv2_attention(xr, xlT, xl, ea_cm, adj, p["we_flat"], p["att_flat"],
                           p["bias"], heads=H, out_ch=C,
                           lin_w=lin_w, lin_b=lin_b)


def gat_forward(x, adj, ea_cm, params, heads, hidden):
    # F.dropout / attention dropout are identity in eval mode.
    h = gatv2_conv(x, adj, ea_cm, params["conv1"], heads, hidden, concat=True)
    # conv2 (1 head, concat=False): bias + ELU + final Linear fused in-kernel.
    return gatv2_conv(h, adj, ea_cm, params["conv2"], 1, hidden, concat=False,
                      lin_w=params["lin"]["w"], lin_b=params["lin"]["b"])


def init_params(key, in_ch, edge_dim, hidden, out_ch, heads):
    ks = jax.random.split(key, 9)

    def glorot(k, shape):
        fi, fo = shape[0], shape[-1]
        lim = (6.0 / (fi + fo)) ** 0.5
        return jax.random.uniform(k, shape, jnp.float32, -lim, lim)

    def conv_params(kl, kr, ke_, ka, fan_in, h, c):
        wl = glorot(kl, (fan_in, h * c)).reshape(fan_in, h, c)
        wr = glorot(kr, (fan_in, h * c)).reshape(fan_in, h, c)
        w_all = jnp.stack([wl, wr], axis=2).reshape(fan_in, h * 2 * c)
        we = glorot(ke_, (edge_dim, h * c)).reshape(edge_dim, h, c)
        return dict(
            w_all=w_all,                                  # fused (lin_l|lin_r)
            b_all=jnp.zeros((h * 2 * c,), jnp.float32),
            we_flat=we.transpose(1, 0, 2).reshape(-1),    # [H*ED*C] lin_edge
            att_flat=glorot(ka, (h, c)).reshape(-1),      # [H*C]
            bias=jnp.zeros((h, c), jnp.float32),
        )

    conv1 = conv_params(ks[0], ks[1], ks[2], ks[3], in_ch, heads, hidden)
    conv2 = conv_params(ks[4], ks[5], ks[6], ks[7], heads * hidden, 1, hidden)
    lin = dict(w=glorot(ks[8], (hidden, out_ch)),
               b=jnp.zeros((out_ch,), jnp.float32))
    return dict(conv1=conv1, conv2=conv2, lin=lin)


# ------------------------ pure-JAX reference (checks) ----------------------- #

def _ref_gatv2(x, adj, ea, p, heads, out_ch, concat):
    HI = jax.lax.Precision.HIGHEST
    N = x.shape[0]
    H, C = heads, out_ch
    ED = ea.shape[-1]
    proj = (jnp.dot(x, p["w_all"], precision=HI) + p["b_all"]).reshape(N, H, 2, C)
    xl = jnp.transpose(proj[:, :, 0, :], (1, 0, 2))
    xr = jnp.transpose(proj[:, :, 1, :], (1, 0, 2))
    we = p["we_flat"].reshape(H, ED, C)
    att = p["att_flat"].reshape(H, C)
    e = jnp.einsum('ijd,hdc->hijc', ea, we, precision=HI)
    s = xr[:, :, None, :] + xl[:, None, :, :] + e
    s = jnp.where(s > 0, s, 0.2 * s)
    logits = jnp.einsum('hijc,hc->hij', s, att, precision=HI)
    logits = jnp.where(adj[None, :, :] > 0, logits, -1e30)
    alpha = jax.nn.softmax(logits, axis=-1)
    out = jnp.einsum('hij,hjc->hic', alpha, xl, precision=HI) + p["bias"][:, None, :]
    out = (jnp.transpose(out, (1, 0, 2)).reshape(N, H * C) if concat
           else out.mean(axis=0))
    return jax.nn.elu(out)


def ref_forward(x, adj_b, ea_cm_b, params, heads, hidden):
    HI = jax.lax.Precision.HIGHEST
    adj = adj_b.astype(jnp.float32)
    ea = jnp.transpose(ea_cm_b.astype(jnp.float32), (1, 2, 0))
    h = _ref_gatv2(x, adj, ea, params["conv1"], heads, hidden, True)
    h = _ref_gatv2(h, adj, ea, params["conv2"], 1, hidden, False)
    return jnp.dot(h, params["lin"]["w"], precision=HI) + params["lin"]["b"]


if __name__ == "__main__":
    N, IC, ED, HC, OC, H = 16, 4, 3, 8, 3, 2   # nodes, in, edge_dim, hidden, out, heads

    key = jax.random.PRNGKey(0)
    kx, ke, kp = jax.random.split(key, 3)

    x = jax.random.normal(kx, (N, IC), jnp.float32)
    # bidirectional ring graph, no self loops, E = 2N edges
    arange = jnp.arange(N)
    src = jnp.concatenate([arange, arange])
    dst = jnp.concatenate([(arange + 1) % N, (arange - 1) % N])
    edge_index = jnp.stack([src, dst]).astype(jnp.int32)   # row0=src, row1=dst
    edge_attr = jax.random.normal(ke, (edge_index.shape[1], ED), jnp.float32)

    params = init_params(kp, IC, ED, HC, OC, H)
    adj, ea_cm = to_dense(edge_index, edge_attr, N)

    fwd = jax.jit(functools.partial(gat_forward, heads=H, hidden=HC))
    out = fwd(x, adj, ea_cm, params)
    jax.block_until_ready(out)

    assert out.shape == (N, OC) and out.dtype == jnp.float32
    assert bool(jnp.all(jnp.isfinite(out)))
    ref = ref_forward(x, adj, ea_cm, params, H, HC)
    err = float(jnp.max(jnp.abs(out - ref)))
    assert err < 1e-2, f"max abs error vs reference: {err}"
    print("KERNEL_OK")
</pallas_src>

<mosaic_0001>
module attributes {stable_mosaic.version = 11 : i64} {
  func.func @_linear_kernel(%arg0: i32, %arg1: memref<16x4xf32, #tpu.memory_space<vmem>>, %arg2: memref<4x32xf32, #tpu.memory_space<vmem>>, %arg3: memref<1x32xf32, #tpu.memory_space<vmem>>, %arg4: memref<16x32xf32, #tpu.memory_space<vmem>>) attributes {dimension_semantics = [#tpu.dimension_semantics<parallel>], iteration_bounds = array<i64: 1>, scalar_prefetch = 0 : i64, scratch_operands = 0 : i64, tpu.core_type = #tpu.core_type<tc>, window_params = [{transform_indices = @transform_0, window_bounds = array<i64: 16, 4>}, {pipeline_mode = #tpu.pipeline_mode<synchronous>, transform_indices = @transform_1, window_bounds = array<i64: 4, 32>}, {pipeline_mode = #tpu.pipeline_mode<synchronous>, transform_indices = @transform_2, window_bounds = array<i64: 1, 32>}, {transform_indices = @transform_3, window_bounds = array<i64: 16, 32>}]} {
    %c0 = arith.constant 0 : index
    %c0_0 = arith.constant 0 : index
    %0 = vector.load %arg1[%c0, %c0_0] : memref<16x4xf32, #tpu.memory_space<vmem>>, vector<16x4xf32>
    %c0_1 = arith.constant 0 : index
    %c0_2 = arith.constant 0 : index
    %1 = vector.load %arg2[%c0_1, %c0_2] : memref<4x32xf32, #tpu.memory_space<vmem>>, vector<4x32xf32>
    %cst = arith.constant dense<0.000000e+00> : vector<16x32xf32>
    %2 = tpu.matmul %0, %1, %cst {dimension_numbers = #tpu.dot_dimension_numbers<[1], [0], [0], [1], [0, 0, 1, 1], [], []>} : vector<16x4xf32>, vector<4x32xf32>, vector<16x32xf32> -> vector<16x32xf32>
    %c0_3 = arith.constant 0 : index
    %c0_4 = arith.constant 0 : index
    %3 = vector.load %arg3[%c0_3, %c0_4] : memref<1x32xf32, #tpu.memory_space<vmem>>, vector<1x32xf32>
    %4 = vector.broadcast %3 : vector<1x32xf32> to vector<16x32xf32>
    %5 = arith.addf %2, %4 : vector<16x32xf32>
    %c0_5 = arith.constant 0 : index
    %c0_6 = arith.constant 0 : index
    %6 = vector.load %arg4[%c0_5, %c0_6] : memref<16x32xf32, #tpu.memory_space<vmem>>, vector<16x32xf32>
    tpu.vector_store %arg4[%c0_5, %c0_6], %5 {strides = array<i32>} : memref<16x32xf32, #tpu.memory_space<vmem>>, vector<16x32xf32>,
    return
  }
  func.func @transform_0(%arg0: i32) -> (i32, i32) {
    %c0_i32 = arith.constant 0 : i32
    %c0_i32_0 = arith.constant 0 : i32
    return %arg0, %c0_i32 : i32, i32
  }
  func.func @transform_1(%arg0: i32) -> (i32, i32) {
    %c0_i32 = arith.constant 0 : i32
    %c0_i32_0 = arith.constant 0 : i32
    %c0_i32_1 = arith.constant 0 : i32
    return %c0_i32, %c0_i32_0 : i32, i32
  }
  func.func @transform_2(%arg0: i32) -> (i32, i32) {
    %c0_i32 = arith.constant 0 : i32
    %c0_i32_0 = arith.constant 0 : i32
    %c0_i32_1 = arith.constant 0 : i32
    return %c0_i32, %c0_i32_0 : i32, i32
  }
  func.func @transform_3(%arg0: i32) -> (i32, i32) {
    %c0_i32 = arith.constant 0 : i32
    %c0_i32_0 = arith.constant 0 : i32
    return %arg0, %c0_i32 : i32, i32
  }
}

module attributes {stable_mosaic.version = 11 : i64} {
  func.func @_gatv2_attn_kernel(%arg0: i32, %arg1: i32, %arg2: memref<2x16x8xf32, #tpu.memory_space<vmem>>, %arg3: memref<2x8x16xf32, #tpu.memory_space<vmem>>, %arg4: memref<2x16x8xf32, #tpu.memory_space<vmem>>, %arg5: memref<3x16x16xbf16, #tpu.memory_space<vmem>>, %arg6: memref<16x16xbf16, #tpu.memory_space<vmem>>, %arg7: memref<48xf32, #tpu.memory_space<smem>>, %arg8: memref<16xf32, #tpu.memory_space<smem>>, %arg9: memref<2x8xf32, #tpu.memory_space<vmem>>, %arg10: memref<16x16xf32, #tpu.memory_space<vmem>>, %arg11: memref<16x2xf32, #tpu.memory_space<vmem>>, %arg12: memref<16x2xf32, #tpu.memory_space<vmem>>, %arg13: memref<16x16xf32, #tpu.memory_space<vmem>>) attributes {dimension_semantics = [#tpu.dimension_semantics<parallel>, #tpu.dimension_semantics<arbitrary>], iteration_bounds = array<i64: 1, 1>, scalar_prefetch = 0 : i64, scratch_operands = 3 : i64, tpu.core_type = #tpu.core_type<tc>, window_params = [{transform_indices = @transform_0, window_bounds = array<i64: 2, 16, 8>}, {transform_indices = @transform_1, window_bounds = array<i64: 2, 8, 16>}, {transform_indices = @transform_2, window_bounds = array<i64: 2, 16, 8>}, {transform_indices = @transform_3, window_bounds = array<i64: 3, 16, 16>}, {transform_indices = @transform_4, window_bounds = array<i64: 16, 16>}, {transform_indices = @transform_5, window_bounds = array<i64: 48>}, {transform_indices = @transform_6, window_bounds = array<i64: 16>}, {pipeline_mode = #tpu.pipeline_mode<synchronous>, transform_indices = @transform_7, window_bounds = array<i64: 2, 8>}, {transform_indices = @transform_8, window_bounds = array<i64: 16, 16>}]} {
    %c0_i32 = arith.constant 0 : i32
    %0 = arith.cmpi eq, %arg1, %c0_i32 : i32
    %1 = arith.extui %0 : i1 to i32
    %cst = arith.constant -1.000000e+30 : f32
    %c0_i32_0 = arith.constant 0 : i32
    %2 = arith.cmpi ne, %1, %c0_i32_0 : i32
    scf.if %2 {
      %586 = vector.broadcast %cst : f32 to vector<16x2xf32>
      %c0_109 = arith.constant 0 : index
      %c0_110 = arith.constant 0 : index
      %587 = vector.load %arg11[%c0_109, %c0_110] : memref<16x2xf32, #tpu.memory_space<vmem>>, vector<16x2xf32>
      tpu.vector_store %arg11[%c0_109, %c0_110], %586 {strides = array<i32>} : memref<16x2xf32, #tpu.memory_space<vmem>>, vector<16x2xf32>,
      %cst_111 = arith.constant 0.000000e+00 : f32
      %588 = vector.broadcast %cst_111 : f32 to vector<16x2xf32>
      %c0_112 = arith.constant 0 : index
      %c0_113 = arith.constant 0 : index
      %589 = vector.load %arg12[%c0_112, %c0_113] : memref<16x2xf32, #tpu.memory_space<vmem>>, vector<16x2xf32>
      tpu.vector_store %arg12[%c0_112, %c0_113], %588 {strides = array<i32>} : memref<16x2xf32, #tpu.memory_space<vmem>>, vector<16x2xf32>,
      %cst_114 = arith.constant 0.000000e+00 : f32
      %590 = vector.broadcast %cst_114 : f32 to vector<16x16xf32>
      %c0_115 = arith.constant 0 : index
      %c0_116 = arith.constant 0 : index
      %591 = vector.load %arg13[%c0_115, %c0_116] : memref<16x16xf32, #tpu.memory_space<vmem>>, vector<16x16xf32>
      tpu.vector_store %arg13[%c0_115, %c0_116], %590 {strides = array<i32>} : memref<16x16xf32, #tpu.memory_space<vmem>>, vector<16x16xf32>,
    } else {
    }
    %c0 = arith.constant 0 : index
    %c0_1 = arith.constant 0 : index
    %c0_2 = arith.constant 0 : index
    %3 = vector.load %arg5[%c0, %c0_1, %c0_2] : memref<3x16x16xbf16, #tpu.memory_space<vmem>>, vector<3x16x16xbf16>
    %4 = arith.extf %3 : vector<3x16x16xbf16> to vector<3x16x16xf32>
    %c0_3 = arith.constant 0 : index
    %c0_4 = arith.constant 0 : index
    %5 = vector.load %arg6[%c0_3, %c0_4] : memref<16x16xbf16, #tpu.memory_space<vmem>>, vector<16x16xbf16>
    %6 = arith.extf %5 : vector<16x16xbf16> to vector<16x16xf32>
    %cst_5 = arith.constant 0.000000e+00 : f32
    %7 = vector.broadcast %cst_5 : f32 to vector<16x16xf32>
    %8 = arith.cmpf ogt, %6, %7 : vector<16x16xf32>
    %c0_6 = arith.constant 0 : index
    %c0_7 = arith.constant 0 : index
    %c0_8 = arith.constant 0 : index
    %9 = vector.load %arg2[%c0_6, %c0_7, %c0_8] : memref<2x16x8xf32, #tpu.memory_space<vmem>>, vector<1x16x8xf32>
    %10 = vector.shape_cast %9 : vector<1x16x8xf32> to vector<16x8xf32>
    %c0_9 = arith.constant 0 : index
    %c0_10 = arith.constant 0 : index
    %c0_11 = arith.constant 0 : index
    %11 = vector.load %arg3[%c0_9, %c0_10, %c0_11] : memref<2x8x16xf32, #tpu.memory_space<vmem>>, vector<1x8x16xf32>
    %12 = vector.shape_cast %11 : vector<1x8x16xf32> to vector<8x16xf32>
    %13 = vector.extract_strided_slice %4 {offsets = [0, 0, 0], sizes = [1, 16, 16], strides = [1, 1, 1]} : vector<3x16x16xf32> to vector<1x16x16xf32>
    %14 = vector.shape_cast %13 : vector<1x16x16xf32> to vector<16x16xf32>
    %c0_12 = arith.constant 0 : index
    %15 = memref.load %arg7[%c0_12] : memref<48xf32, #tpu.memory_space<smem>>
    %16 = vector.broadcast %15 : f32 to vector<16x16xf32>
    %17 = arith.mulf %14, %16 : vector<16x16xf32>
    %18 = vector.extract_strided_slice %4 {offsets = [1, 0, 0], sizes = [1, 16, 16], strides = [1, 1, 1]} : vector<3x16x16xf32> to vector<1x16x16xf32>
    %19 = vector.shape_cast %18 : vector<1x16x16xf32> to vector<16x16xf32>
    %c8 = arith.constant 8 : index
    %20 = memref.load %arg7[%c8] : memref<48xf32, #tpu.memory_space<smem>>
    %21 = vector.broadcast %20 : f32 to vector<16x16xf32>
    %22 = arith.mulf %19, %21 : vector<16x16xf32>
    %23 = arith.addf %17, %22 : vector<16x16xf32>
    %24 = vector.extract_strided_slice %4 {offsets = [2, 0, 0], sizes = [1, 16, 16], strides = [1, 1, 1]} : vector<3x16x16xf32> to vector<1x16x16xf32>
    %25 = vector.shape_cast %24 : vector<1x16x16xf32> to vector<16x16xf32>
    %c16 = arith.constant 16 : index
    %26 = memref.load %arg7[%c16] : memref<48xf32, #tpu.memory_space<smem>>
    %27 = vector.broadcast %26 : f32 to vector<16x16xf32>
    %28 = arith.mulf %25, %27 : vector<16x16xf32>
    %29 = arith.addf %23, %28 : vector<16x16xf32>
    %30 = vector.extract_strided_slice %10 {offsets = [0, 0], sizes = [16, 1], strides = [1, 1]} : vector<16x8xf32> to vector<16x1xf32>
    %31 = vector.extract_strided_slice %12 {offsets = [0, 0], sizes = [1, 16], strides = [1, 1]} : vector<8x16xf32> to vector<1x16xf32>
    %32 = vector.broadcast %30 : vector<16x1xf32> to vector<16x16xf32>
    %33 = vector.broadcast %31 : vector<1x16xf32> to vector<16x16xf32>
    %34 = arith.addf %32, %33 : vector<16x16xf32>
    %35 = arith.addf %34, %29 : vector<16x16xf32>
    %cst_13 = arith.constant 0.000000e+00 : f32
    %36 = vector.broadcast %cst_13 : f32 to vector<16x16xf32>
    %37 = arith.cmpf ogt, %35, %36 : vector<16x16xf32>
    %cst_14 = arith.constant 2.000000e-01 : f32
    %38 = vector.broadcast %cst_14 : f32 to vector<16x16xf32>
    %39 = arith.mulf %38, %35 : vector<16x16xf32>
    %40 = arith.select %37, %35, %39 : vector<16x16xi1>, vector<16x16xf32>
    %c0_15 = arith.constant 0 : index
    %41 = memref.load %arg8[%c0_15] : memref<16xf32, #tpu.memory_space<smem>>
    %42 = vector.broadcast %41 : f32 to vector<16x16xf32>
    %43 = arith.mulf %40, %42 : vector<16x16xf32>
    %44 = vector.extract_strided_slice %4 {offsets = [0, 0, 0], sizes = [1, 16, 16], strides = [1, 1, 1]} : vector<3x16x16xf32> to vector<1x16x16xf32>
    %45 = vector.shape_cast %44 : vector<1x16x16xf32> to vector<16x16xf32>
    %c1 = arith.constant 1 : index
    %46 = memref.load %arg7[%c1] : memref<48xf32, #tpu.memory_space<smem>>
    %47 = vector.broadcast %46 : f32 to vector<16x16xf32>
    %48 = arith.mulf %45, %47 : vector<16x16xf32>
    %49 = vector.extract_strided_slice %4 {offsets = [1, 0, 0], sizes = [1, 16, 16], strides = [1, 1, 1]} : vector<3x16x16xf32> to vector<1x16x16xf32>
    %50 = vector.shape_cast %49 : vector<1x16x16xf32> to vector<16x16xf32>
    %c9 = arith.constant 9 : index
    %51 = memref.load %arg7[%c9] : memref<48xf32, #tpu.memory_space<smem>>
    %52 = vector.broadcast %51 : f32 to vector<16x16xf32>
    %53 = arith.mulf %50, %52 : vector<16x16xf32>
    %54 = arith.addf %48, %53 : vector<16x16xf32>
    %55 = vector.extract_strided_slice %4 {offsets = [2, 0, 0], sizes = [1, 16, 16], strides = [1, 1, 1]} : vector<3x16x16xf32> to vector<1x16x16xf32>
    %56 = vector.shape_cast %55 : vector<1x16x16xf32> to vector<16x16xf32>
    %c17 = arith.constant 17 : index
    %57 = memref.load %arg7[%c17] : memref<48xf32, #tpu.memory_space<smem>>
    %58 = vector.broadcast %57 : f32 to vector<16x16xf32>
    %59 = arith.mulf %56, %58 : vector<16x16xf32>
    %60 = arith.addf %54, %59 : vector<16x16xf32>
    %61 = vector.extract_strided_slice %10 {offsets = [0, 1], sizes = [16, 1], strides = [1, 1]} : vector<16x8xf32> to vector<16x1xf32>
    %62 = vector.extract_strided_slice %12 {offsets = [1, 0], sizes = [1, 16], strides = [1, 1]} : vector<8x16xf32> to vector<1x16xf32>
    %63 = vector.broadcast %61 : vector<16x1xf32> to vector<16x16xf32>
    %64 = vector.broadcast %62 : vector<1x16xf32> to vector<16x16xf32>
    %65 = arith.addf %63, %64 : vector<16x16xf32>
    %66 = arith.addf %65, %60 : vector<16x16xf32>
    %cst_16 = arith.constant 0.000000e+00 : f32
    %67 = vector.broadcast %cst_16 : f32 to vector<16x16xf32>
    %68 = arith.cmpf ogt, %66, %67 : vector<16x16xf32>
    %cst_17 = arith.constant 2.000000e-01 : f32
    %69 = vector.broadcast %cst_17 : f32 to vector<16x16xf32>
    %70 = arith.mulf %69, %66 : vector<16x16xf32>
    %71 = arith.select %68, %66, %70 : vector<16x16xi1>, vector<16x16xf32>
    %c1_18 = arith.constant 1 : index
    %72 = memref.load %arg8[%c1_18] : memref<16xf32, #tpu.memory_space<smem>>
    %73 = vector.broadcast %72 : f32 to vector<16x16xf32>
    %74 = arith.mulf %71, %73 : vector<16x16xf32>
    %75 = arith.addf %43, %74 : vector<16x16xf32>
    %76 = vector.extract_strided_slice %4 {offsets = [0, 0, 0], sizes = [1, 16, 16], strides = [1, 1, 1]} : vector<3x16x16xf32> to vector<1x16x16xf32>
    %77 = vector.shape_cast %76 : vector<1x16x16xf32> to vector<16x16xf32>
    %c2 = arith.constant 2 : index
    %78 = memref.load %arg7[%c2] : memref<48xf32, #tpu.memory_space<smem>>
    %79 = vector.broadcast %78 : f32 to vector<16x16xf32>
    %80 = arith.mulf %77, %79 : vector<16x16xf32>
    %81 = vector.extract_strided_slice %4 {offsets = [1, 0, 0], sizes = [1, 16, 16], strides = [1, 1, 1]} : vector<3x16x16xf32> to vector<1x16x16xf32>
    %82 = vector.shape_cast %81 : vector<1x16x16xf32> to vector<16x16xf32>
    %c10 = arith.constant 10 : index
    %83 = memref.load %arg7[%c10] : memref<48xf32, #tpu.memory_space<smem>>
    %84 = vector.broadcast %83 : f32 to vector<16x16xf32>
    %85 = arith.mulf %82, %84 : vector<16x16xf32>
    %86 = arith.addf %80, %85 : vector<16x16xf32>
    %87 = vector.extract_strided_slice %4 {offsets = [2, 0, 0], sizes = [1, 16, 16], strides = [1, 1, 1]} : vector<3x16x16xf32> to vector<1x16x16xf32>
    %88 = vector.shape_cast %87 : vector<1x16x16xf32> to vector<16x16xf32>
    %c18 = arith.constant 18 : index
    %89 = memref.load %arg7[%c18] : memref<48xf32, #tpu.memory_space<smem>>
    %90 = vector.broadcast %89 : f32 to vector<16x16xf32>
    %91 = arith.mulf %88, %90 : vector<16x16xf32>
    %92 = arith.addf %86, %91 : vector<16x16xf32>
    %93 = vector.extract_strided_slice %10 {offsets = [0, 2], sizes = [16, 1], strides = [1, 1]} : vector<16x8xf32> to vector<16x1xf32>
    %94 = vector.extract_strided_slice %12 {offsets = [2, 0], sizes = [1, 16], strides = [1, 1]} : vector<8x16xf32> to vector<1x16xf32>
    %95 = vector.broadcast %93 : vector<16x1xf32> to vector<16x16xf32>
    %96 = vector.broadcast %94 : vector<1x16xf32> to vector<16x16xf32>
    %97 = arith.addf %95, %96 : vector<16x16xf32>
    %98 = arith.addf %97, %92 : vector<16x16xf32>
    %cst_19 = arith.constant 0.000000e+00 : f32
    %99 = vector.broadcast %cst_19 : f32 to vector<16x16xf32>
    %100 = arith.cmpf ogt, %98, %99 : vector<16x16xf32>
    %cst_20 = arith.constant 2.000000e-01 : f32
    %101 = vector.broadcast %cst_20 : f32 to vector<16x16xf32>
    %102 = arith.mulf %101, %98 : vector<16x16xf32>
    %103 = arith.select %100, %98, %102 : vector<16x16xi1>, vector<16x16xf32>
    %c2_21 = arith.constant 2 : index
    %104 = memref.load %arg8[%c2_21] : memref<16xf32, #tpu.memory_space<smem>>
    %105 = vector.broadcast %104 : f32 to vector<16x16xf32>
    %106 = arith.mulf %103, %105 : vector<16x16xf32>
    %107 = arith.addf %75, %106 : vector<16x16xf32>
    %108 = vector.extract_strided_slice %4 {offsets = [0, 0, 0], sizes = [1, 16, 16], strides = [1, 1, 1]} : vector<3x16x16xf32> to vector<1x16x16xf32>
    %109 = vector.shape_cast %108 : vector<1x16x16xf32> to vector<16x16xf32>
    %c3 = arith.constant 3 : index
    %110 = memref.load %arg7[%c3] : memref<48xf32, #tpu.memory_space<smem>>
    %111 = vector.broadcast %110 : f32 to vector<16x16xf32>
    %112 = arith.mulf %109, %111 : vector<16x16xf32>
    %113 = vector.extract_strided_slice %4 {offsets = [1, 0, 0], sizes = [1, 16, 16], strides = [1, 1, 1]} : vector<3x16x16xf32> to vector<1x16x16xf32>
    %114 = vector.shape_cast %113 : vector<1x16x16xf32> to vector<16x16xf32>
    %c11 = arith.constant 11 : index
    %115 = memref.load %arg7[%c11] : memref<48xf32, #tpu.memory_space<smem>>
    %116 = vector.broadcast %115 : f32 to vector<16x16xf32>
    %117 = arith.mulf %114, %116 : vector<16x16xf32>
    %118 = arith.addf %112, %117 : vector<16x16xf32>
    %119 = vector.extract_strided_slice %4 {offsets = [2, 0, 0], sizes = [1, 16, 16], strides = [1, 1, 1]} : vector<3x16x16xf32> to vector<1x16x16xf32>
    %120 = vector.shape_cast %119 : vector<1x16x16xf32> to vector<16x16xf32>
    %c19 = arith.constant 19 : index
    %121 = memref.load %arg7[%c19] : memref<48xf32, #tpu.memory_space<smem>>
    %122 = vector.broadcast %121 : f32 to vector<16x16xf32>
    %123 = arith.mulf %120, %122 : vector<16x16xf32>
    %124 = arith.addf %118, %123 : vector<16x16xf32>
    %125 = vector.extract_strided_slice %10 {offsets = [0, 3], sizes = [16, 1], strides = [1, 1]} : vector<16x8xf32> to vector<16x1xf32>
    %126 = vector.extract_strided_slice %12 {offsets = [3, 0], sizes = [1, 16], strides = [1, 1]} : vector<8x16xf32> to vector<1x16xf32>
    %127 = vector.broadcast %125 : vector<16x1xf32> to vector<16x16xf32>
    %128 = vector.broadcast %126 : vector<1x16xf32> to vector<16x16xf32>
    %129 = arith.addf %127, %128 : vector<16x16xf32>
    %130 = arith.addf %129, %124 : vector<16x16xf32>
    %cst_22 = arith.constant 0.000000e+00 : f32
    %131 = vector.broadcast %cst_22 : f32 to vector<16x16xf32>
    %132 = arith.cmpf ogt, %130, %131 : vector<16x16xf32>
    %cst_23 = arith.constant 2.000000e-01 : f32
    %133 = vector.broadcast %cst_23 : f32 to vector<16x16xf32>
    %134 = arith.mulf %133, %130 : vector<16x16xf32>
    %135 = arith.select %132, %130, %134 : vector<16x16xi1>, vector<16x16xf32>
    %c3_24 = arith.constant 3 : index
    %136 = memref.load %arg8[%c3_24] : memref<16xf32, #tpu.memory_space<smem>>
    %137 = vector.broadcast %136 : f32 to vector<16x16xf32>
    %138 = arith.mulf %135, %137 : vector<16x16xf32>
    %139 = arith.addf %107, %138 : vector<16x16xf32>
    %140 = vector.extract_strided_slice %4 {offsets = [0, 0, 0], sizes = [1, 16, 16], strides = [1, 1, 1]} : vector<3x16x16xf32> to vector<1x16x16xf32>
    %141 = vector.shape_cast %140 : vector<1x16x16xf32> to vector<16x16xf32>
    %c4 = arith.constant 4 : index
    %142 = memref.load %arg7[%c4] : memref<48xf32, #tpu.memory_space<smem>>
    %143 = vector.broadcast %142 : f32 to vector<16x16xf32>
    %144 = arith.mulf %141, %143 : vector<16x16xf32>
    %145 = vector.extract_strided_slice %4 {offsets = [1, 0, 0], sizes = [1, 16, 16], strides = [1, 1, 1]} : vector<3x16x16xf32> to vector<1x16x16xf32>
    %146 = vector.shape_cast %145 : vector<1x16x16xf32> to vector<16x16xf32>
    %c12 = arith.constant 12 : index
    %147 = memref.load %arg7[%c12] : memref<48xf32, #tpu.memory_space<smem>>
    %148 = vector.broadcast %147 : f32 to vector<16x16xf32>
    %149 = arith.mulf %146, %148 : vector<16x16xf32>
    %150 = arith.addf %144, %149 : vector<16x16xf32>
    %151 = vector.extract_strided_slice %4 {offsets = [2, 0, 0], sizes = [1, 16, 16], strides = [1, 1, 1]} : vector<3x16x16xf32> to vector<1x16x16xf32>
    %152 = vector.shape_cast %151 : vector<1x16x16xf32> to vector<16x16xf32>
    %c20 = arith.constant 20 : index
    %153 = memref.load %arg7[%c20] : memref<48xf32, #tpu.memory_space<smem>>
    %154 = vector.broadcast %153 : f32 to vector<16x16xf32>
    %155 = arith.mulf %152, %154 : vector<16x16xf32>
    %156 = arith.addf %150, %155 : vector<16x16xf32>
    %157 = vector.extract_strided_slice %10 {offsets = [0, 4], sizes = [16, 1], strides = [1, 1]} : vector<16x8xf32> to vector<16x1xf32>
    %158 = vector.extract_strided_slice %12 {offsets = [4, 0], sizes = [1, 16], strides = [1, 1]} : vector<8x16xf32> to vector<1x16xf32>
    %159 = vector.broadcast %157 : vector<16x1xf32> to vector<16x16xf32>
    %160 = vector.broadcast %158 : vector<1x16xf32> to vector<16x16xf32>
    %161 = arith.addf %159, %160 : vector<16x16xf32>
    %162 = arith.addf %161, %156 : vector<16x16xf32>
    %cst_25 = arith.constant 0.000000e+00 : f32
    %163 = vector.broadcast %cst_25 : f32 to vector<16x16xf32>
    %164 = arith.cmpf ogt, %162, %163 : vector<16x16xf32>
    %cst_26 = arith.constant 2.000000e-01 : f32
    %165 = vector.broadcast %cst_26 : f32 to vector<16x16xf32>
    %166 = arith.mulf %165, %162 : vector<16x16xf32>
    %167 = arith.select %164, %162, %166 : vector<16x16xi1>, vector<16x16xf32>
    %c4_27 = arith.constant 4 : index
    %168 = memref.load %arg8[%c4_27] : memref<16xf32, #tpu.memory_space<smem>>
    %169 = vector.broadcast %168 : f32 to vector<16x16xf32>
    %170 = arith.mulf %167, %169 : vector<16x16xf32>
    %171 = arith.addf %139, %170 : vector<16x16xf32>
    %172 = vector.extract_strided_slice %4 {offsets = [0, 0, 0], sizes = [1, 16, 16], strides = [1, 1, 1]} : vector<3x16x16xf32> to vector<1x16x16xf32>
    %173 = vector.shape_cast %172 : vector<1x16x16xf32> to vector<16x16xf32>
    %c5 = arith.constant 5 : index
    %174 = memref.load %arg7[%c5] : memref<48xf32, #tpu.memory_space<smem>>
    %175 = vector.broadcast %174 : f32 to vector<16x16xf32>
    %176 = arith.mulf %173, %175 : vector<16x16xf32>
    %177 = vector.extract_strided_slice %4 {offsets = [1, 0, 0], sizes = [1, 16, 16], strides = [1, 1, 1]} : vector<3x16x16xf32> to vector<1x16x16xf32>
    %178 = vector.shape_cast %177 : vector<1x16x16xf32> to vector<16x16xf32>
    %c13 = arith.constant 13 : index
    %179 = memref.load %arg7[%c13] : memref<48xf32, #tpu.memory_space<smem>>
    %180 = vector.broadcast %179 : f32 to vector<16x16xf32>
    %181 = arith.mulf %178, %180 : vector<16x16xf32>
    %182 = arith.addf %176, %181 : vector<16x16xf32>
    %183 = vector.extract_strided_slice %4 {offsets = [2, 0, 0], sizes = [1, 16, 16], strides = [1, 1, 1]} : vector<3x16x16xf32> to vector<1x16x16xf32>
    %184 = vector.shape_cast %183 : vector<1x16x16xf32> to vector<16x16xf32>
    %c21 = arith.constant 21 : index
    %185 = memref.load %arg7[%c21] : memref<48xf32, #tpu.memory_space<smem>>
    %186 = vector.broadcast %185 : f32 to vector<16x16xf32>
    %187 = arith.mulf %184, %186 : vector<16x16xf32>
    %188 = arith.addf %182, %187 : vector<16x16xf32>
    %189 = vector.extract_strided_slice %10 {offsets = [0, 5], sizes = [16, 1], strides = [1, 1]} : vector<16x8xf32> to vector<16x1xf32>
    %190 = vector.extract_strided_slice %12 {offsets = [5, 0], sizes = [1, 16], strides = [1, 1]} : vector<8x16xf32> to vector<1x16xf32>
    %191 = vector.broadcast %189 : vector<16x1xf32> to vector<16x16xf32>
    %192 = vector.broadcast %190 : vector<1x16xf32> to vector<16x16xf32>
    %193 = arith.addf %191, %192 : vector<16x16xf32>
    %194 = arith.addf %193, %188 : vector<16x16xf32>
    %cst_28 = arith.constant 0.000000e+00 : f32
    %195 = vector.broadcast %cst_28 : f32 to vector<16x16xf32>
    %196 = arith.cmpf ogt, %194, %195 : vector<16x16xf32>
    %cst_29 = arith.constant 2.000000e-01 : f32
    %197 = vector.broadcast %cst_29 : f32 to vector<16x16xf32>
    %198 = arith.mulf %197, %194 : vector<16x16xf32>
    %199 = arith.select %196, %194, %198 : vector<16x16xi1>, vector<16x16xf32>
    %c5_30 = arith.constant 5 : index
    %200 = memref.load %arg8[%c5_30] : memref<16xf32, #tpu.memory_space<smem>>
    %201 = vector.broadcast %200 : f32 to vector<16x16xf32>
    %202 = arith.mulf %199, %201 : vector<16x16xf32>
    %203 = arith.addf %171, %202 : vector<16x16xf32>
    %204 = vector.extract_strided_slice %4 {offsets = [0, 0, 0], sizes = [1, 16, 16], strides = [1, 1, 1]} : vector<3x16x16xf32> to vector<1x16x16xf32>
    %205 = vector.shape_cast %204 : vector<1x16x16xf32> to vector<16x16xf32>
    %c6 = arith.constant 6 : index
    %206 = memref.load %arg7[%c6] : memref<48xf32, #tpu.memory_space<smem>>
    %207 = vector.broadcast %206 : f32 to vector<16x16xf32>
    %208 = arith.mulf %205, %207 : vector<16x16xf32>
    %209 = vector.extract_strided_slice %4 {offsets = [1, 0, 0], sizes = [1, 16, 16], strides = [1, 1, 1]} : vector<3x16x16xf32> to vector<1x16x16xf32>
    %210 = vector.shape_cast %209 : vector<1x16x16xf32> to vector<16x16xf32>
    %c14 = arith.constant 14 : index
    %211 = memref.load %arg7[%c14] : memref<48xf32, #tpu.memory_space<smem>>
    %212 = vector.broadcast %211 : f32 to vector<16x16xf32>
    %213 = arith.mulf %210, %212 : vector<16x16xf32>
    %214 = arith.addf %208, %213 : vector<16x16xf32>
    %215 = vector.extract_strided_slice %4 {offsets = [2, 0, 0], sizes = [1, 16, 16], strides = [1, 1, 1]} : vector<3x16x16xf32> to vector<1x16x16xf32>
    %216 = vector.shape_cast %215 : vector<1x16x16xf32> to vector<16x16xf32>
    %c22 = arith.constant 22 : index
    %217 = memref.load %arg7[%c22] : memref<48xf32, #tpu.memory_space<smem>>
    %218 = vector.broadcast %217 : f32 to vector<16x16xf32>
    %219 = arith.mulf %216, %218 : vector<16x16xf32>
    %220 = arith.addf %214, %219 : vector<16x16xf32>
    %221 = vector.extract_strided_slice %10 {offsets = [0, 6], sizes = [16, 1], strides = [1, 1]} : vector<16x8xf32> to vector<16x1xf32>
    %222 = vector.extract_strided_slice %12 {offsets = [6, 0], sizes = [1, 16], strides = [1, 1]} : vector<8x16xf32> to vector<1x16xf32>
    %223 = vector.broadcast %221 : vector<16x1xf32> to vector<16x16xf32>
    %224 = vector.broadcast %222 : vector<1x16xf32> to vector<16x16xf32>
    %225 = arith.addf %223, %224 : vector<16x16xf32>
    %226 = arith.addf %225, %220 : vector<16x16xf32>
    %cst_31 = arith.constant 0.000000e+00 : f32
    %227 = vector.broadcast %cst_31 : f32 to vector<16x16xf32>
    %228 = arith.cmpf ogt, %226, %227 : vector<16x16xf32>
    %cst_32 = arith.constant 2.000000e-01 : f32
    %229 = vector.broadcast %cst_32 : f32 to vector<16x16xf32>
    %230 = arith.mulf %229, %226 : vector<16x16xf32>
    %231 = arith.select %228, %226, %230 : vector<16x16xi1>, vector<16x16xf32>
    %c6_33 = arith.constant 6 : index
    %232 = memref.load %arg8[%c6_33] : memref<16xf32, #tpu.memory_space<smem>>
    %233 = vector.broadcast %232 : f32 to vector<16x16xf32>
    %234 = arith.mulf %231, %233 : vector<16x16xf32>
    %235 = arith.addf %203, %234 : vector<16x16xf32>
    %236 = vector.extract_strided_slice %4 {offsets = [0, 0, 0], sizes = [1, 16, 16], strides = [1, 1, 1]} : vector<3x16x16xf32> to vector<1x16x16xf32>
    %237 = vector.shape_cast %236 : vector<1x16x16xf32> to vector<16x16xf32>
    %c7 = arith.constant 7 : index
    %238 = memref.load %arg7[%c7] : memref<48xf32, #tpu.memory_space<smem>>
    %239 = vector.broadcast %238 : f32 to vector<16x16xf32>
    %240 = arith.mulf %237, %239 : vector<16x16xf32>
    %241 = vector.extract_strided_slice %4 {offsets = [1, 0, 0], sizes = [1, 16, 16], strides = [1, 1, 1]} : vector<3x16x16xf32> to vector<1x16x16xf32>
    %242 = vector.shape_cast %241 : vector<1x16x16xf32> to vector<16x16xf32>
    %c15 = arith.constant 15 : index
    %243 = memref.load %arg7[%c15] : memref<48xf32, #tpu.memory_space<smem>>
    %244 = vector.broadcast %243 : f32 to vector<16x16xf32>
    %245 = arith.mulf %242, %244 : vector<16x16xf32>
    %246 = arith.addf %240, %245 : vector<16x16xf32>
    %247 = vector.extract_strided_slice %4 {offsets = [2, 0, 0], sizes = [1, 16, 16], strides = [1, 1, 1]} : vector<3x16x16xf32> to vector<1x16x16xf32>
    %248 = vector.shape_cast %247 : vector<1x16x16xf32> to vector<16x16xf32>
    %c23 = arith.constant 23 : index
    %249 = memref.load %arg7[%c23] : memref<48xf32, #tpu.memory_space<smem>>
    %250 = vector.broadcast %249 : f32 to vector<16x16xf32>
    %251 = arith.mulf %248, %250 : vector<16x16xf32>
    %252 = arith.addf %246, %251 : vector<16x16xf32>
    %253 = vector.extract_strided_slice %10 {offsets = [0, 7], sizes = [16, 1], strides = [1, 1]} : vector<16x8xf32> to vector<16x1xf32>
    %254 = vector.extract_strided_slice %12 {offsets = [7, 0], sizes = [1, 16], strides = [1, 1]} : vector<8x16xf32> to vector<1x16xf32>
    %255 = vector.broadcast %253 : vector<16x1xf32> to vector<16x16xf32>
    %256 = vector.broadcast %254 : vector<1x16xf32> to vector<16x16xf32>
    %257 = arith.addf %255, %256 : vector<16x16xf32>
    %258 = arith.addf %257, %252 : vector<16x16xf32>
    %cst_34 = arith.constant 0.000000e+00 : f32
    %259 = vector.broadcast %cst_34 : f32 to vector<16x16xf32>
    %260 = arith.cmpf ogt, %258, %259 : vector<16x16xf32>
    %cst_35 = arith.constant 2.000000e-01 : f32
    %261 = vector.broadcast %cst_35 : f32 to vector<16x16xf32>
    %262 = arith.mulf %261, %258 : vector<16x16xf32>
    %263 = arith.select %260, %258, %262 : vector<16x16xi1>, vector<16x16xf32>
    %c7_36 = arith.constant 7 : index
    %264 = memref.load %arg8[%c7_36] : memref<16xf32, #tpu.memory_space<smem>>
    %265 = vector.broadcast %264 : f32 to vector<16x16xf32>
    %266 = arith.mulf %263, %265 : vector<16x16xf32>
    %267 = arith.addf %235, %266 : vector<16x16xf32>
    %cst_37 = arith.constant -1.000000e+30 : f32
    %268 = vector.broadcast %cst_37 : f32 to vector<16x16xf32>
    %269 = arith.select %8, %267, %268 : vector<16x16xi1>, vector<16x16xf32>
    %c0_38 = arith.constant 0 : index
    %c0_39 = arith.constant 0 : index
    %270 = vector.load %arg11[%c0_38, %c0_39] : memref<16x2xf32, #tpu.memory_space<vmem>>, vector<16x1xf32>
    %cst_40 = arith.constant dense<0xFF800000> : vector<16xf32>
    %271 = vector.multi_reduction <maximumf>, %269, %cst_40 [1] : vector<16x16xf32> to vector<16xf32>
    %272 = vector.shape_cast %271 : vector<16xf32> to vector<16x1xf32>
    %273 = arith.maximumf %270, %272 : vector<16x1xf32>
    %274 = arith.subf %270, %273 : vector<16x1xf32>
    %275 = math.exp %274 : vector<16x1xf32>
    %276 = vector.broadcast %273 : vector<16x1xf32> to vector<16x16xf32>
    %277 = arith.subf %269, %276 : vector<16x16xf32>
    %278 = math.exp %277 : vector<16x16xf32>
    %cst_41 = arith.constant 0.000000e+00 : f32
    %279 = vector.broadcast %cst_41 : f32 to vector<16x16xf32>
    %280 = arith.select %8, %278, %279 : vector<16x16xi1>, vector<16x16xf32>
    %c0_42 = arith.constant 0 : index
    %c0_43 = arith.constant 0 : index
    %281 = vector.load %arg12[%c0_42, %c0_43] : memref<16x2xf32, #tpu.memory_space<vmem>>, vector<16x1xf32>
    %282 = arith.mulf %275, %281 : vector<16x1xf32>
    %cst_44 = arith.constant dense<0.000000e+00> : vector<16xf32>
    %283 = vector.multi_reduction <add>, %280, %cst_44 [1] : vector<16x16xf32> to vector<16xf32>
    %284 = vector.shape_cast %283 : vector<16xf32> to vector<16x1xf32>
    %285 = arith.addf %282, %284 : vector<16x1xf32>
    %c0_45 = arith.constant 0 : index
    %c0_46 = arith.constant 0 : index
    %286 = vector.load %arg12[%c0_45, %c0_46] : memref<16x2xf32, #tpu.memory_space<vmem>>, vector<16x1xf32>
    tpu.vector_store %arg12[%c0_45, %c0_46], %285 {strides = array<i32>} : memref<16x2xf32, #tpu.memory_space<vmem>>, vector<16x1xf32>,
    %c0_47 = arith.constant 0 : index
    %c0_48 = arith.constant 0 : index
    %287 = vector.load %arg13[%c0_47, %c0_48] : memref<16x16xf32, #tpu.memory_space<vmem>>, vector<16x8xf32>
    %288 = vector.broadcast %275 : vector<16x1xf32> to vector<16x8xf32>
    %289 = arith.mulf %288, %287 : vector<16x8xf32>
    %c0_49 = arith.constant 0 : index
    %c0_50 = arith.constant 0 : index
    %c0_51 = arith.constant 0 : index
    %290 = vector.load %arg4[%c0_49, %c0_50, %c0_51] : memref<2x16x8xf32, #tpu.memory_space<vmem>>, vector<1x16x8xf32>
    %291 = vector.shape_cast %290 : vector<1x16x8xf32> to vector<16x8xf32>
    %cst_52 = arith.constant dense<0.000000e+00> : vector<16x8xf32>
    %292 = tpu.matmul %280, %291, %cst_52 {dimension_numbers = #tpu.dot_dimension_numbers<[1], [0], [0], [1], [0, 0, 1, 1], [], []>} : vector<16x16xf32>, vector<16x8xf32>, vector<16x8xf32> -> vector<16x8xf32>
    %293 = arith.addf %289, %292 : vector<16x8xf32>
    %c0_53 = arith.constant 0 : index
    %c0_54 = arith.constant 0 : index
    %294 = vector.load %arg13[%c0_53, %c0_54] : memref<16x16xf32, #tpu.memory_space<vmem>>, vector<16x8xf32>
    tpu.vector_store %arg13[%c0_53, %c0_54], %293 {strides = array<i32>} : memref<16x16xf32, #tpu.memory_space<vmem>>, vector<16x8xf32>,
    %c0_55 = arith.constant 0 : index
    %c0_56 = arith.constant 0 : index
    %295 = vector.load %arg11[%c0_55, %c0_56] : memref<16x2xf32, #tpu.memory_space<vmem>>, vector<16x1xf32>
    tpu.vector_store %arg11[%c0_55, %c0_56], %273 {strides = array<i32>} : memref<16x2xf32, #tpu.memory_space<vmem>>, vector<16x1xf32>,
    %c1_57 = arith.constant 1 : index
    %c0_58 = arith.constant 0 : index
    %c0_59 = arith.constant 0 : index
    %296 = vector.load %arg2[%c1_57, %c0_58, %c0_59] : memref<2x16x8xf32, #tpu.memory_space<vmem>>, vector<1x16x8xf32>
    %297 = vector.shape_cast %296 : vector<1x16x8xf32> to vector<16x8xf32>
    %c1_60 = arith.constant 1 : index
    %c0_61 = arith.constant 0 : index
    %c0_62 = arith.constant 0 : index
    %298 = vector.load %arg3[%c1_60, %c0_61, %c0_62] : memref<2x8x16xf32, #tpu.memory_space<vmem>>, vector<1x8x16xf32>
    %299 = vector.shape_cast %298 : vector<1x8x16xf32> to vector<8x16xf32>
    %300 = vector.extract_strided_slice %4 {offsets = [0, 0, 0], sizes = [1, 16, 16], strides = [1, 1, 1]} : vector<3x16x16xf32> to vector<1x16x16xf32>
    %301 = vector.shape_cast %300 : vector<1x16x16xf32> to vector<16x16xf32>
    %c24 = arith.constant 24 : index
    %302 = memref.load %arg7[%c24] : memref<48xf32, #tpu.memory_space<smem>>
    %303 = vector.broadcast %302 : f32 to vector<16x16xf32>
    %304 = arith.mulf %301, %303 : vector<16x16xf32>
    %305 = vector.extract_strided_slice %4 {offsets = [1, 0, 0], sizes = [1, 16, 16], strides = [1, 1, 1]} : vector<3x16x16xf32> to vector<1x16x16xf32>
    %306 = vector.shape_cast %305 : vector<1x16x16xf32> to vector<16x16xf32>
    %c32 = arith.constant 32 : index
    %307 = memref.load %arg7[%c32] : memref<48xf32, #tpu.memory_space<smem>>
    %308 = vector.broadcast %307 : f32 to vector<16x16xf32>
    %309 = arith.mulf %306, %308 : vector<16x16xf32>
    %310 = arith.addf %304, %309 : vector<16x16xf32>
    %311 = vector.extract_strided_slice %4 {offsets = [2, 0, 0], sizes = [1, 16, 16], strides = [1, 1, 1]} : vector<3x16x16xf32> to vector<1x16x16xf32>
    %312 = vector.shape_cast %311 : vector<1x16x16xf32> to vector<16x16xf32>
    %c40 = arith.constant 40 : index
    %313 = memref.load %arg7[%c40] : memref<48xf32, #tpu.memory_space<smem>>
    %314 = vector.broadcast %313 : f32 to vector<16x16xf32>
    %315 = arith.mulf %312, %314 : vector<16x16xf32>
    %316 = arith.addf %310, %315 : vector<16x16xf32>
    %317 = vector.extract_strided_slice %297 {offsets = [0, 0], sizes = [16, 1], strides = [1, 1]} : vector<16x8xf32> to vector<16x1xf32>
    %318 = vector.extract_strided_slice %299 {offsets = [0, 0], sizes = [1, 16], strides = [1, 1]} : vector<8x16xf32> to vector<1x16xf32>
    %319 = vector.broadcast %317 : vector<16x1xf32> to vector<16x16xf32>
    %320 = vector.broadcast %318 : vector<1x16xf32> to vector<16x16xf32>
    %321 = arith.addf %319, %320 : vector<16x16xf32>
    %322 = arith.addf %321, %316 : vector<16x16xf32>
    %cst_63 = arith.constant 0.000000e+00 : f32
    %323 = vector.broadcast %cst_63 : f32 to vector<16x16xf32>
    %324 = arith.cmpf ogt, %322, %323 : vector<16x16xf32>
    %cst_64 = arith.constant 2.000000e-01 : f32
    %325 = vector.broadcast %cst_64 : f32 to vector<16x16xf32>
    %326 = arith.mulf %325, %322 : vector<16x16xf32>
    %327 = arith.select %324, %322, %326 : vector<16x16xi1>, vector<16x16xf32>
    %c8_65 = arith.constant 8 : index
    %328 = memref.load %arg8[%c8_65] : memref<16xf32, #tpu.memory_space<smem>>
    %329 = vector.broadcast %328 : f32 to vector<16x16xf32>
    %330 = arith.mulf %327, %329 : vector<16x16xf32>
    %331 = vector.extract_strided_slice %4 {offsets = [0, 0, 0], sizes = [1, 16, 16], strides = [1, 1, 1]} : vector<3x16x16xf32> to vector<1x16x16xf32>
    %332 = vector.shape_cast %331 : vector<1x16x16xf32> to vector<16x16xf32>
    %c25 = arith.constant 25 : index
    %333 = memref.load %arg7[%c25] : memref<48xf32, #tpu.memory_space<smem>>
    %334 = vector.broadcast %333 : f32 to vector<16x16xf32>
    %335 = arith.mulf %332, %334 : vector<16x16xf32>
    %336 = vector.extract_strided_slice %4 {offsets = [1, 0, 0], sizes = [1, 16, 16], strides = [1, 1, 1]} : vector<3x16x16xf32> to vector<1x16x16xf32>
    %337 = vector.shape_cast %336 : vector<1x16x16xf32> to vector<16x16xf32>
    %c33 = arith.constant 33 : index
    %338 = memref.load %arg7[%c33] : memref<48xf32, #tpu.memory_space<smem>>
    %339 = vector.broadcast %338 : f32 to vector<16x16xf32>
    %340 = arith.mulf %337, %339 : vector<16x16xf32>
    %341 = arith.addf %335, %340 : vector<16x16xf32>
    %342 = vector.extract_strided_slice %4 {offsets = [2, 0, 0], sizes = [1, 16, 16], strides = [1, 1, 1]} : vector<3x16x16xf32> to vector<1x16x16xf32>
    %343 = vector.shape_cast %342 : vector<1x16x16xf32> to vector<16x16xf32>
    %c41 = arith.constant 41 : index
    %344 = memref.load %arg7[%c41] : memref<48xf32, #tpu.memory_space<smem>>
    %345 = vector.broadcast %344 : f32 to vector<16x16xf32>
    %346 = arith.mulf %343, %345 : vector<16x16xf32>
    %347 = arith.addf %341, %346 : vector<16x16xf32>
    %348 = vector.extract_strided_slice %297 {offsets = [0, 1], sizes = [16, 1], strides = [1, 1]} : vector<16x8xf32> to vector<16x1xf32>
    %349 = vector.extract_strided_slice %299 {offsets = [1, 0], sizes = [1, 16], strides = [1, 1]} : vector<8x16xf32> to vector<1x16xf32>
    %350 = vector.broadcast %348 : vector<16x1xf32> to vector<16x16xf32>
    %351 = vector.broadcast %349 : vector<1x16xf32> to vector<16x16xf32>
    %352 = arith.addf %350, %351 : vector<16x16xf32>
    %353 = arith.addf %352, %347 : vector<16x16xf32>
    %cst_66 = arith.constant 0.000000e+00 : f32
    %354 = vector.broadcast %cst_66 : f32 to vector<16x16xf32>
    %355 = arith.cmpf ogt, %353, %354 : vector<16x16xf32>
    %cst_67 = arith.constant 2.000000e-01 : f32
    %356 = vector.broadcast %cst_67 : f32 to vector<16x16xf32>
    %357 = arith.mulf %356, %353 : vector<16x16xf32>
    %358 = arith.select %355, %353, %357 : vector<16x16xi1>, vector<16x16xf32>
    %c9_68 = arith.constant 9 : index
    %359 = memref.load %arg8[%c9_68] : memref<16xf32, #tpu.memory_space<smem>>
    %360 = vector.broadcast %359 : f32 to vector<16x16xf32>
    %361 = arith.mulf %358, %360 : vector<16x16xf32>
    %362 = arith.addf %330, %361 : vector<16x16xf32>
    %363 = vector.extract_strided_slice %4 {offsets = [0, 0, 0], sizes = [1, 16, 16], strides = [1, 1, 1]} : vector<3x16x16xf32> to vector<1x16x16xf32>
    %364 = vector.shape_cast %363 : vector<1x16x16xf32> to vector<16x16xf32>
    %c26 = arith.constant 26 : index
    %365 = memref.load %arg7[%c26] : memref<48xf32, #tpu.memory_space<smem>>
    %366 = vector.broadcast %365 : f32 to vector<16x16xf32>
    %367 = arith.mulf %364, %366 : vector<16x16xf32>
    %368 = vector.extract_strided_slice %4 {offsets = [1, 0, 0], sizes = [1, 16, 16], strides = [1, 1, 1]} : vector<3x16x16xf32> to vector<1x16x16xf32>
    %369 = vector.shape_cast %368 : vector<1x16x16xf32> to vector<16x16xf32>
    %c34 = arith.constant 34 : index
    %370 = memref.load %arg7[%c34] : memref<48xf32, #tpu.memory_space<smem>>
    %371 = vector.broadcast %370 : f32 to vector<16x16xf32>
    %372 = arith.mulf %369, %371 : vector<16x16xf32>
    %373 = arith.addf %367, %372 : vector<16x16xf32>
    %374 = vector.extract_strided_slice %4 {offsets = [2, 0, 0], sizes = [1, 16, 16], strides = [1, 1, 1]} : vector<3x16x16xf32> to vector<1x16x16xf32>
    %375 = vector.shape_cast %374 : vector<1x16x16xf32> to vector<16x16xf32>
    %c42 = arith.constant 42 : index
    %376 = memref.load %arg7[%c42] : memref<48xf32, #tpu.memory_space<smem>>
    %377 = vector.broadcast %376 : f32 to vector<16x16xf32>
    %378 = arith.mulf %375, %377 : vector<16x16xf32>
    %379 = arith.addf %373, %378 : vector<16x16xf32>
    %380 = vector.extract_strided_slice %297 {offsets = [0, 2], sizes = [16, 1], strides = [1, 1]} : vector<16x8xf32> to vector<16x1xf32>
    %381 = vector.extract_strided_slice %299 {offsets = [2, 0], sizes = [1, 16], strides = [1, 1]} : vector<8x16xf32> to vector<1x16xf32>
    %382 = vector.broadcast %380 : vector<16x1xf32> to vector<16x16xf32>
    %383 = vector.broadcast %381 : vector<1x16xf32> to vector<16x16xf32>
    %384 = arith.addf %382, %383 : vector<16x16xf32>
    %385 = arith.addf %384, %379 : vector<16x16xf32>
    %cst_69 = arith.constant 0.000000e+00 : f32
    %386 = vector.broadcast %cst_69 : f32 to vector<16x16xf32>
    %387 = arith.cmpf ogt, %385, %386 : vector<16x16xf32>
    %cst_70 = arith.constant 2.000000e-01 : f32
    %388 = vector.broadcast %cst_70 : f32 to vector<16x16xf32>
    %389 = arith.mulf %388, %385 : vector<16x16xf32>
    %390 = arith.select %387, %385, %389 : vector<16x16xi1>, vector<16x16xf32>
    %c10_71 = arith.constant 10 : index
    %391 = memref.load %arg8[%c10_71] : memref<16xf32, #tpu.memory_space<smem>>
    %392 = vector.broadcast %391 : f32 to vector<16x16xf32>
    %393 = arith.mulf %390, %392 : vector<16x16xf32>
    %394 = arith.addf %362, %393 : vector<16x16xf32>
    %395 = vector.extract_strided_slice %4 {offsets = [0, 0, 0], sizes = [1, 16, 16], strides = [1, 1, 1]} : vector<3x16x16xf32> to vector<1x16x16xf32>
    %396 = vector.shape_cast %395 : vector<1x16x16xf32> to vector<16x16xf32>
    %c27 = arith.constant 27 : index
    %397 = memref.load %arg7[%c27] : memref<48xf32, #tpu.memory_space<smem>>
    %398 = vector.broadcast %397 : f32 to vector<16x16xf32>
    %399 = arith.mulf %396, %398 : vector<16x16xf32>
    %400 = vector.extract_strided_slice %4 {offsets = [1, 0, 0], sizes = [1, 16, 16], strides = [1, 1, 1]} : vector<3x16x16xf32> to vector<1x16x16xf32>
    %401 = vector.shape_cast %400 : vector<1x16x16xf32> to vector<16x16xf32>
    %c35 = arith.constant 35 : index
    %402 = memref.load %arg7[%c35] : memref<48xf32, #tpu.memory_space<smem>>
    %403 = vector.broadcast %402 : f32 to vector<16x16xf32>
    %404 = arith.mulf %401, %403 : vector<16x16xf32>
    %405 = arith.addf %399, %404 : vector<16x16xf32>
    %406 = vector.extract_strided_slice %4 {offsets = [2, 0, 0], sizes = [1, 16, 16], strides = [1, 1, 1]} : vector<3x16x16xf32> to vector<1x16x16xf32>
    %407 = vector.shape_cast %406 : vector<1x16x16xf32> to vector<16x16xf32>
    %c43 = arith.constant 43 : index
    %408 = memref.load %arg7[%c43] : memref<48xf32, #tpu.memory_space<smem>>
    %409 = vector.broadcast %408 : f32 to vector<16x16xf32>
    %410 = arith.mulf %407, %409 : vector<16x16xf32>
    %411 = arith.addf %405, %410 : vector<16x16xf32>
    %412 = vector.extract_strided_slice %297 {offsets = [0, 3], sizes = [16, 1], strides = [1, 1]} : vector<16x8xf32> to vector<16x1xf32>
    %413 = vector.extract_strided_slice %299 {offsets = [3, 0], sizes = [1, 16], strides = [1, 1]} : vector<8x16xf32> to vector<1x16xf32>
    %414 = vector.broadcast %412 : vector<16x1xf32> to vector<16x16xf32>
    %415 = vector.broadcast %413 : vector<1x16xf32> to vector<16x16xf32>
    %416 = arith.addf %414, %415 : vector<16x16xf32>
    %417 = arith.addf %416, %411 : vector<16x16xf32>
    %cst_72 = arith.constant 0.000000e+00 : f32
    %418 = vector.broadcast %cst_72 : f32 to vector<16x16xf32>
    %419 = arith.cmpf ogt, %417, %418 : vector<16x16xf32>
    %cst_73 = arith.constant 2.000000e-01 : f32
    %420 = vector.broadcast %cst_73 : f32 to vector<16x16xf32>
    %421 = arith.mulf %420, %417 : vector<16x16xf32>
    %422 = arith.select %419, %417, %421 : vector<16x16xi1>, vector<16x16xf32>
    %c11_74 = arith.constant 11 : index
    %423 = memref.load %arg8[%c11_74] : memref<16xf32, #tpu.memory_space<smem>>
    %424 = vector.broadcast %423 : f32 to vector<16x16xf32>
    %425 = arith.mulf %422, %424 : vector<16x16xf32>
    %426 = arith.addf %394, %425 : vector<16x16xf32>
    %427 = vector.extract_strided_slice %4 {offsets = [0, 0, 0], sizes = [1, 16, 16], strides = [1, 1, 1]} : vector<3x16x16xf32> to vector<1x16x16xf32>
    %428 = vector.shape_cast %427 : vector<1x16x16xf32> to vector<16x16xf32>
    %c28 = arith.constant 28 : index
    %429 = memref.load %arg7[%c28] : memref<48xf32, #tpu.memory_space<smem>>
    %430 = vector.broadcast %429 : f32 to vector<16x16xf32>
    %431 = arith.mulf %428, %430 : vector<16x16xf32>
    %432 = vector.extract_strided_slice %4 {offsets = [1, 0, 0], sizes = [1, 16, 16], strides = [1, 1, 1]} : vector<3x16x16xf32> to vector<1x16x16xf32>
    %433 = vector.shape_cast %432 : vector<1x16x16xf32> to vector<16x16xf32>
    %c36 = arith.constant 36 : index
    %434 = memref.load %arg7[%c36] : memref<48xf32, #tpu.memory_space<smem>>
    %435 = vector.broadcast %434 : f32 to vector<16x16xf32>
    %436 = arith.mulf %433, %435 : vector<16x16xf32>
    %437 = arith.addf %431, %436 : vector<16x16xf32>
    %438 = vector.extract_strided_slice %4 {offsets = [2, 0, 0], sizes = [1, 16, 16], strides = [1, 1, 1]} : vector<3x16x16xf32> to vector<1x16x16xf32>
    %439 = vector.shape_cast %438 : vector<1x16x16xf32> to vector<16x16xf32>
    %c44 = arith.constant 44 : index
    %440 = memref.load %arg7[%c44] : memref<48xf32, #tpu.memory_space<smem>>
    %441 = vector.broadcast %440 : f32 to vector<16x16xf32>
    %442 = arith.mulf %439, %441 : vector<16x16xf32>
    %443 = arith.addf %437, %442 : vector<16x16xf32>
    %444 = vector.extract_strided_slice %297 {offsets = [0, 4], sizes = [16, 1], strides = [1, 1]} : vector<16x8xf32> to vector<16x1xf32>
    %445 = vector.extract_strided_slice %299 {offsets = [4, 0], sizes = [1, 16], strides = [1, 1]} : vector<8x16xf32> to vector<1x16xf32>
    %446 = vector.broadcast %444 : vector<16x1xf32> to vector<16x16xf32>
    %447 = vector.broadcast %445 : vector<1x16xf32> to vector<16x16xf32>
    %448 = arith.addf %446, %447 : vector<16x16xf32>
    %449 = arith.addf %448, %443 : vector<16x16xf32>
    %cst_75 = arith.constant 0.000000e+00 : f32
    %450 = vector.broadcast %cst_75 : f32 to vector<16x16xf32>
    %451 = arith.cmpf ogt, %449, %450 : vector<16x16xf32>
    %cst_76 = arith.constant 2.000000e-01 : f32
    %452 = vector.broadcast %cst_76 : f32 to vector<16x16xf32>
    %453 = arith.mulf %452, %449 : vector<16x16xf32>
    %454 = arith.select %451, %449, %453 : vector<16x16xi1>, vector<16x16xf32>
    %c12_77 = arith.constant 12 : index
    %455 = memref.load %arg8[%c12_77] : memref<16xf32, #tpu.memory_space<smem>>
    %456 = vector.broadcast %455 : f32 to vector<16x16xf32>
    %457 = arith.mulf %454, %456 : vector<16x16xf32>
    %458 = arith.addf %426, %457 : vector<16x16xf32>
    %459 = vector.extract_strided_slice %4 {offsets = [0, 0, 0], sizes = [1, 16, 16], strides = [1, 1, 1]} : vector<3x16x16xf32> to vector<1x16x16xf32>
    %460 = vector.shape_cast %459 : vector<1x16x16xf32> to vector<16x16xf32>
    %c29 = arith.constant 29 : index
    %461 = memref.load %arg7[%c29] : memref<48xf32, #tpu.memory_space<smem>>
    %462 = vector.broadcast %461 : f32 to vector<16x16xf32>
    %463 = arith.mulf %460, %462 : vector<16x16xf32>
    %464 = vector.extract_strided_slice %4 {offsets = [1, 0, 0], sizes = [1, 16, 16], strides = [1, 1, 1]} : vector<3x16x16xf32> to vector<1x16x16xf32>
    %465 = vector.shape_cast %464 : vector<1x16x16xf32> to vector<16x16xf32>
    %c37 = arith.constant 37 : index
    %466 = memref.load %arg7[%c37] : memref<48xf32, #tpu.memory_space<smem>>
    %467 = vector.broadcast %466 : f32 to vector<16x16xf32>
    %468 = arith.mulf %465, %467 : vector<16x16xf32>
    %469 = arith.addf %463, %468 : vector<16x16xf32>
    %470 = vector.extract_strided_slice %4 {offsets = [2, 0, 0], sizes = [1, 16, 16], strides = [1, 1, 1]} : vector<3x16x16xf32> to vector<1x16x16xf32>
    %471 = vector.shape_cast %470 : vector<1x16x16xf32> to vector<16x16xf32>
    %c45 = arith.constant 45 : index
    %472 = memref.load %arg7[%c45] : memref<48xf32, #tpu.memory_space<smem>>
    %473 = vector.broadcast %472 : f32 to vector<16x16xf32>
    %474 = arith.mulf %471, %473 : vector<16x16xf32>
    %475 = arith.addf %469, %474 : vector<16x16xf32>
    %476 = vector.extract_strided_slice %297 {offsets = [0, 5], sizes = [16, 1], strides = [1, 1]} : vector<16x8xf32> to vector<16x1xf32>
    %477 = vector.extract_strided_slice %299 {offsets = [5, 0], sizes = [1, 16], strides = [1, 1]} : vector<8x16xf32> to vector<1x16xf32>
    %478 = vector.broadcast %476 : vector<16x1xf32> to vector<16x16xf32>
    %479 = vector.broadcast %477 : vector<1x16xf32> to vector<16x16xf32>
    %480 = arith.addf %478, %479 : vector<16x16xf32>
    %481 = arith.addf %480, %475 : vector<16x16xf32>
    %cst_78 = arith.constant 0.000000e+00 : f32
    %482 = vector.broadcast %cst_78 : f32 to vector<16x16xf32>
    %483 = arith.cmpf ogt, %481, %482 : vector<16x16xf32>
    %cst_79 = arith.constant 2.000000e-01 : f32
    %484 = vector.broadcast %cst_79 : f32 to vector<16x16xf32>
    %485 = arith.mulf %484, %481 : vector<16x16xf32>
    %486 = arith.select %483, %481, %485 : vector<16x16xi1>, vector<16x16xf32>
    %c13_80 = arith.constant 13 : index
    %487 = memref.load %arg8[%c13_80] : memref<16xf32, #tpu.memory_space<smem>>
    %488 = vector.broadcast %487 : f32 to vector<16x16xf32>
    %489 = arith.mulf %486, %488 : vector<16x16xf32>
    %490 = arith.addf %458, %489 : vector<16x16xf32>
    %491 = vector.extract_strided_slice %4 {offsets = [0, 0, 0], sizes = [1, 16, 16], strides = [1, 1, 1]} : vector<3x16x16xf32> to vector<1x16x16xf32>
    %492 = vector.shape_cast %491 : vector<1x16x16xf32> to vector<16x16xf32>
    %c30 = arith.constant 30 : index
    %493 = memref.load %arg7[%c30] : memref<48xf32, #tpu.memory_space<smem>>
    %494 = vector.broadcast %493 : f32 to vector<16x16xf32>
    %495 = arith.mulf %492, %494 : vector<16x16xf32>
    %496 = vector.extract_strided_slice %4 {offsets = [1, 0, 0], sizes = [1, 16, 16], strides = [1, 1, 1]} : vector<3x16x16xf32> to vector<1x16x16xf32>
    %497 = vector.shape_cast %496 : vector<1x16x16xf32> to vector<16x16xf32>
    %c38 = arith.constant 38 : index
    %498 = memref.load %arg7[%c38] : memref<48xf32, #tpu.memory_space<smem>>
    %499 = vector.broadcast %498 : f32 to vector<16x16xf32>
    %500 = arith.mulf %497, %499 : vector<16x16xf32>
    %501 = arith.addf %495, %500 : vector<16x16xf32>
    %502 = vector.extract_strided_slice %4 {offsets = [2, 0, 0], sizes = [1, 16, 16], strides = [1, 1, 1]} : vector<3x16x16xf32> to vector<1x16x16xf32>
    %503 = vector.shape_cast %502 : vector<1x16x16xf32> to vector<16x16xf32>
    %c46 = arith.constant 46 : index
    %504 = memref.load %arg7[%c46] : memref<48xf32, #tpu.memory_space<smem>>
    %505 = vector.broadcast %504 : f32 to vector<16x16xf32>
    %506 = arith.mulf %503, %505 : vector<16x16xf32>
    %507 = arith.addf %501, %506 : vector<16x16xf32>
    %508 = vector.extract_strided_slice %297 {offsets = [0, 6], sizes = [16, 1], strides = [1, 1]} : vector<16x8xf32> to vector<16x1xf32>
    %509 = vector.extract_strided_slice %299 {offsets = [6, 0], sizes = [1, 16], strides = [1, 1]} : vector<8x16xf32> to vector<1x16xf32>
    %510 = vector.broadcast %508 : vector<16x1xf32> to vector<16x16xf32>
    %511 = vector.broadcast %509 : vector<1x16xf32> to vector<16x16xf32>
    %512 = arith.addf %510, %511 : vector<16x16xf32>
    %513 = arith.addf %512, %507 : vector<16x16xf32>
    %cst_81 = arith.constant 0.000000e+00 : f32
    %514 = vector.broadcast %cst_81 : f32 to vector<16x16xf32>
    %515 = arith.cmpf ogt, %513, %514 : vector<16x16xf32>
    %cst_82 = arith.constant 2.000000e-01 : f32
    %516 = vector.broadcast %cst_82 : f32 to vector<16x16xf32>
    %517 = arith.mulf %516, %513 : vector<16x16xf32>
    %518 = arith.select %515, %513, %517 : vector<16x16xi1>, vector<16x16xf32>
    %c14_83 = arith.constant 14 : index
    %519 = memref.load %arg8[%c14_83] : memref<16xf32, #tpu.memory_space<smem>>
    %520 = vector.broadcast %519 : f32 to vector<16x16xf32>
    %521 = arith.mulf %518, %520 : vector<16x16xf32>
    %522 = arith.addf %490, %521 : vector<16x16xf32>
    %523 = vector.extract_strided_slice %4 {offsets = [0, 0, 0], sizes = [1, 16, 16], strides = [1, 1, 1]} : vector<3x16x16xf32> to vector<1x16x16xf32>
    %524 = vector.shape_cast %523 : vector<1x16x16xf32> to vector<16x16xf32>
    %c31 = arith.constant 31 : index
    %525 = memref.load %arg7[%c31] : memref<48xf32, #tpu.memory_space<smem>>
    %526 = vector.broadcast %525 : f32 to vector<16x16xf32>
    %527 = arith.mulf %524, %526 : vector<16x16xf32>
    %528 = vector.extract_strided_slice %4 {offsets = [1, 0, 0], sizes = [1, 16, 16], strides = [1, 1, 1]} : vector<3x16x16xf32> to vector<1x16x16xf32>
    %529 = vector.shape_cast %528 : vector<1x16x16xf32> to vector<16x16xf32>
    %c39 = arith.constant 39 : index
    %530 = memref.load %arg7[%c39] : memref<48xf32, #tpu.memory_space<smem>>
    %531 = vector.broadcast %530 : f32 to vector<16x16xf32>
    %532 = arith.mulf %529, %531 : vector<16x16xf32>
    %533 = arith.addf %527, %532 : vector<16x16xf32>
    %534 = vector.extract_strided_slice %4 {offsets = [2, 0, 0], sizes = [1, 16, 16], strides = [1, 1, 1]} : vector<3x16x16xf32> to vector<1x16x16xf32>
    %535 = vector.shape_cast %534 : vector<1x16x16xf32> to vector<16x16xf32>
    %c47 = arith.constant 47 : index
    %536 = memref.load %arg7[%c47] : memref<48xf32, #tpu.memory_space<smem>>
    %537 = vector.broadcast %536 : f32 to vector<16x16xf32>
    %538 = arith.mulf %535, %537 : vector<16x16xf32>
    %539 = arith.addf %533, %538 : vector<16x16xf32>
    %540 = vector.extract_strided_slice %297 {offsets = [0, 7], sizes = [16, 1], strides = [1, 1]} : vector<16x8xf32> to vector<16x1xf32>
    %541 = vector.extract_strided_slice %299 {offsets = [7, 0], sizes = [1, 16], strides = [1, 1]} : vector<8x16xf32> to vector<1x16xf32>
    %542 = vector.broadcast %540 : vector<16x1xf32> to vector<16x16xf32>
    %543 = vector.broadcast %541 : vector<1x16xf32> to vector<16x16xf32>
    %544 = arith.addf %542, %543 : vector<16x16xf32>
    %545 = arith.addf %544, %539 : vector<16x16xf32>
    %cst_84 = arith.constant 0.000000e+00 : f32
    %546 = vector.broadcast %cst_84 : f32 to vector<16x16xf32>
    %547 = arith.cmpf ogt, %545, %546 : vector<16x16xf32>
    %cst_85 = arith.constant 2.000000e-01 : f32
    %548 = vector.broadcast %cst_85 : f32 to vector<16x16xf32>
    %549 = arith.mulf %548, %545 : vector<16x16xf32>
    %550 = arith.select %547, %545, %549 : vector<16x16xi1>, vector<16x16xf32>
    %c15_86 = arith.constant 15 : index
    %551 = memref.load %arg8[%c15_86] : memref<16xf32, #tpu.memory_space<smem>>
    %552 = vector.broadcast %551 : f32 to vector<16x16xf32>
    %553 = arith.mulf %550, %552 : vector<16x16xf32>
    %554 = arith.addf %522, %553 : vector<16x16xf32>
    %cst_87 = arith.constant -1.000000e+30 : f32
    %555 = vector.broadcast %cst_87 : f32 to vector<16x16xf32>
    %556 = arith.select %8, %554, %555 : vector<16x16xi1>, vector<16x16xf32>
    %c0_88 = arith.constant 0 : index
    %c1_89 = arith.constant 1 : index
    %557 = vector.load %arg11[%c0_88, %c1_89] : memref<16x2xf32, #tpu.memory_space<vmem>>, vector<16x1xf32>
    %cst_90 = arith.constant dense<0xFF800000> : vector<16xf32>
    %558 = vector.multi_reduction <maximumf>, %556, %cst_90 [1] : vector<16x16xf32> to vector<16xf32>
    %559 = vector.shape_cast %558 : vector<16xf32> to vector<16x1xf32>
    %560 = arith.maximumf %557, %559 : vector<16x1xf32>
    %561 = arith.subf %557, %560 : vector<16x1xf32>
    %562 = math.exp %561 : vector<16x1xf32>
    %563 = vector.broadcast %560 : vector<16x1xf32> to vector<16x16xf32>
    %564 = arith.subf %556, %563 : vector<16x16xf32>
    %565 = math.exp %564 : vector<16x16xf32>
    %cst_91 = arith.constant 0.000000e+00 : f32
    %566 = vector.broadcast %cst_91 : f32 to vector<16x16xf32>
    %567 = arith.select %8, %565, %566 : vector<16x16xi1>, vector<16x16xf32>
    %c0_92 = arith.constant 0 : index
    %c1_93 = arith.constant 1 : index
    %568 = vector.load %arg12[%c0_92, %c1_93] : memref<16x2xf32, #tpu.memory_space<vmem>>, vector<16x1xf32>
    %569 = arith.mulf %562, %568 : vector<16x1xf32>
    %cst_94 = arith.constant dense<0.000000e+00> : vector<16xf32>
    %570 = vector.multi_reduction <add>, %567, %cst_94 [1] : vector<16x16xf32> to vector<16xf32>
    %571 = vector.shape_cast %570 : vector<16xf32> to vector<16x1xf32>
    %572 = arith.addf %569, %571 : vector<16x1xf32>
    %c0_95 = arith.constant 0 : index
    %c1_96 = arith.constant 1 : index
    %573 = vector.load %arg12[%c0_95, %c1_96] : memref<16x2xf32, #tpu.memory_space<vmem>>, vector<16x1xf32>
    tpu.vector_store %arg12[%c0_95, %c1_96], %572 {strides = array<i32>} : memref<16x2xf32, #tpu.memory_space<vmem>>, vector<16x1xf32>,
    %c0_97 = arith.constant 0 : index
    %c8_98 = arith.constant 8 : index
    %574 = vector.load %arg13[%c0_97, %c8_98] : memref<16x16xf32, #tpu.memory_space<vmem>>, vector<16x8xf32>
    %575 = vector.broadcast %562 : vector<16x1xf32> to vector<16x8xf32>
    %576 = arith.mulf %575, %574 : vector<16x8xf32>
    %c1_99 = arith.constant 1 : index
    %c0_100 = arith.constant 0 : index
    %c0_101 = arith.constant 0 : index
    %577 = vector.load %arg4[%c1_99, %c0_100, %c0_101] : memref<2x16x8xf32, #tpu.memory_space<vmem>>, vector<1x16x8xf32>
    %578 = vector.shape_cast %577 : vector<1x16x8xf32> to vector<16x8xf32>
    %cst_102 = arith.constant dense<0.000000e+00> : vector<16x8xf32>
    %579 = tpu.matmul %567, %578, %cst_102 {dimension_numbers = #tpu.dot_dimension_numbers<[1], [0], [0], [1], [0, 0, 1, 1], [], []>} : vector<16x16xf32>, vector<16x8xf32>, vector<16x8xf32> -> vector<16x8xf32>
    %580 = arith.addf %576, %579 : vector<16x8xf32>
    %c0_103 = arith.constant 0 : index
    %c8_104 = arith.constant 8 : index
    %581 = vector.load %arg13[%c0_103, %c8_104] : memref<16x16xf32, #tpu.memory_space<vmem>>, vector<16x8xf32>
    tpu.vector_store %arg13[%c0_103, %c8_104], %580 {strides = array<i32>} : memref<16x16xf32, #tpu.memory_space<vmem>>, vector<16x8xf32>,
    %c0_105 = arith.constant 0 : index
    %c1_106 = arith.constant 1 : index
    %582 = vector.load %arg11[%c0_105, %c1_106] : memref<16x2xf32, #tpu.memory_space<vmem>>, vector<16x1xf32>
    tpu.vector_store %arg11[%c0_105, %c1_106], %560 {strides = array<i32>} : memref<16x2xf32, #tpu.memory_space<vmem>>, vector<16x1xf32>,
    %c0_i32_107 = arith.constant 0 : i32
    %583 = arith.cmpi eq, %arg1, %c0_i32_107 : i32
    %584 = arith.extui %583 : i1 to i32
    %c0_i32_108 = arith.constant 0 : i32
    %585 = arith.cmpi ne, %584, %c0_i32_108 : i32
    scf.if %585 {
      %c0_109 = arith.constant 0 : index
      %c0_110 = arith.constant 0 : index
      %586 = vector.load %arg12[%c0_109, %c0_110] : memref<16x2xf32, #tpu.memory_space<vmem>>, vector<16x1xf32>
      %cst_111 = arith.constant 1.000000e-30 : f32
      %587 = vector.broadcast %cst_111 : f32 to vector<16x1xf32>
      %588 = arith.maximumf %586, %587 : vector<16x1xf32>
      %589 = tpu.reciprocal %588 : vector<16x1xf32> -> vector<16x1xf32>
      %c0_112 = arith.constant 0 : index
      %c0_113 = arith.constant 0 : index
      %590 = vector.load %arg13[%c0_112, %c0_113] : memref<16x16xf32, #tpu.memory_space<vmem>>, vector<16x8xf32>
      %591 = vector.broadcast %589 : vector<16x1xf32> to vector<16x8xf32>
      %592 = arith.mulf %590, %591 : vector<16x8xf32>
      %c0_114 = arith.constant 0 : index
      %c0_115 = arith.constant 0 : index
      %593 = vector.load %arg9[%c0_114, %c0_115] : memref<2x8xf32, #tpu.memory_space<vmem>>, vector<1x8xf32>
      %594 = vector.broadcast %593 : vector<1x8xf32> to vector<16x8xf32>
      %595 = arith.addf %592, %594 : vector<16x8xf32>
      %cst_116 = arith.constant 0.000000e+00 : f32
      %596 = vector.broadcast %cst_116 : f32 to vector<16x8xf32>
      %597 = arith.cmpf ogt, %595, %596 : vector<16x8xf32>
      %cst_117 = arith.constant 0.000000e+00 : f32
      %598 = vector.broadcast %cst_117 : f32 to vector<16x8xf32>
      %599 = arith.minimumf %595, %598 : vector<16x8xf32>
      %600 = math.exp %599 : vector<16x8xf32>
      %cst_118 = arith.constant 1.000000e+00 : f32
      %601 = vector.broadcast %cst_118 : f32 to vector<16x8xf32>
      %602 = arith.subf %600, %601 : vector<16x8xf32>
      %603 = arith.select %597, %595, %602 : vector<16x8xi1>, vector<16x8xf32>
      %c0_119 = arith.constant 0 : index
      %c0_120 = arith.constant 0 : index
      %604 = vector.load %arg10[%c0_119, %c0_120] : memref<16x16xf32, #tpu.memory_space<vmem>>, vector<16x8xf32>
      tpu.vector_store %arg10[%c0_119, %c0_120], %603 {strides = array<i32>} : memref<16x16xf32, #tpu.memory_space<vmem>>, vector<16x8xf32>,
      %c0_121 = arith.constant 0 : index
      %c1_122 = arith.constant 1 : index
      %605 = vector.load %arg12[%c0_121, %c1_122] : memref<16x2xf32, #tpu.memory_space<vmem>>, vector<16x1xf32>
      %cst_123 = arith.constant 1.000000e-30 : f32
      %606 = vector.broadcast %cst_123 : f32 to vector<16x1xf32>
      %607 = arith.maximumf %605, %606 : vector<16x1xf32>
      %608 = tpu.reciprocal %607 : vector<16x1xf32> -> vector<16x1xf32>
      %c0_124 = arith.constant 0 : index
      %c8_125 = arith.constant 8 : index
      %609 = vector.load %arg13[%c0_124, %c8_125] : memref<16x16xf32, #tpu.memory_space<vmem>>, vector<16x8xf32>
      %610 = vector.broadcast %608 : vector<16x1xf32> to vector<16x8xf32>
      %611 = arith.mulf %609, %610 : vector<16x8xf32>
      %c1_126 = arith.constant 1 : index
      %c0_127 = arith.constant 0 : index
      %612 = vector.load %arg9[%c1_126, %c0_127] : memref<2x8xf32, #tpu.memory_space<vmem>>, vector<1x8xf32>
      %613 = vector.broadcast %612 : vector<1x8xf32> to vector<16x8xf32>
      %614 = arith.addf %611, %613 : vector<16x8xf32>
      %cst_128 = arith.constant 0.000000e+00 : f32
      %615 = vector.broadcast %cst_128 : f32 to vector<16x8xf32>
      %616 = arith.cmpf ogt, %614, %615 : vector<16x8xf32>
      %cst_129 = arith.constant 0.000000e+00 : f32
      %617 = vector.broadcast %cst_129 : f32 to vector<16x8xf32>
      %618 = arith.minimumf %614, %617 : vector<16x8xf32>
      %619 = math.exp %618 : vector<16x8xf32>
      %cst_130 = arith.constant 1.000000e+00 : f32
      %620 = vector.broadcast %cst_130 : f32 to vector<16x8xf32>
      %621 = arith.subf %619, %620 : vector<16x8xf32>
      %622 = arith.select %616, %614, %621 : vector<16x8xi1>, vector<16x8xf32>
      %c0_131 = arith.constant 0 : index
      %c8_132 = arith.constant 8 : index
      %623 = vector.load %arg10[%c0_131, %c8_132] : memref<16x16xf32, #tpu.memory_space<vmem>>, vector<16x8xf32>
      tpu.vector_store %arg10[%c0_131, %c8_132], %622 {strides = array<i32>} : memref<16x16xf32, #tpu.memory_space<vmem>>, vector<16x8xf32>,
    } else {
    }
    return
  }
  func.func @transform_0(%arg0: i32, %arg1: i32) -> (i32, i32, i32) {
    %c0_i32 = arith.constant 0 : i32
    %c0_i32_0 = arith.constant 0 : i32
    %c0_i32_1 = arith.constant 0 : i32
    return %c0_i32, %arg0, %c0_i32_0 : i32, i32, i32
  }
  func.func @transform_1(%arg0: i32, %arg1: i32) -> (i32, i32, i32) {
    %c0_i32 = arith.constant 0 : i32
    %c0_i32_0 = arith.constant 0 : i32
    %c0_i32_1 = arith.constant 0 : i32
    return %c0_i32, %c0_i32_0, %arg1 : i32, i32, i32
  }
  func.func @transform_2(%arg0: i32, %arg1: i32) -> (i32, i32, i32) {
    %c0_i32 = arith.constant 0 : i32
    %c0_i32_0 = arith.constant 0 : i32
    %c0_i32_1 = arith.constant 0 : i32
    return %c0_i32, %arg1, %c0_i32_0 : i32, i32, i32
  }
  func.func @transform_3(%arg0: i32, %arg1: i32) -> (i32, i32, i32) {
    %c0_i32 = arith.constant 0 : i32
    %c0_i32_0 = arith.constant 0 : i32
    return %c0_i32, %arg0, %arg1 : i32, i32, i32
  }
  func.func @transform_4(%arg0: i32, %arg1: i32) -> (i32, i32) {
    %c0_i32 = arith.constant 0 : i32
    return %arg0, %arg1 : i32, i32
  }
  func.func @transform_5(%arg0: i32, %arg1: i32) -> i32 {
    %c0_i32 = arith.constant 0 : i32
    %c0_i32_0 = arith.constant 0 : i32
    return %c0_i32 : i32
  }
  func.func @transform_6(%arg0: i32, %arg1: i32) -> i32 {
    %c0_i32 = arith.constant 0 : i32
    %c0_i32_0 = arith.constant 0 : i32
    return %c0_i32 : i32
  }
  func.func @transform_7(%arg0: i32, %arg1: i32) -> (i32, i32) {
    %c0_i32 = arith.constant 0 : i32
    %c0_i32_0 = arith.constant 0 : i32
    %c0_i32_1 = arith.constant 0 : i32
    return %c0_i32, %c0_i32_0 : i32, i32
  }
  func.func @transform_8(%arg0: i32, %arg1: i32) -> (i32, i32) {
    %c0_i32 = arith.constant 0 : i32
    %c0_i32_0 = arith.constant 0 : i32
    return %arg0, %c0_i32 : i32, i32
  }
}

module attributes {stable_mosaic.version = 11 : i64} {
  func.func @_linear_kernel(%arg0: i32, %arg1: memref<16x16xf32, #tpu.memory_space<vmem>>, %arg2: memref<16x16xf32, #tpu.memory_space<vmem>>, %arg3: memref<1x16xf32, #tpu.memory_space<vmem>>, %arg4: memref<16x16xf32, #tpu.memory_space<vmem>>) attributes {dimension_semantics = [#tpu.dimension_semantics<parallel>], iteration_bounds = array<i64: 1>, scalar_prefetch = 0 : i64, scratch_operands = 0 : i64, tpu.core_type = #tpu.core_type<tc>, window_params = [{transform_indices = @transform_0, window_bounds = array<i64: 16, 16>}, {pipeline_mode = #tpu.pipeline_mode<synchronous>, transform_indices = @transform_1, window_bounds = array<i64: 16, 16>}, {pipeline_mode = #tpu.pipeline_mode<synchronous>, transform_indices = @transform_2, window_bounds = array<i64: 1, 16>}, {transform_indices = @transform_3, window_bounds = array<i64: 16, 16>}]} {
    %c0 = arith.constant 0 : index
    %c0_0 = arith.constant 0 : index
    %0 = vector.load %arg1[%c0, %c0_0] : memref<16x16xf32, #tpu.memory_space<vmem>>, vector<16x16xf32>
    %c0_1 = arith.constant 0 : index
    %c0_2 = arith.constant 0 : index
    %1 = vector.load %arg2[%c0_1, %c0_2] : memref<16x16xf32, #tpu.memory_space<vmem>>, vector<16x16xf32>
    %cst = arith.constant dense<0.000000e+00> : vector<16x16xf32>
    %2 = tpu.matmul %0, %1, %cst {dimension_numbers = #tpu.dot_dimension_numbers<[1], [0], [0], [1], [0, 0, 1, 1], [], []>} : vector<16x16xf32>, vector<16x16xf32>, vector<16x16xf32> -> vector<16x16xf32>
    %c0_3 = arith.constant 0 : index
    %c0_4 = arith.constant 0 : index
    %3 = vector.load %arg3[%c0_3, %c0_4] : memref<1x16xf32, #tpu.memory_space<vmem>>, vector<1x16xf32>
    %4 = vector.broadcast %3 : vector<1x16xf32> to vector<16x16xf32>
    %5 = arith.addf %2, %4 : vector<16x16xf32>
    %c0_5 = arith.constant 0 : index
    %c0_6 = arith.constant 0 : index
    %6 = vector.load %arg4[%c0_5, %c0_6] : memref<16x16xf32, #tpu.memory_space<vmem>>, vector<16x16xf32>
    tpu.vector_store %arg4[%c0_5, %c0_6], %5 {strides = array<i32>} : memref<16x16xf32, #tpu.memory_space<vmem>>, vector<16x16xf32>,
    return
  }
  func.func @transform_0(%arg0: i32) -> (i32, i32) {
    %c0_i32 = arith.constant 0 : i32
    %c0_i32_0 = arith.constant 0 : i32
    return %arg0, %c0_i32 : i32, i32
  }
  func.func @transform_1(%arg0: i32) -> (i32, i32) {
    %c0_i32 = arith.constant 0 : i32
    %c0_i32_0 = arith.constant 0 : i32
    %c0_i32_1 = arith.constant 0 : i32
    return %c0_i32, %c0_i32_0 : i32, i32
  }
  func.func @transform_2(%arg0: i32) -> (i32, i32) {
    %c0_i32 = arith.constant 0 : i32
    %c0_i32_0 = arith.constant 0 : i32
    %c0_i32_1 = arith.constant 0 : i32
    return %c0_i32, %c0_i32_0 : i32, i32
  }
  func.func @transform_3(%arg0: i32) -> (i32, i32) {
    %c0_i32 = arith.constant 0 : i32
    %c0_i32_0 = arith.constant 0 : i32
    return %arg0, %c0_i32 : i32, i32
  }
}

module attributes {stable_mosaic.version = 11 : i64} {
  func.func @_gatv2_attn_kernel(%arg0: i32, %arg1: i32, %arg2: memref<1x16x8xf32, #tpu.memory_space<vmem>>, %arg3: memref<1x8x16xf32, #tpu.memory_space<vmem>>, %arg4: memref<1x16x8xf32, #tpu.memory_space<vmem>>, %arg5: memref<3x16x16xbf16, #tpu.memory_space<vmem>>, %arg6: memref<16x16xbf16, #tpu.memory_space<vmem>>, %arg7: memref<24xf32, #tpu.memory_space<smem>>, %arg8: memref<8xf32, #tpu.memory_space<smem>>, %arg9: memref<1x8xf32, #tpu.memory_space<vmem>>, %arg10: memref<8x3xf32, #tpu.memory_space<vmem>>, %arg11: memref<1x3xf32, #tpu.memory_space<vmem>>, %arg12: memref<16x3xf32, #tpu.memory_space<vmem>>, %arg13: memref<16x1xf32, #tpu.memory_space<vmem>>, %arg14: memref<16x1xf32, #tpu.memory_space<vmem>>, %arg15: memref<16x8xf32, #tpu.memory_space<vmem>>) attributes {dimension_semantics = [#tpu.dimension_semantics<parallel>, #tpu.dimension_semantics<arbitrary>], iteration_bounds = array<i64: 1, 1>, scalar_prefetch = 0 : i64, scratch_operands = 3 : i64, tpu.core_type = #tpu.core_type<tc>, window_params = [{transform_indices = @transform_0, window_bounds = array<i64: 1, 16, 8>}, {transform_indices = @transform_1, window_bounds = array<i64: 1, 8, 16>}, {transform_indices = @transform_2, window_bounds = array<i64: 1, 16, 8>}, {transform_indices = @transform_3, window_bounds = array<i64: 3, 16, 16>}, {transform_indices = @transform_4, window_bounds = array<i64: 16, 16>}, {transform_indices = @transform_5, window_bounds = array<i64: 24>}, {transform_indices = @transform_6, window_bounds = array<i64: 8>}, {pipeline_mode = #tpu.pipeline_mode<synchronous>, transform_indices = @transform_7, window_bounds = array<i64: 1, 8>}, {pipeline_mode = #tpu.pipeline_mode<synchronous>, transform_indices = @transform_8, window_bounds = array<i64: 8, 3>}, {pipeline_mode = #tpu.pipeline_mode<synchronous>, transform_indices = @transform_9, window_bounds = array<i64: 1, 3>}, {transform_indices = @transform_10, window_bounds = array<i64: 16, 3>}]} {
    %c0_i32 = arith.constant 0 : i32
    %0 = arith.cmpi eq, %arg1, %c0_i32 : i32
    %1 = arith.extui %0 : i1 to i32
    %cst = arith.constant -1.000000e+30 : f32
    %c0_i32_0 = arith.constant 0 : i32
    %2 = arith.cmpi ne, %1, %c0_i32_0 : i32
    scf.if %2 {
      %299 = vector.broadcast %cst : f32 to vector<16x1xf32>
      %c0_59 = arith.constant 0 : index
      %c0_60 = arith.constant 0 : index
      %300 = vector.load %arg13[%c0_59, %c0_60] : memref<16x1xf32, #tpu.memory_space<vmem>>, vector<16x1xf32>
      tpu.vector_store %arg13[%c0_59, %c0_60], %299 {strides = array<i32>} : memref<16x1xf32, #tpu.memory_space<vmem>>, vector<16x1xf32>,
      %cst_61 = arith.constant 0.000000e+00 : f32
      %301 = vector.broadcast %cst_61 : f32 to vector<16x1xf32>
      %c0_62 = arith.constant 0 : index
      %c0_63 = arith.constant 0 : index
      %302 = vector.load %arg14[%c0_62, %c0_63] : memref<16x1xf32, #tpu.memory_space<vmem>>, vector<16x1xf32>
      tpu.vector_store %arg14[%c0_62, %c0_63], %301 {strides = array<i32>} : memref<16x1xf32, #tpu.memory_space<vmem>>, vector<16x1xf32>,
      %cst_64 = arith.constant 0.000000e+00 : f32
      %303 = vector.broadcast %cst_64 : f32 to vector<16x8xf32>
      %c0_65 = arith.constant 0 : index
      %c0_66 = arith.constant 0 : index
      %304 = vector.load %arg15[%c0_65, %c0_66] : memref<16x8xf32, #tpu.memory_space<vmem>>, vector<16x8xf32>
      tpu.vector_store %arg15[%c0_65, %c0_66], %303 {strides = array<i32>} : memref<16x8xf32, #tpu.memory_space<vmem>>, vector<16x8xf32>,
    } else {
    }
    %c0 = arith.constant 0 : index
    %c0_1 = arith.constant 0 : index
    %c0_2 = arith.constant 0 : index
    %3 = vector.load %arg5[%c0, %c0_1, %c0_2] : memref<3x16x16xbf16, #tpu.memory_space<vmem>>, vector<3x16x16xbf16>
    %4 = arith.extf %3 : vector<3x16x16xbf16> to vector<3x16x16xf32>
    %c0_3 = arith.constant 0 : index
    %c0_4 = arith.constant 0 : index
    %5 = vector.load %arg6[%c0_3, %c0_4] : memref<16x16xbf16, #tpu.memory_space<vmem>>, vector<16x16xbf16>
    %6 = arith.extf %5 : vector<16x16xbf16> to vector<16x16xf32>
    %cst_5 = arith.constant 0.000000e+00 : f32
    %7 = vector.broadcast %cst_5 : f32 to vector<16x16xf32>
    %8 = arith.cmpf ogt, %6, %7 : vector<16x16xf32>
    %c0_6 = arith.constant 0 : index
    %c0_7 = arith.constant 0 : index
    %c0_8 = arith.constant 0 : index
    %9 = vector.load %arg2[%c0_6, %c0_7, %c0_8] : memref<1x16x8xf32, #tpu.memory_space<vmem>>, vector<1x16x8xf32>
    %10 = vector.shape_cast %9 : vector<1x16x8xf32> to vector<16x8xf32>
    %c0_9 = arith.constant 0 : index
    %c0_10 = arith.constant 0 : index
    %c0_11 = arith.constant 0 : index
    %11 = vector.load %arg3[%c0_9, %c0_10, %c0_11] : memref<1x8x16xf32, #tpu.memory_space<vmem>>, vector<1x8x16xf32>
    %12 = vector.shape_cast %11 : vector<1x8x16xf32> to vector<8x16xf32>
    %13 = vector.extract_strided_slice %4 {offsets = [0, 0, 0], sizes = [1, 16, 16], strides = [1, 1, 1]} : vector<3x16x16xf32> to vector<1x16x16xf32>
    %14 = vector.shape_cast %13 : vector<1x16x16xf32> to vector<16x16xf32>
    %c0_12 = arith.constant 0 : index
    %15 = memref.load %arg7[%c0_12] : memref<24xf32, #tpu.memory_space<smem>>
    %16 = vector.broadcast %15 : f32 to vector<16x16xf32>
    %17 = arith.mulf %14, %16 : vector<16x16xf32>
    %18 = vector.extract_strided_slice %4 {offsets = [1, 0, 0], sizes = [1, 16, 16], strides = [1, 1, 1]} : vector<3x16x16xf32> to vector<1x16x16xf32>
    %19 = vector.shape_cast %18 : vector<1x16x16xf32> to vector<16x16xf32>
    %c8 = arith.constant 8 : index
    %20 = memref.load %arg7[%c8] : memref<24xf32, #tpu.memory_space<smem>>
    %21 = vector.broadcast %20 : f32 to vector<16x16xf32>
    %22 = arith.mulf %19, %21 : vector<16x16xf32>
    %23 = arith.addf %17, %22 : vector<16x16xf32>
    %24 = vector.extract_strided_slice %4 {offsets = [2, 0, 0], sizes = [1, 16, 16], strides = [1, 1, 1]} : vector<3x16x16xf32> to vector<1x16x16xf32>
    %25 = vector.shape_cast %24 : vector<1x16x16xf32> to vector<16x16xf32>
    %c16 = arith.constant 16 : index
    %26 = memref.load %arg7[%c16] : memref<24xf32, #tpu.memory_space<smem>>
    %27 = vector.broadcast %26 : f32 to vector<16x16xf32>
    %28 = arith.mulf %25, %27 : vector<16x16xf32>
    %29 = arith.addf %23, %28 : vector<16x16xf32>
    %30 = vector.extract_strided_slice %10 {offsets = [0, 0], sizes = [16, 1], strides = [1, 1]} : vector<16x8xf32> to vector<16x1xf32>
    %31 = vector.extract_strided_slice %12 {offsets = [0, 0], sizes = [1, 16], strides = [1, 1]} : vector<8x16xf32> to vector<1x16xf32>
    %32 = vector.broadcast %30 : vector<16x1xf32> to vector<16x16xf32>
    %33 = vector.broadcast %31 : vector<1x16xf32> to vector<16x16xf32>
    %34 = arith.addf %32, %33 : vector<16x16xf32>
    %35 = arith.addf %34, %29 : vector<16x16xf32>
    %cst_13 = arith.constant 0.000000e+00 : f32
    %36 = vector.broadcast %cst_13 : f32 to vector<16x16xf32>
    %37 = arith.cmpf ogt, %35, %36 : vector<16x16xf32>
    %cst_14 = arith.constant 2.000000e-01 : f32
    %38 = vector.broadcast %cst_14 : f32 to vector<16x16xf32>
    %39 = arith.mulf %38, %35 : vector<16x16xf32>
    %40 = arith.select %37, %35, %39 : vector<16x16xi1>, vector<16x16xf32>
    %c0_15 = arith.constant 0 : index
    %41 = memref.load %arg8[%c0_15] : memref<8xf32, #tpu.memory_space<smem>>
    %42 = vector.broadcast %41 : f32 to vector<16x16xf32>
    %43 = arith.mulf %40, %42 : vector<16x16xf32>
    %44 = vector.extract_strided_slice %4 {offsets = [0, 0, 0], sizes = [1, 16, 16], strides = [1, 1, 1]} : vector<3x16x16xf32> to vector<1x16x16xf32>
    %45 = vector.shape_cast %44 : vector<1x16x16xf32> to vector<16x16xf32>
    %c1 = arith.constant 1 : index
    %46 = memref.load %arg7[%c1] : memref<24xf32, #tpu.memory_space<smem>>
    %47 = vector.broadcast %46 : f32 to vector<16x16xf32>
    %48 = arith.mulf %45, %47 : vector<16x16xf32>
    %49 = vector.extract_strided_slice %4 {offsets = [1, 0, 0], sizes = [1, 16, 16], strides = [1, 1, 1]} : vector<3x16x16xf32> to vector<1x16x16xf32>
    %50 = vector.shape_cast %49 : vector<1x16x16xf32> to vector<16x16xf32>
    %c9 = arith.constant 9 : index
    %51 = memref.load %arg7[%c9] : memref<24xf32, #tpu.memory_space<smem>>
    %52 = vector.broadcast %51 : f32 to vector<16x16xf32>
    %53 = arith.mulf %50, %52 : vector<16x16xf32>
    %54 = arith.addf %48, %53 : vector<16x16xf32>
    %55 = vector.extract_strided_slice %4 {offsets = [2, 0, 0], sizes = [1, 16, 16], strides = [1, 1, 1]} : vector<3x16x16xf32> to vector<1x16x16xf32>
    %56 = vector.shape_cast %55 : vector<1x16x16xf32> to vector<16x16xf32>
    %c17 = arith.constant 17 : index
    %57 = memref.load %arg7[%c17] : memref<24xf32, #tpu.memory_space<smem>>
    %58 = vector.broadcast %57 : f32 to vector<16x16xf32>
    %59 = arith.mulf %56, %58 : vector<16x16xf32>
    %60 = arith.addf %54, %59 : vector<16x16xf32>
    %61 = vector.extract_strided_slice %10 {offsets = [0, 1], sizes = [16, 1], strides = [1, 1]} : vector<16x8xf32> to vector<16x1xf32>
    %62 = vector.extract_strided_slice %12 {offsets = [1, 0], sizes = [1, 16], strides = [1, 1]} : vector<8x16xf32> to vector<1x16xf32>
    %63 = vector.broadcast %61 : vector<16x1xf32> to vector<16x16xf32>
    %64 = vector.broadcast %62 : vector<1x16xf32> to vector<16x16xf32>
    %65 = arith.addf %63, %64 : vector<16x16xf32>
    %66 = arith.addf %65, %60 : vector<16x16xf32>
    %cst_16 = arith.constant 0.000000e+00 : f32
    %67 = vector.broadcast %cst_16 : f32 to vector<16x16xf32>
    %68 = arith.cmpf ogt, %66, %67 : vector<16x16xf32>
    %cst_17 = arith.constant 2.000000e-01 : f32
    %69 = vector.broadcast %cst_17 : f32 to vector<16x16xf32>
    %70 = arith.mulf %69, %66 : vector<16x16xf32>
    %71 = arith.select %68, %66, %70 : vector<16x16xi1>, vector<16x16xf32>
    %c1_18 = arith.constant 1 : index
    %72 = memref.load %arg8[%c1_18] : memref<8xf32, #tpu.memory_space<smem>>
    %73 = vector.broadcast %72 : f32 to vector<16x16xf32>
    %74 = arith.mulf %71, %73 : vector<16x16xf32>
    %75 = arith.addf %43, %74 : vector<16x16xf32>
    %76 = vector.extract_strided_slice %4 {offsets = [0, 0, 0], sizes = [1, 16, 16], strides = [1, 1, 1]} : vector<3x16x16xf32> to vector<1x16x16xf32>
    %77 = vector.shape_cast %76 : vector<1x16x16xf32> to vector<16x16xf32>
    %c2 = arith.constant 2 : index
    %78 = memref.load %arg7[%c2] : memref<24xf32, #tpu.memory_space<smem>>
    %79 = vector.broadcast %78 : f32 to vector<16x16xf32>
    %80 = arith.mulf %77, %79 : vector<16x16xf32>
    %81 = vector.extract_strided_slice %4 {offsets = [1, 0, 0], sizes = [1, 16, 16], strides = [1, 1, 1]} : vector<3x16x16xf32> to vector<1x16x16xf32>
    %82 = vector.shape_cast %81 : vector<1x16x16xf32> to vector<16x16xf32>
    %c10 = arith.constant 10 : index
    %83 = memref.load %arg7[%c10] : memref<24xf32, #tpu.memory_space<smem>>
    %84 = vector.broadcast %83 : f32 to vector<16x16xf32>
    %85 = arith.mulf %82, %84 : vector<16x16xf32>
    %86 = arith.addf %80, %85 : vector<16x16xf32>
    %87 = vector.extract_strided_slice %4 {offsets = [2, 0, 0], sizes = [1, 16, 16], strides = [1, 1, 1]} : vector<3x16x16xf32> to vector<1x16x16xf32>
    %88 = vector.shape_cast %87 : vector<1x16x16xf32> to vector<16x16xf32>
    %c18 = arith.constant 18 : index
    %89 = memref.load %arg7[%c18] : memref<24xf32, #tpu.memory_space<smem>>
    %90 = vector.broadcast %89 : f32 to vector<16x16xf32>
    %91 = arith.mulf %88, %90 : vector<16x16xf32>
    %92 = arith.addf %86, %91 : vector<16x16xf32>
    %93 = vector.extract_strided_slice %10 {offsets = [0, 2], sizes = [16, 1], strides = [1, 1]} : vector<16x8xf32> to vector<16x1xf32>
    %94 = vector.extract_strided_slice %12 {offsets = [2, 0], sizes = [1, 16], strides = [1, 1]} : vector<8x16xf32> to vector<1x16xf32>
    %95 = vector.broadcast %93 : vector<16x1xf32> to vector<16x16xf32>
    %96 = vector.broadcast %94 : vector<1x16xf32> to vector<16x16xf32>
    %97 = arith.addf %95, %96 : vector<16x16xf32>
    %98 = arith.addf %97, %92 : vector<16x16xf32>
    %cst_19 = arith.constant 0.000000e+00 : f32
    %99 = vector.broadcast %cst_19 : f32 to vector<16x16xf32>
    %100 = arith.cmpf ogt, %98, %99 : vector<16x16xf32>
    %cst_20 = arith.constant 2.000000e-01 : f32
    %101 = vector.broadcast %cst_20 : f32 to vector<16x16xf32>
    %102 = arith.mulf %101, %98 : vector<16x16xf32>
    %103 = arith.select %100, %98, %102 : vector<16x16xi1>, vector<16x16xf32>
    %c2_21 = arith.constant 2 : index
    %104 = memref.load %arg8[%c2_21] : memref<8xf32, #tpu.memory_space<smem>>
    %105 = vector.broadcast %104 : f32 to vector<16x16xf32>
    %106 = arith.mulf %103, %105 : vector<16x16xf32>
    %107 = arith.addf %75, %106 : vector<16x16xf32>
    %108 = vector.extract_strided_slice %4 {offsets = [0, 0, 0], sizes = [1, 16, 16], strides = [1, 1, 1]} : vector<3x16x16xf32> to vector<1x16x16xf32>
    %109 = vector.shape_cast %108 : vector<1x16x16xf32> to vector<16x16xf32>
    %c3 = arith.constant 3 : index
    %110 = memref.load %arg7[%c3] : memref<24xf32, #tpu.memory_space<smem>>
    %111 = vector.broadcast %110 : f32 to vector<16x16xf32>
    %112 = arith.mulf %109, %111 : vector<16x16xf32>
    %113 = vector.extract_strided_slice %4 {offsets = [1, 0, 0], sizes = [1, 16, 16], strides = [1, 1, 1]} : vector<3x16x16xf32> to vector<1x16x16xf32>
    %114 = vector.shape_cast %113 : vector<1x16x16xf32> to vector<16x16xf32>
    %c11 = arith.constant 11 : index
    %115 = memref.load %arg7[%c11] : memref<24xf32, #tpu.memory_space<smem>>
    %116 = vector.broadcast %115 : f32 to vector<16x16xf32>
    %117 = arith.mulf %114, %116 : vector<16x16xf32>
    %118 = arith.addf %112, %117 : vector<16x16xf32>
    %119 = vector.extract_strided_slice %4 {offsets = [2, 0, 0], sizes = [1, 16, 16], strides = [1, 1, 1]} : vector<3x16x16xf32> to vector<1x16x16xf32>
    %120 = vector.shape_cast %119 : vector<1x16x16xf32> to vector<16x16xf32>
    %c19 = arith.constant 19 : index
    %121 = memref.load %arg7[%c19] : memref<24xf32, #tpu.memory_space<smem>>
    %122 = vector.broadcast %121 : f32 to vector<16x16xf32>
    %123 = arith.mulf %120, %122 : vector<16x16xf32>
    %124 = arith.addf %118, %123 : vector<16x16xf32>
    %125 = vector.extract_strided_slice %10 {offsets = [0, 3], sizes = [16, 1], strides = [1, 1]} : vector<16x8xf32> to vector<16x1xf32>
    %126 = vector.extract_strided_slice %12 {offsets = [3, 0], sizes = [1, 16], strides = [1, 1]} : vector<8x16xf32> to vector<1x16xf32>
    %127 = vector.broadcast %125 : vector<16x1xf32> to vector<16x16xf32>
    %128 = vector.broadcast %126 : vector<1x16xf32> to vector<16x16xf32>
    %129 = arith.addf %127, %128 : vector<16x16xf32>
    %130 = arith.addf %129, %124 : vector<16x16xf32>
    %cst_22 = arith.constant 0.000000e+00 : f32
    %131 = vector.broadcast %cst_22 : f32 to vector<16x16xf32>
    %132 = arith.cmpf ogt, %130, %131 : vector<16x16xf32>
    %cst_23 = arith.constant 2.000000e-01 : f32
    %133 = vector.broadcast %cst_23 : f32 to vector<16x16xf32>
    %134 = arith.mulf %133, %130 : vector<16x16xf32>
    %135 = arith.select %132, %130, %134 : vector<16x16xi1>, vector<16x16xf32>
    %c3_24 = arith.constant 3 : index
    %136 = memref.load %arg8[%c3_24] : memref<8xf32, #tpu.memory_space<smem>>
    %137 = vector.broadcast %136 : f32 to vector<16x16xf32>
    %138 = arith.mulf %135, %137 : vector<16x16xf32>
    %139 = arith.addf %107, %138 : vector<16x16xf32>
    %140 = vector.extract_strided_slice %4 {offsets = [0, 0, 0], sizes = [1, 16, 16], strides = [1, 1, 1]} : vector<3x16x16xf32> to vector<1x16x16xf32>
    %141 = vector.shape_cast %140 : vector<1x16x16xf32> to vector<16x16xf32>
    %c4 = arith.constant 4 : index
    %142 = memref.load %arg7[%c4] : memref<24xf32, #tpu.memory_space<smem>>
    %143 = vector.broadcast %142 : f32 to vector<16x16xf32>
    %144 = arith.mulf %141, %143 : vector<16x16xf32>
    %145 = vector.extract_strided_slice %4 {offsets = [1, 0, 0], sizes = [1, 16, 16], strides = [1, 1, 1]} : vector<3x16x16xf32> to vector<1x16x16xf32>
    %146 = vector.shape_cast %145 : vector<1x16x16xf32> to vector<16x16xf32>
    %c12 = arith.constant 12 : index
    %147 = memref.load %arg7[%c12] : memref<24xf32, #tpu.memory_space<smem>>
    %148 = vector.broadcast %147 : f32 to vector<16x16xf32>
    %149 = arith.mulf %146, %148 : vector<16x16xf32>
    %150 = arith.addf %144, %149 : vector<16x16xf32>
    %151 = vector.extract_strided_slice %4 {offsets = [2, 0, 0], sizes = [1, 16, 16], strides = [1, 1, 1]} : vector<3x16x16xf32> to vector<1x16x16xf32>
    %152 = vector.shape_cast %151 : vector<1x16x16xf32> to vector<16x16xf32>
    %c20 = arith.constant 20 : index
    %153 = memref.load %arg7[%c20] : memref<24xf32, #tpu.memory_space<smem>>
    %154 = vector.broadcast %153 : f32 to vector<16x16xf32>
    %155 = arith.mulf %152, %154 : vector<16x16xf32>
    %156 = arith.addf %150, %155 : vector<16x16xf32>
    %157 = vector.extract_strided_slice %10 {offsets = [0, 4], sizes = [16, 1], strides = [1, 1]} : vector<16x8xf32> to vector<16x1xf32>
    %158 = vector.extract_strided_slice %12 {offsets = [4, 0], sizes = [1, 16], strides = [1, 1]} : vector<8x16xf32> to vector<1x16xf32>
    %159 = vector.broadcast %157 : vector<16x1xf32> to vector<16x16xf32>
    %160 = vector.broadcast %158 : vector<1x16xf32> to vector<16x16xf32>
    %161 = arith.addf %159, %160 : vector<16x16xf32>
    %162 = arith.addf %161, %156 : vector<16x16xf32>
    %cst_25 = arith.constant 0.000000e+00 : f32
    %163 = vector.broadcast %cst_25 : f32 to vector<16x16xf32>
    %164 = arith.cmpf ogt, %162, %163 : vector<16x16xf32>
    %cst_26 = arith.constant 2.000000e-01 : f32
    %165 = vector.broadcast %cst_26 : f32 to vector<16x16xf32>
    %166 = arith.mulf %165, %162 : vector<16x16xf32>
    %167 = arith.select %164, %162, %166 : vector<16x16xi1>, vector<16x16xf32>
    %c4_27 = arith.constant 4 : index
    %168 = memref.load %arg8[%c4_27] : memref<8xf32, #tpu.memory_space<smem>>
    %169 = vector.broadcast %168 : f32 to vector<16x16xf32>
    %170 = arith.mulf %167, %169 : vector<16x16xf32>
    %171 = arith.addf %139, %170 : vector<16x16xf32>
    %172 = vector.extract_strided_slice %4 {offsets = [0, 0, 0], sizes = [1, 16, 16], strides = [1, 1, 1]} : vector<3x16x16xf32> to vector<1x16x16xf32>
    %173 = vector.shape_cast %172 : vector<1x16x16xf32> to vector<16x16xf32>
    %c5 = arith.constant 5 : index
    %174 = memref.load %arg7[%c5] : memref<24xf32, #tpu.memory_space<smem>>
    %175 = vector.broadcast %174 : f32 to vector<16x16xf32>
    %176 = arith.mulf %173, %175 : vector<16x16xf32>
    %177 = vector.extract_strided_slice %4 {offsets = [1, 0, 0], sizes = [1, 16, 16], strides = [1, 1, 1]} : vector<3x16x16xf32> to vector<1x16x16xf32>
    %178 = vector.shape_cast %177 : vector<1x16x16xf32> to vector<16x16xf32>
    %c13 = arith.constant 13 : index
    %179 = memref.load %arg7[%c13] : memref<24xf32, #tpu.memory_space<smem>>
    %180 = vector.broadcast %179 : f32 to vector<16x16xf32>
    %181 = arith.mulf %178, %180 : vector<16x16xf32>
    %182 = arith.addf %176, %181 : vector<16x16xf32>
    %183 = vector.extract_strided_slice %4 {offsets = [2, 0, 0], sizes = [1, 16, 16], strides = [1, 1, 1]} : vector<3x16x16xf32> to vector<1x16x16xf32>
    %184 = vector.shape_cast %183 : vector<1x16x16xf32> to vector<16x16xf32>
    %c21 = arith.constant 21 : index
    %185 = memref.load %arg7[%c21] : memref<24xf32, #tpu.memory_space<smem>>
    %186 = vector.broadcast %185 : f32 to vector<16x16xf32>
    %187 = arith.mulf %184, %186 : vector<16x16xf32>
    %188 = arith.addf %182, %187 : vector<16x16xf32>
    %189 = vector.extract_strided_slice %10 {offsets = [0, 5], sizes = [16, 1], strides = [1, 1]} : vector<16x8xf32> to vector<16x1xf32>
    %190 = vector.extract_strided_slice %12 {offsets = [5, 0], sizes = [1, 16], strides = [1, 1]} : vector<8x16xf32> to vector<1x16xf32>
    %191 = vector.broadcast %189 : vector<16x1xf32> to vector<16x16xf32>
    %192 = vector.broadcast %190 : vector<1x16xf32> to vector<16x16xf32>
    %193 = arith.addf %191, %192 : vector<16x16xf32>
    %194 = arith.addf %193, %188 : vector<16x16xf32>
    %cst_28 = arith.constant 0.000000e+00 : f32
    %195 = vector.broadcast %cst_28 : f32 to vector<16x16xf32>
    %196 = arith.cmpf ogt, %194, %195 : vector<16x16xf32>
    %cst_29 = arith.constant 2.000000e-01 : f32
    %197 = vector.broadcast %cst_29 : f32 to vector<16x16xf32>
    %198 = arith.mulf %197, %194 : vector<16x16xf32>
    %199 = arith.select %196, %194, %198 : vector<16x16xi1>, vector<16x16xf32>
    %c5_30 = arith.constant 5 : index
    %200 = memref.load %arg8[%c5_30] : memref<8xf32, #tpu.memory_space<smem>>
    %201 = vector.broadcast %200 : f32 to vector<16x16xf32>
    %202 = arith.mulf %199, %201 : vector<16x16xf32>
    %203 = arith.addf %171, %202 : vector<16x16xf32>
    %204 = vector.extract_strided_slice %4 {offsets = [0, 0, 0], sizes = [1, 16, 16], strides = [1, 1, 1]} : vector<3x16x16xf32> to vector<1x16x16xf32>
    %205 = vector.shape_cast %204 : vector<1x16x16xf32> to vector<16x16xf32>
    %c6 = arith.constant 6 : index
    %206 = memref.load %arg7[%c6] : memref<24xf32, #tpu.memory_space<smem>>
    %207 = vector.broadcast %206 : f32 to vector<16x16xf32>
    %208 = arith.mulf %205, %207 : vector<16x16xf32>
    %209 = vector.extract_strided_slice %4 {offsets = [1, 0, 0], sizes = [1, 16, 16], strides = [1, 1, 1]} : vector<3x16x16xf32> to vector<1x16x16xf32>
    %210 = vector.shape_cast %209 : vector<1x16x16xf32> to vector<16x16xf32>
    %c14 = arith.constant 14 : index
    %211 = memref.load %arg7[%c14] : memref<24xf32, #tpu.memory_space<smem>>
    %212 = vector.broadcast %211 : f32 to vector<16x16xf32>
    %213 = arith.mulf %210, %212 : vector<16x16xf32>
    %214 = arith.addf %208, %213 : vector<16x16xf32>
    %215 = vector.extract_strided_slice %4 {offsets = [2, 0, 0], sizes = [1, 16, 16], strides = [1, 1, 1]} : vector<3x16x16xf32> to vector<1x16x16xf32>
    %216 = vector.shape_cast %215 : vector<1x16x16xf32> to vector<16x16xf32>
    %c22 = arith.constant 22 : index
    %217 = memref.load %arg7[%c22] : memref<24xf32, #tpu.memory_space<smem>>
    %218 = vector.broadcast %217 : f32 to vector<16x16xf32>
    %219 = arith.mulf %216, %218 : vector<16x16xf32>
    %220 = arith.addf %214, %219 : vector<16x16xf32>
    %221 = vector.extract_strided_slice %10 {offsets = [0, 6], sizes = [16, 1], strides = [1, 1]} : vector<16x8xf32> to vector<16x1xf32>
    %222 = vector.extract_strided_slice %12 {offsets = [6, 0], sizes = [1, 16], strides = [1, 1]} : vector<8x16xf32> to vector<1x16xf32>
    %223 = vector.broadcast %221 : vector<16x1xf32> to vector<16x16xf32>
    %224 = vector.broadcast %222 : vector<1x16xf32> to vector<16x16xf32>
    %225 = arith.addf %223, %224 : vector<16x16xf32>
    %226 = arith.addf %225, %220 : vector<16x16xf32>
    %cst_31 = arith.constant 0.000000e+00 : f32
    %227 = vector.broadcast %cst_31 : f32 to vector<16x16xf32>
    %228 = arith.cmpf ogt, %226, %227 : vector<16x16xf32>
    %cst_32 = arith.constant 2.000000e-01 : f32
    %229 = vector.broadcast %cst_32 : f32 to vector<16x16xf32>
    %230 = arith.mulf %229, %226 : vector<16x16xf32>
    %231 = arith.select %228, %226, %230 : vector<16x16xi1>, vector<16x16xf32>
    %c6_33 = arith.constant 6 : index
    %232 = memref.load %arg8[%c6_33] : memref<8xf32, #tpu.memory_space<smem>>
    %233 = vector.broadcast %232 : f32 to vector<16x16xf32>
    %234 = arith.mulf %231, %233 : vector<16x16xf32>
    %235 = arith.addf %203, %234 : vector<16x16xf32>
    %236 = vector.extract_strided_slice %4 {offsets = [0, 0, 0], sizes = [1, 16, 16], strides = [1, 1, 1]} : vector<3x16x16xf32> to vector<1x16x16xf32>
    %237 = vector.shape_cast %236 : vector<1x16x16xf32> to vector<16x16xf32>
    %c7 = arith.constant 7 : index
    %238 = memref.load %arg7[%c7] : memref<24xf32, #tpu.memory_space<smem>>
    %239 = vector.broadcast %238 : f32 to vector<16x16xf32>
    %240 = arith.mulf %237, %239 : vector<16x16xf32>
    %241 = vector.extract_strided_slice %4 {offsets = [1, 0, 0], sizes = [1, 16, 16], strides = [1, 1, 1]} : vector<3x16x16xf32> to vector<1x16x16xf32>
    %242 = vector.shape_cast %241 : vector<1x16x16xf32> to vector<16x16xf32>
    %c15 = arith.constant 15 : index
    %243 = memref.load %arg7[%c15] : memref<24xf32, #tpu.memory_space<smem>>
    %244 = vector.broadcast %243 : f32 to vector<16x16xf32>
    %245 = arith.mulf %242, %244 : vector<16x16xf32>
    %246 = arith.addf %240, %245 : vector<16x16xf32>
    %247 = vector.extract_strided_slice %4 {offsets = [2, 0, 0], sizes = [1, 16, 16], strides = [1, 1, 1]} : vector<3x16x16xf32> to vector<1x16x16xf32>
    %248 = vector.shape_cast %247 : vector<1x16x16xf32> to vector<16x16xf32>
    %c23 = arith.constant 23 : index
    %249 = memref.load %arg7[%c23] : memref<24xf32, #tpu.memory_space<smem>>
    %250 = vector.broadcast %249 : f32 to vector<16x16xf32>
    %251 = arith.mulf %248, %250 : vector<16x16xf32>
    %252 = arith.addf %246, %251 : vector<16x16xf32>
    %253 = vector.extract_strided_slice %10 {offsets = [0, 7], sizes = [16, 1], strides = [1, 1]} : vector<16x8xf32> to vector<16x1xf32>
    %254 = vector.extract_strided_slice %12 {offsets = [7, 0], sizes = [1, 16], strides = [1, 1]} : vector<8x16xf32> to vector<1x16xf32>
    %255 = vector.broadcast %253 : vector<16x1xf32> to vector<16x16xf32>
    %256 = vector.broadcast %254 : vector<1x16xf32> to vector<16x16xf32>
    %257 = arith.addf %255, %256 : vector<16x16xf32>
    %258 = arith.addf %257, %252 : vector<16x16xf32>
    %cst_34 = arith.constant 0.000000e+00 : f32
    %259 = vector.broadcast %cst_34 : f32 to vector<16x16xf32>
    %260 = arith.cmpf ogt, %258, %259 : vector<16x16xf32>
    %cst_35 = arith.constant 2.000000e-01 : f32
    %261 = vector.broadcast %cst_35 : f32 to vector<16x16xf32>
    %262 = arith.mulf %261, %258 : vector<16x16xf32>
    %263 = arith.select %260, %258, %262 : vector<16x16xi1>, vector<16x16xf32>
    %c7_36 = arith.constant 7 : index
    %264 = memref.load %arg8[%c7_36] : memref<8xf32, #tpu.memory_space<smem>>
    %265 = vector.broadcast %264 : f32 to vector<16x16xf32>
    %266 = arith.mulf %263, %265 : vector<16x16xf32>
    %267 = arith.addf %235, %266 : vector<16x16xf32>
    %cst_37 = arith.constant -1.000000e+30 : f32
    %268 = vector.broadcast %cst_37 : f32 to vector<16x16xf32>
    %269 = arith.select %8, %267, %268 : vector<16x16xi1>, vector<16x16xf32>
    %c0_38 = arith.constant 0 : index
    %c0_39 = arith.constant 0 : index
    %270 = vector.load %arg13[%c0_38, %c0_39] : memref<16x1xf32, #tpu.memory_space<vmem>>, vector<16x1xf32>
    %cst_40 = arith.constant dense<0xFF800000> : vector<16xf32>
    %271 = vector.multi_reduction <maximumf>, %269, %cst_40 [1] : vector<16x16xf32> to vector<16xf32>
    %272 = vector.shape_cast %271 : vector<16xf32> to vector<16x1xf32>
    %273 = arith.maximumf %270, %272 : vector<16x1xf32>
    %274 = arith.subf %270, %273 : vector<16x1xf32>
    %275 = math.exp %274 : vector<16x1xf32>
    %276 = vector.broadcast %273 : vector<16x1xf32> to vector<16x16xf32>
    %277 = arith.subf %269, %276 : vector<16x16xf32>
    %278 = math.exp %277 : vector<16x16xf32>
    %cst_41 = arith.constant 0.000000e+00 : f32
    %279 = vector.broadcast %cst_41 : f32 to vector<16x16xf32>
    %280 = arith.select %8, %278, %279 : vector<16x16xi1>, vector<16x16xf32>
    %c0_42 = arith.constant 0 : index
    %c0_43 = arith.constant 0 : index
    %281 = vector.load %arg14[%c0_42, %c0_43] : memref<16x1xf32, #tpu.memory_space<vmem>>, vector<16x1xf32>
    %282 = arith.mulf %275, %281 : vector<16x1xf32>
    %cst_44 = arith.constant dense<0.000000e+00> : vector<16xf32>
    %283 = vector.multi_reduction <add>, %280, %cst_44 [1] : vector<16x16xf32> to vector<16xf32>
    %284 = vector.shape_cast %283 : vector<16xf32> to vector<16x1xf32>
    %285 = arith.addf %282, %284 : vector<16x1xf32>
    %c0_45 = arith.constant 0 : index
    %c0_46 = arith.constant 0 : index
    %286 = vector.load %arg14[%c0_45, %c0_46] : memref<16x1xf32, #tpu.memory_space<vmem>>, vector<16x1xf32>
    tpu.vector_store %arg14[%c0_45, %c0_46], %285 {strides = array<i32>} : memref<16x1xf32, #tpu.memory_space<vmem>>, vector<16x1xf32>,
    %c0_47 = arith.constant 0 : index
    %c0_48 = arith.constant 0 : index
    %287 = vector.load %arg15[%c0_47, %c0_48] : memref<16x8xf32, #tpu.memory_space<vmem>>, vector<16x8xf32>
    %288 = vector.broadcast %275 : vector<16x1xf32> to vector<16x8xf32>
    %289 = arith.mulf %288, %287 : vector<16x8xf32>
    %c0_49 = arith.constant 0 : index
    %c0_50 = arith.constant 0 : index
    %c0_51 = arith.constant 0 : index
    %290 = vector.load %arg4[%c0_49, %c0_50, %c0_51] : memref<1x16x8xf32, #tpu.memory_space<vmem>>, vector<1x16x8xf32>
    %291 = vector.shape_cast %290 : vector<1x16x8xf32> to vector<16x8xf32>
    %cst_52 = arith.constant dense<0.000000e+00> : vector<16x8xf32>
    %292 = tpu.matmul %280, %291, %cst_52 {dimension_numbers = #tpu.dot_dimension_numbers<[1], [0], [0], [1], [0, 0, 1, 1], [], []>} : vector<16x16xf32>, vector<16x8xf32>, vector<16x8xf32> -> vector<16x8xf32>
    %293 = arith.addf %289, %292 : vector<16x8xf32>
    %c0_53 = arith.constant 0 : index
    %c0_54 = arith.constant 0 : index
    %294 = vector.load %arg15[%c0_53, %c0_54] : memref<16x8xf32, #tpu.memory_space<vmem>>, vector<16x8xf32>
    tpu.vector_store %arg15[%c0_53, %c0_54], %293 {strides = array<i32>} : memref<16x8xf32, #tpu.memory_space<vmem>>, vector<16x8xf32>,
    %c0_55 = arith.constant 0 : index
    %c0_56 = arith.constant 0 : index
    %295 = vector.load %arg13[%c0_55, %c0_56] : memref<16x1xf32, #tpu.memory_space<vmem>>, vector<16x1xf32>
    tpu.vector_store %arg13[%c0_55, %c0_56], %273 {strides = array<i32>} : memref<16x1xf32, #tpu.memory_space<vmem>>, vector<16x1xf32>,
    %c0_i32_57 = arith.constant 0 : i32
    %296 = arith.cmpi eq, %arg1, %c0_i32_57 : i32
    %297 = arith.extui %296 : i1 to i32
    %c0_i32_58 = arith.constant 0 : i32
    %298 = arith.cmpi ne, %297, %c0_i32_58 : i32
    scf.if %298 {
      %c0_59 = arith.constant 0 : index
      %c0_60 = arith.constant 0 : index
      %299 = vector.load %arg14[%c0_59, %c0_60] : memref<16x1xf32, #tpu.memory_space<vmem>>, vector<16x1xf32>
      %cst_61 = arith.constant 1.000000e-30 : f32
      %300 = vector.broadcast %cst_61 : f32 to vector<16x1xf32>
      %301 = arith.maximumf %299, %300 : vector<16x1xf32>
      %302 = tpu.reciprocal %301 : vector<16x1xf32> -> vector<16x1xf32>
      %c0_62 = arith.constant 0 : index
      %c0_63 = arith.constant 0 : index
      %303 = vector.load %arg15[%c0_62, %c0_63] : memref<16x8xf32, #tpu.memory_space<vmem>>, vector<16x8xf32>
      %304 = vector.broadcast %302 : vector<16x1xf32> to vector<16x8xf32>
      %305 = arith.mulf %303, %304 : vector<16x8xf32>
      %c0_64 = arith.constant 0 : index
      %c0_65 = arith.constant 0 : index
      %306 = vector.load %arg9[%c0_64, %c0_65] : memref<1x8xf32, #tpu.memory_space<vmem>>, vector<1x8xf32>
      %307 = vector.broadcast %306 : vector<1x8xf32> to vector<16x8xf32>
      %308 = arith.addf %305, %307 : vector<16x8xf32>
      %cst_66 = arith.constant 0.000000e+00 : f32
      %309 = vector.broadcast %cst_66 : f32 to vector<16x8xf32>
      %310 = arith.cmpf ogt, %308, %309 : vector<16x8xf32>
      %cst_67 = arith.constant 0.000000e+00 : f32
      %311 = vector.broadcast %cst_67 : f32 to vector<16x8xf32>
      %312 = arith.minimumf %308, %311 : vector<16x8xf32>
      %313 = math.exp %312 : vector<16x8xf32>
      %cst_68 = arith.constant 1.000000e+00 : f32
      %314 = vector.broadcast %cst_68 : f32 to vector<16x8xf32>
      %315 = arith.subf %313, %314 : vector<16x8xf32>
      %316 = arith.select %310, %308, %315 : vector<16x8xi1>, vector<16x8xf32>
      %c0_69 = arith.constant 0 : index
      %c0_70 = arith.constant 0 : index
      %317 = vector.load %arg10[%c0_69, %c0_70] : memref<8x3xf32, #tpu.memory_space<vmem>>, vector<8x3xf32>
      %cst_71 = arith.constant dense<0.000000e+00> : vector<16x3xf32>
      %318 = tpu.matmul %316, %317, %cst_71 {dimension_numbers = #tpu.dot_dimension_numbers<[1], [0], [0], [1], [0, 0, 1, 1], [], []>} : vector<16x8xf32>, vector<8x3xf32>, vector<16x3xf32> -> vector<16x3xf32>
      %c0_72 = arith.constant 0 : index
      %c0_73 = arith.constant 0 : index
      %319 = vector.load %arg11[%c0_72, %c0_73] : memref<1x3xf32, #tpu.memory_space<vmem>>, vector<1x3xf32>
      %320 = vector.broadcast %319 : vector<1x3xf32> to vector<16x3xf32>
      %321 = arith.addf %318, %320 : vector<16x3xf32>
      %c0_74 = arith.constant 0 : index
      %c0_75 = arith.constant 0 : index
      %322 = vector.load %arg12[%c0_74, %c0_75] : memref<16x3xf32, #tpu.memory_space<vmem>>, vector<16x3xf32>
      tpu.vector_store %arg12[%c0_74, %c0_75], %321 {strides = array<i32>} : memref<16x3xf32, #tpu.memory_space<vmem>>, vector<16x3xf32>,
    } else {
    }
    return
  }
  func.func @transform_0(%arg0: i32, %arg1: i32) -> (i32, i32, i32) {
    %c0_i32 = arith.constant 0 : i32
    %c0_i32_0 = arith.constant 0 : i32
    %c0_i32_1 = arith.constant 0 : i32
    return %c0_i32, %arg0, %c0_i32_0 : i32, i32, i32
  }
  func.func @transform_1(%arg0: i32, %arg1: i32) -> (i32, i32, i32) {
    %c0_i32 = arith.constant 0 : i32
    %c0_i32_0 = arith.constant 0 : i32
    %c0_i32_1 = arith.constant 0 : i32
    return %c0_i32, %c0_i32_0, %arg1 : i32, i32, i32
  }
  func.func @transform_2(%arg0: i32, %arg1: i32) -> (i32, i32, i32) {
    %c0_i32 = arith.constant 0 : i32
    %c0_i32_0 = arith.constant 0 : i32
    %c0_i32_1 = arith.constant 0 : i32
    return %c0_i32, %arg1, %c0_i32_0 : i32, i32, i32
  }
  func.func @transform_3(%arg0: i32, %arg1: i32) -> (i32, i32, i32) {
    %c0_i32 = arith.constant 0 : i32
    %c0_i32_0 = arith.constant 0 : i32
    return %c0_i32, %arg0, %arg1 : i32, i32, i32
  }
  func.func @transform_4(%arg0: i32, %arg1: i32) -> (i32, i32) {
    %c0_i32 = arith.constant 0 : i32
    return %arg0, %arg1 : i32, i32
  }
  func.func @transform_5(%arg0: i32, %arg1: i32) -> i32 {
    %c0_i32 = arith.constant 0 : i32
    %c0_i32_0 = arith.constant 0 : i32
    return %c0_i32 : i32
  }
  func.func @transform_6(%arg0: i32, %arg1: i32) -> i32 {
    %c0_i32 = arith.constant 0 : i32
    %c0_i32_0 = arith.constant 0 : i32
    return %c0_i32 : i32
  }
  func.func @transform_7(%arg0: i32, %arg1: i32) -> (i32, i32) {
    %c0_i32 = arith.constant 0 : i32
    %c0_i32_0 = arith.constant 0 : i32
    %c0_i32_1 = arith.constant 0 : i32
    return %c0_i32, %c0_i32_0 : i32, i32
  }
  func.func @transform_8(%arg0: i32, %arg1: i32) -> (i32, i32) {
    %c0_i32 = arith.constant 0 : i32
    %c0_i32_0 = arith.constant 0 : i32
    %c0_i32_1 = arith.constant 0 : i32
    return %c0_i32, %c0_i32_0 : i32, i32
  }
  func.func @transform_9(%arg0: i32, %arg1: i32) -> (i32, i32) {
    %c0_i32 = arith.constant 0 : i32
    %c0_i32_0 = arith.constant 0 : i32
    %c0_i32_1 = arith.constant 0 : i32
    return %c0_i32, %c0_i32_0 : i32, i32
  }
  func.func @transform_10(%arg0: i32, %arg1: i32) -> (i32, i32) {
    %c0_i32 = arith.constant 0 : i32
    %c0_i32_0 = arith.constant 0 : i32
    return %arg0, %c0_i32 : i32, i32
  }
}

</mosaic_0001>

<llo_original>
// kernel: gat_forward.6
$region0: #{gat_forward.6}
  #allocation0 [shape = 'u32[]', space=smem, size = 0x4, offset = 0x4, fixed_abs, tag = 'smem constant byte address 0x4 - core index']
  #allocation1 [shape = 'u32[72,128]{1,0:T(1,128)}', space=vmem, size = 0x9000, scoped, tag = 'internal scratch']
  %s0 = inlined_call_operand.vmem [shape: f32[16,16], index: 0, kind: input, shape index: {}]
  %s1 = inlined_call_operand.vmem [shape: f32[16,16], index: 1, kind: input, shape index: {}]
  %s2 = inlined_call_operand.vmem [shape: f32[1,16], index: 2, kind: input, shape index: {}]
  %s3 = inlined_call_operand.vmem [shape: f32[16,16], index: 3, kind: output, shape index: {}]
  %s4 = sld [smem:[#allocation0]]
  $region22: #{gat_forward.6} parent=0
    _
  %s6 = ssub.s32 1, %s4
  %s7 = scalar_select 0, %s6, %s4
  // Predicated region
  $region2: #{gat_forward.6} parent=0 // pred_check
    _
  $region3: #{gat_forward.6} parent=0 // pred_check_branch
    %9 = sbr.rel (0) target = $region5
  $region4: #{gat_forward.6} parent=0 // pred_region
    _
  $region5: #{gat_forward.6} parent=0 // pred_fallthru
    _
  // Predicated region
  $region6: #{gat_forward.6} parent=0 // pred_check
    _
  $region7: #{gat_forward.6} parent=0 // pred_check_branch
    %11 = sbr.rel (0) target = $region9
  $region8: #{gat_forward.6} parent=0 // pred_region
    _
  $region9: #{gat_forward.6} parent=0 // pred_fallthru
    _
  // Predicated region
  $region10: #{gat_forward.6} parent=0 // pred_check
    _
  $region11: #{gat_forward.6} parent=0 // pred_check_branch
    %13 = sbr.rel (0) target = $region13
  $region12: #{gat_forward.6} parent=0 // pred_region
    _
  $region13: #{gat_forward.6} parent=0 // pred_fallthru
    _
  %v14 = vld [vmem:[%s0] sm:$0xff]
  %v15 = vld [vmem:[%s0 + $0x8] sm:$0xff]
  %v16 = vld [vmem:[%s1] sm:$0xff]
  %v17 = vld [vmem:[%s1 + $0x8] sm:$0xff]
  %v18 = vld [vmem:[%s2] sm:$0x1]
  %v20 = vperm.slane %v18, 0
  %vm22 = vcmask 130048
  %v24 = vsel %vm22, %v14, 0
  %v27 = vsel %vm22, %v15, 0
  %29 = vmatpush.msra.mxu0 0.0
  %30 = vmatpush.msra.mxu0 0.0
  %31 = vmatpush.msra.mxu0 0.0
  %32 = vmatpush.msra.mxu0 0.0
  %33 = vmatpush.msra.mxu0 0.0
  %34 = vmatpush.msra.mxu0 0.0
  %35 = vmatpush.msra.mxu0 0.0
  %36 = vmatpush.msra.mxu0 0.0
  %37 = vmatpush.msra.mxu0 0.0
  %38 = vmatpush.msra.mxu0 0.0
  %39 = vmatpush.msra.mxu0 0.0
  %40 = vmatpush.msra.mxu0 0.0
  %41 = vmatpush.msra.mxu0 0.0
  %42 = vmatpush.msra.mxu0 0.0
  %43 = vmatpush.msra.mxu0 %v17
  %44 = vmatpush.msra.mxu0 %v16
  %45 = vmatmul.f32.gmra.mxu0 %v24
  %v46 = vpop.f32.mrf.mxu0
  %v47 = vadd.f32 %v20, %v46
  %48 = vmatmul.f32.gmra.mxu0 %v27
  %v49 = vpop.f32.mrf.mxu0
  %v50 = vadd.f32 %v20, %v49
  %51 = vdwg.mxu0
  %52 = vst.msk [vmem:[%s3] sm:$0xff] %vm22, %v47
  %53 = vst.msk [vmem:[%s3 + $0x8] sm:$0xff] %vm22, %v50
  // Predicated region
  $region14: #{gat_forward.6} parent=0 // pred_check
    _
  $region15: #{gat_forward.6} parent=0 // pred_check_branch
    %55 = sbr.rel (0) target = $region17
  $region16: #{gat_forward.6} parent=0 // pred_region
    _
  $region17: #{gat_forward.6} parent=0 // pred_fallthru
    _
  // Predicated region
  $region18: #{gat_forward.6} parent=0 // pred_check
    _
  $region19: #{gat_forward.6} parent=0 // pred_check_branch
    %57 = sbr.rel (0) target = $region21
  $region20: #{gat_forward.6} parent=0 // pred_region
    _
  $region21: #{gat_forward.6} parent=0 // pred_fallthru
    _

// kernel: gat_forward.4
$region0: #{gat_forward.4}
  #allocation0 [shape = 'u32[]', space=smem, size = 0x4, offset = 0x4, fixed_abs, tag = 'smem constant byte address 0x4 - core index']
  #allocation1 [shape = 'u32[72,128]{1,0:T(1,128)}', space=vmem, size = 0x9000, scoped, tag = 'internal scratch']
  %s0 = inlined_call_operand.vmem [shape: f32[16,4], index: 0, kind: input, shape index: {}]
  %s1 = inlined_call_operand.vmem [shape: f32[4,32], index: 1, kind: input, shape index: {}]
  %s2 = inlined_call_operand.vmem [shape: f32[1,32], index: 2, kind: input, shape index: {}]
  %s3 = inlined_call_operand.vmem [shape: f32[16,32], index: 3, kind: output, shape index: {}]
  %s4 = sld [smem:[#allocation0]]
  $region22: #{gat_forward.4} parent=0
    _
  %s6 = ssub.s32 1, %s4
  %s7 = scalar_select 0, %s6, %s4
  // Predicated region
  $region2: #{gat_forward.4} parent=0 // pred_check
    _
  $region3: #{gat_forward.4} parent=0 // pred_check_branch
    %9 = sbr.rel (0) target = $region5
  $region4: #{gat_forward.4} parent=0 // pred_region
    _
  $region5: #{gat_forward.4} parent=0 // pred_fallthru
    _
  // Predicated region
  $region6: #{gat_forward.4} parent=0 // pred_check
    _
  $region7: #{gat_forward.4} parent=0 // pred_check_branch
    %11 = sbr.rel (0) target = $region9
  $region8: #{gat_forward.4} parent=0 // pred_region
    _
  $region9: #{gat_forward.4} parent=0 // pred_fallthru
    _
  // Predicated region
  $region10: #{gat_forward.4} parent=0 // pred_check
    _
  $region11: #{gat_forward.4} parent=0 // pred_check_branch
    %13 = sbr.rel (0) target = $region13
  $region12: #{gat_forward.4} parent=0 // pred_region
    _
  $region13: #{gat_forward.4} parent=0 // pred_fallthru
    _
  %v14 = vld [vmem:[%s0] sm:$0xff]
  %v15 = vld [vmem:[%s0 + $0x8] sm:$0xff]
  %v16 = vld [vmem:[%s1] sm:$0xf]
  %v17 = vld [vmem:[%s2] sm:$0x1]
  %v19 = vperm.slane %v17, 0
  %vm21 = vcmask 31744
  %v23 = vsel %vm21, %v14, 0
  %v26 = vsel %vm21, %v15, 0
  %vm28 = vcmask 1043456
  %v30 = vsel %vm28, %v16, 0
  %32 = vmatpush.msra.mxu0 0.0
  %33 = vmatpush.msra.mxu0 0.0
  %34 = vmatpush.msra.mxu0 0.0
  %35 = vmatpush.msra.mxu0 0.0
  %36 = vmatpush.msra.mxu0 0.0
  %37 = vmatpush.msra.mxu0 0.0
  %38 = vmatpush.msra.mxu0 0.0
  %39 = vmatpush.msra.mxu0 0.0
  %40 = vmatpush.msra.mxu0 0.0
  %41 = vmatpush.msra.mxu0 0.0
  %42 = vmatpush.msra.mxu0 0.0
  %43 = vmatpush.msra.mxu0 0.0
  %44 = vmatpush.msra.mxu0 0.0
  %45 = vmatpush.msra.mxu0 0.0
  %46 = vmatpush.msra.mxu0 0.0
  %47 = vmatpush.msra.mxu0 %v30
  %48 = vmatmul.f32.gmra.mxu0 %v23
  %v49 = vpop.f32.mrf.mxu0
  %v50 = vadd.f32 %v19, %v49
  %51 = vmatmul.f32.gmra.mxu0 %v26
  %v52 = vpop.f32.mrf.mxu0
  %v53 = vadd.f32 %v19, %v52
  %54 = vdwg.mxu0
  %vm55 = vcmask 261120
  %56 = vst.msk [vmem:[%s3] sm:$0xff] %vm55, %v50
  %57 = vst.msk [vmem:[%s3 + $0x8] sm:$0xff] %vm55, %v53
  // Predicated region
  $region14: #{gat_forward.4} parent=0 // pred_check
    _
  $region15: #{gat_forward.4} parent=0 // pred_check_branch
    %59 = sbr.rel (0) target = $region17
  $region16: #{gat_forward.4} parent=0 // pred_region
    _
  $region17: #{gat_forward.4} parent=0 // pred_fallthru
    _
  // Predicated region
  $region18: #{gat_forward.4} parent=0 // pred_check
    _
  $region19: #{gat_forward.4} parent=0 // pred_check_branch
    %61 = sbr.rel (0) target = $region21
  $region20: #{gat_forward.4} parent=0 // pred_region
    _
  $region21: #{gat_forward.4} parent=0 // pred_fallthru
    _

// kernel: gat_forward.5
$region0: #{gat_forward.5}
  #allocation0 [shape = 'u32[]', space=smem, size = 0x4, offset = 0x4, fixed_abs, tag = 'smem constant byte address 0x4 - core index']
  #allocation1 [shape = 'u32[72,128]{1,0:T(1,128)}', space=vmem, size = 0x9000, scoped, tag = 'internal scratch']
  #allocation2 [shape = 'f32[16,2]{1,0:T(8,128)}', space=vmem, size = 0x2000, scoped, tag = 'scratch operand']
  #allocation3 [shape = 'f32[16,2]{1,0:T(8,128)}', space=vmem, size = 0x2000, scoped, tag = 'scratch operand']
  #allocation4 [shape = 'f32[16,16]{1,0:T(8,128)}', space=vmem, size = 0x2000, scoped, tag = 'scratch operand']
  %s0 = inlined_call_operand.vmem [shape: f32[2,16,8], index: 0, kind: input, shape index: {}]
  %s1 = inlined_call_operand.vmem [shape: f32[2,8,16], index: 1, kind: input, shape index: {}]
  %s2 = inlined_call_operand.vmem [shape: f32[2,16,8], index: 2, kind: input, shape index: {}]
  %s3 = inlined_call_operand.vmem [shape: bf16[3,16,16], index: 3, kind: input, shape index: {}]
  %s4 = inlined_call_operand.vmem [shape: bf16[16,16], index: 4, kind: input, shape index: {}]
  %s5 = inlined_call_operand.vmem [shape: f32[48], index: 5, kind: input, shape index: {}]
  %s6 = inlined_call_operand.vmem [shape: f32[16], index: 6, kind: input, shape index: {}]
  %s7 = inlined_call_operand.vmem [shape: f32[2,8], index: 7, kind: input, shape index: {}]
  %s8 = inlined_call_operand.vmem [shape: f32[16,16], index: 8, kind: output, shape index: {}]
  %s9 = sld [smem:[#allocation0]]
  $region58: #{gat_forward.5} parent=0
    _
  %s11 = ssub.s32 1, %s9
  %s12 = scalar_select 0, %s11, %s9
  $region1: #{gat_forward.5} parent=0
    #allocation5 [shape = 'u8[512]{0}', space=smem, size = 0x200, scoped, tag = 'input window, operand 5, single buffered']
    #allocation6 [shape = 's32[1]{0}', space=sflag, size = 0x4, scoped, tag = 'scoped memory for gat_forward.5']
    #allocation7 [shape = 'u8[512]{0}', space=smem, size = 0x200, scoped, tag = 'input window, operand 6, single buffered']
    #allocation8 [shape = 's32[1]{0}', space=sflag, size = 0x4, scoped, tag = 'scoped memory for gat_forward.5']
    %13 = vsyncpa [#allocation6], 0
    %14 = vsyncpa [#allocation8], 0
    // Predicated region
    $region2: #{gat_forward.5} parent=1 // pred_check
      _
    $region3: #{gat_forward.5} parent=1 // pred_check_branch
      %16 = sbr.rel (0) target = $region5
    $region4: #{gat_forward.5} parent=1 // pred_region
      _
    $region5: #{gat_forward.5} parent=1 // pred_fallthru
      _
    // Predicated region
    $region6: #{gat_forward.5} parent=1 // pred_check
      _
    $region7: #{gat_forward.5} parent=1 // pred_check_branch
      %18 = sbr.rel (0) target = $region9
    $region8: #{gat_forward.5} parent=1 // pred_region
      _
    $region9: #{gat_forward.5} parent=1 // pred_fallthru
      _
    // Predicated region
    $region10: #{gat_forward.5} parent=1 // pred_check
      _
    $region11: #{gat_forward.5} parent=1 // pred_check_branch
      %20 = sbr.rel (0) target = $region13
    $region12: #{gat_forward.5} parent=1 // pred_region
      _
    $region13: #{gat_forward.5} parent=1 // pred_fallthru
      _
    // Predicated region
    $region14: #{gat_forward.5} parent=1 // pred_check
      _
    $region15: #{gat_forward.5} parent=1 // pred_check_branch
      %22 = sbr.rel (0) target = $region17
    $region16: #{gat_forward.5} parent=1 // pred_region
      _
    $region17: #{gat_forward.5} parent=1 // pred_fallthru
      _
    // Predicated region
    $region18: #{gat_forward.5} parent=1 // pred_check
      _
    $region19: #{gat_forward.5} parent=1 // pred_check_branch
      %24 = sbr.rel (0) target = $region21
    $region20: #{gat_forward.5} parent=1 // pred_region
      _
    $region21: #{gat_forward.5} parent=1 // pred_fallthru
      _
    // Predicated region
    $region22: #{gat_forward.5} parent=1 // pred_check
      _
    $region23: #{gat_forward.5} parent=1 // pred_check_branch
      %26 = sbr.rel (0) target = $region25
    $region24: #{gat_forward.5} parent=1 // pred_region
      %28 = vsyncadd [#allocation6], 0
      %s30 = sshll.u32 %s5, 4
      %s31 = int_to_ptr.vmem [resolvable:$true] %s30
      %33 = dma.vmem_to_smem %s31, 16, [#allocation5], [#allocation6]
    $region25: #{gat_forward.5} parent=1 // pred_fallthru
      _
    // Predicated region
    $region26: #{gat_forward.5} parent=1 // pred_check
      _
    $region27: #{gat_forward.5} parent=1 // pred_check_branch
      %35 = sbr.rel (0) target = $region29
    $region28: #{gat_forward.5} parent=1 // pred_region
      %37 = vsyncadd [#allocation8], 0
      %s39 = sshll.u32 %s6, 4
      %s40 = int_to_ptr.vmem [resolvable:$true] %s39
      %42 = dma.vmem_to_smem %s40, 16, [#allocation7], [#allocation8]
    $region29: #{gat_forward.5} parent=1 // pred_fallthru
      _
    // Predicated region
    $region30: #{gat_forward.5} parent=1 // pred_check
      _
    $region31: #{gat_forward.5} parent=1 // pred_check_branch
      %44 = sbr.rel (0) target = $region33
    $region32: #{gat_forward.5} parent=1 // pred_region
      _
    $region33: #{gat_forward.5} parent=1 // pred_fallthru
      _
    // Predicated region
    $region34: #{gat_forward.5} parent=1 // pred_check
      _
    $region35: #{gat_forward.5} parent=1 // pred_check_branch
      %46 = sbr.rel (0) target = $region37
    $region36: #{gat_forward.5} parent=1 // pred_region
      %48 = dma.done [#allocation6], 16
    $region37: #{gat_forward.5} parent=1 // pred_fallthru
      _
    // Predicated region
    $region38: #{gat_forward.5} parent=1 // pred_check
      _
    $region39: #{gat_forward.5} parent=1 // pred_check_branch
      %50 = sbr.rel (0) target = $region41
    $region40: #{gat_forward.5} parent=1 // pred_region
      %52 = dma.done [#allocation8], 16
    $region41: #{gat_forward.5} parent=1 // pred_fallthru
      _
    %53 = sfence
    %p54 = scmp.eq.s32.totalorder 0, 0
    // Predicated region
    $region42: #{gat_forward.5} parent=1 // pred_check
      %p55 = pneg %p54
    $region43: #{gat_forward.5} parent=1 // pred_check_branch
      %57 = sbr.rel (%p55) target = $region45
    $region44: #{gat_forward.5} parent=1 // pred_region
      %vm58 = vcmask 15360
      %59 = vst.msk [vmem:[#allocation2] sm:$0xff] %vm58, -1e+30
      %60 = vst.msk [vmem:[#allocation2 + $0x8] sm:$0xff] %vm58, -1e+30
      %61 = vst.msk [vmem:[#allocation3] sm:$0xff] %vm58, 0.0
      %62 = vst.msk [vmem:[#allocation3 + $0x8] sm:$0xff] %vm58, 0.0
      %vm63 = vcmask 130048
      %64 = vst.msk [vmem:[#allocation4] sm:$0xff] %vm63, 0.0
      %65 = vst.msk [vmem:[#allocation4 + $0x8] sm:$0xff] %vm63, 0.0
    $region45: #{gat_forward.5} parent=1 // pred_fallthru
      _
    %v66 = vld [vmem:[%s3] sm:$0xf]
    %v67 = vld [vmem:[%s3 + $0x4] sm:$0xf]
    %v68 = vld [vmem:[%s3 + $0x8] sm:$0xf]
    %v69 = vld [vmem:[%s3 + $0xc] sm:$0xf]
    %v70 = vld [vmem:[%s3 + $0x10] sm:$0xf]
    %v71 = vld [vmem:[%s3 + $0x14] sm:$0xf]
    %v72 = vunpack.c.l.bf16 %v66
    %v73 = vunpack.c.l.bf16 %v67
    %v74 = vunpack.c.l.bf16 %v68
    %v75 = vunpack.c.l.bf16 %v69
    %v76 = vunpack.c.l.bf16 %v70
    %v77 = vunpack.c.l.bf16 %v71
    %v78 = vld [vmem:[%s4] sm:$0xf]
    %v79 = vld [vmem:[%s4 + $0x4] sm:$0xf]
    %v80 = vunpack.c.l.bf16 %v78
    %v81 = vunpack.c.l.bf16 %v79
    %vm82 = vcmp.gt.f32.partialorder %v80, 0.0
    %vm83 = vcmp.gt.f32.partialorder %v81, 0.0
    %v84 = vld [vmem:[%s0] sm:$0xff]
    %v85 = vld [vmem:[%s0 + $0x8] sm:$0xff]
    %v86 = vld [vmem:[%s1] sm:$0xff]
    %s87 = sld [smem:[#allocation5]]
    %v88 = vstv %s87
    %v89 = vmul.f32 %v72, %v88
    %v90 = vmul.f32 %v73, %v88
    %s91 = sld [smem:[#allocation5 + $0x8]]
    %v92 = vstv %s91
    %v93 = vmul.f32 %v74, %v92
    %v94 = vmul.f32 %v75, %v92
    %v95 = vadd.f32 %v89, %v93
    %v96 = vadd.f32 %v90, %v94
    %s97 = sld [smem:[#allocation5 + $0x10]]
    %v98 = vstv %s97
    %v99 = vmul.f32 %v76, %v98
    %v100 = vmul.f32 %v77, %v98
    %v101 = vadd.f32 %v95, %v99
    %v102 = vadd.f32 %v96, %v100
    %104 = vset.pattern.permute.xlu0 0
    %105 = vperm.xlu0 %104, %v84
    %v106 = vpop.permute.xlu0 %105
    %109 = vset.pattern.permute.xlu0 0
    %110 = vperm.xlu0 %109, %v85
    %v111 = vpop.permute.xlu0 %110
    %v113 = vperm.slane %v86, 0
    %v114 = vadd.f32 %v106, %v113
    %v115 = vadd.f32 %v111, %v113
    %v116 = vadd.f32 %v114, %v101
    %v117 = vadd.f32 %v115, %v102
    %vm118 = vcmp.gt.f32.partialorder %v116, 0.0
    %vm119 = vcmp.gt.f32.partialorder %v117, 0.0
    %v120 = vmul.f32 %v116, 0.2
    %v121 = vmul.f32 %v117, 0.2
    %v122 = vsel %vm118, %v116, %v120
    %v123 = vsel %vm119, %v117, %v121
    %s124 = sld [smem:[#allocation7]]
    %v125 = vstv %s124
    %v126 = vmul.f32 %v122, %v125
    %v127 = vmul.f32 %v123, %v125
    %s128 = sld [smem:[#allocation5 + $0x1]]
    %v129 = vstv %s128
    %v130 = vmul.f32 %v72, %v129
    %v131 = vmul.f32 %v73, %v129
    %s132 = sld [smem:[#allocation5 + $0x9]]
    %v133 = vstv %s132
    %v134 = vmul.f32 %v74, %v133
    %v135 = vmul.f32 %v75, %v133
    %v136 = vadd.f32 %v130, %v134
    %v137 = vadd.f32 %v131, %v135
    %s138 = sld [smem:[#allocation5 + $0x11]]
    %v139 = vstv %s138
    %v140 = vmul.f32 %v76, %v139
    %v141 = vmul.f32 %v77, %v139
    %v142 = vadd.f32 %v136, %v140
    %v143 = vadd.f32 %v137, %v141
    %144 = vset.pattern.permute.xlu0 1
    %145 = vperm.xlu0 %144, %v84
    %v146 = vpop.permute.xlu0 %145
    %148 = vset.pattern.permute.xlu0 1
    %149 = vperm.xlu0 %148, %v85
    %v150 = vpop.permute.xlu0 %149
    %v152 = vperm.slane %v86, 1
    %v153 = vadd.f32 %v146, %v152
    %v154 = vadd.f32 %v150, %v152
    %v155 = vadd.f32 %v153, %v142
    %v156 = vadd.f32 %v154, %v143
    %vm157 = vcmp.gt.f32.partialorder %v155, 0.0
    %vm158 = vcmp.gt.f32.partialorder %v156, 0.0
    %v159 = vmul.f32 %v155, 0.2
    %v160 = vmul.f32 %v156, 0.2
    %v161 = vsel %vm157, %v155, %v159
    %v162 = vsel %vm158, %v156, %v160
    %s163 = sld [smem:[#allocation7 + $0x1]]
    %v164 = vstv %s163
    %v165 = vmul.f32 %v161, %v164
    %v166 = vmul.f32 %v162, %v164
    %v167 = vadd.f32 %v126, %v165
    %v168 = vadd.f32 %v127, %v166
    %s169 = sld [smem:[#allocation5 + $0x2]]
    %v170 = vstv %s169
    %v171 = vmul.f32 %v72, %v170
    %v172 = vmul.f32 %v73, %v170
    %s173 = sld [smem:[#allocation5 + $0xa]]
    %v174 = vstv %s173
    %v175 = vmul.f32 %v74, %v174
    %v176 = vmul.f32 %v75, %v174
    %v177 = vadd.f32 %v171, %v175
    %v178 = vadd.f32 %v172, %v176
    %s179 = sld [smem:[#allocation5 + $0x12]]
    %v180 = vstv %s179
    %v181 = vmul.f32 %v76, %v180
    %v182 = vmul.f32 %v77, %v180
    %v183 = vadd.f32 %v177, %v181
    %v184 = vadd.f32 %v178, %v182
    %185 = vset.pattern.permute.xlu0 2
    %186 = vperm.xlu0 %185, %v84
    %v187 = vpop.permute.xlu0 %186
    %189 = vset.pattern.permute.xlu0 2
    %190 = vperm.xlu0 %189, %v85
    %v191 = vpop.permute.xlu0 %190
    %v193 = vperm.slane %v86, 2
    %v194 = vadd.f32 %v187, %v193
    %v195 = vadd.f32 %v191, %v193
    %v196 = vadd.f32 %v194, %v183
    %v197 = vadd.f32 %v195, %v184
    %vm198 = vcmp.gt.f32.partialorder %v196, 0.0
    %vm199 = vcmp.gt.f32.partialorder %v197, 0.0
    %v200 = vmul.f32 %v196, 0.2
    %v201 = vmul.f32 %v197, 0.2
    %v202 = vsel %vm198, %v196, %v200
    %v203 = vsel %vm199, %v197, %v201
    %s204 = sld [smem:[#allocation7 + $0x2]]
    %v205 = vstv %s204
    %v206 = vmul.f32 %v202, %v205
    %v207 = vmul.f32 %v203, %v205
    %v208 = vadd.f32 %v167, %v206
    %v209 = vadd.f32 %v168, %v207
    %s210 = sld [smem:[#allocation5 + $0x3]]
    %v211 = vstv %s210
    %v212 = vmul.f32 %v72, %v211
    %v213 = vmul.f32 %v73, %v211
    %s214 = sld [smem:[#allocation5 + $0xb]]
    %v215 = vstv %s214
    %v216 = vmul.f32 %v74, %v215
    %v217 = vmul.f32 %v75, %v215
    %v218 = vadd.f32 %v212, %v216
    %v219 = vadd.f32 %v213, %v217
    %s220 = sld [smem:[#allocation5 + $0x13]]
    %v221 = vstv %s220
    %v222 = vmul.f32 %v76, %v221
    %v223 = vmul.f32 %v77, %v221
    %v224 = vadd.f32 %v218, %v222
    %v225 = vadd.f32 %v219, %v223
    %226 = vset.pattern.permute.xlu0 3
    %227 = vperm.xlu0 %226, %v84
    %v228 = vpop.permute.xlu0 %227
    %230 = vset.pattern.permute.xlu0 3
    %231 = vperm.xlu0 %230, %v85
    %v232 = vpop.permute.xlu0 %231
    %v234 = vperm.slane %v86, 3
    %v235 = vadd.f32 %v228, %v234
    %v236 = vadd.f32 %v232, %v234
    %v237 = vadd.f32 %v235, %v224
    %v238 = vadd.f32 %v236, %v225
    %vm239 = vcmp.gt.f32.partialorder %v237, 0.0
    %vm240 = vcmp.gt.f32.partialorder %v238, 0.0
    %v241 = vmul.f32 %v237, 0.2
    %v242 = vmul.f32 %v238, 0.2
    %v243 = vsel %vm239, %v237, %v241
    %v244 = vsel %vm240, %v238, %v242
    %s245 = sld [smem:[#allocation7 + $0x3]]
    %v246 = vstv %s245
    %v247 = vmul.f32 %v243, %v246
    %v248 = vmul.f32 %v244, %v246
    %v249 = vadd.f32 %v208, %v247
    %v250 = vadd.f32 %v209, %v248
    %s251 = sld [smem:[#allocation5 + $0x4]]
    %v252 = vstv %s251
    %v253 = vmul.f32 %v72, %v252
    %v254 = vmul.f32 %v73, %v252
    %s255 = sld [smem:[#allocation5 + $0xc]]
    %v256 = vstv %s255
    %v257 = vmul.f32 %v74, %v256
    %v258 = vmul.f32 %v75, %v256
    %v259 = vadd.f32 %v253, %v257
    %v260 = vadd.f32 %v254, %v258
    %s261 = sld [smem:[#allocation5 + $0x14]]
    %v262 = vstv %s261
    %v263 = vmul.f32 %v76, %v262
    %v264 = vmul.f32 %v77, %v262
    %v265 = vadd.f32 %v259, %v263
    %v266 = vadd.f32 %v260, %v264
    %267 = vset.pattern.permute.xlu0 4
    %268 = vperm.xlu0 %267, %v84
    %v269 = vpop.permute.xlu0 %268
    %271 = vset.pattern.permute.xlu0 4
    %272 = vperm.xlu0 %271, %v85
    %v273 = vpop.permute.xlu0 %272
    %v275 = vperm.slane %v86, 4
    %v276 = vadd.f32 %v269, %v275
    %v277 = vadd.f32 %v273, %v275
    %v278 = vadd.f32 %v276, %v265
    %v279 = vadd.f32 %v277, %v266
    %vm280 = vcmp.gt.f32.partialorder %v278, 0.0
    %vm281 = vcmp.gt.f32.partialorder %v279, 0.0
    %v282 = vmul.f32 %v278, 0.2
    %v283 = vmul.f32 %v279, 0.2
    %v284 = vsel %vm280, %v278, %v282
    %v285 = vsel %vm281, %v279, %v283
    %s286 = sld [smem:[#allocation7 + $0x4]]
    %v287 = vstv %s286
    %v288 = vmul.f32 %v284, %v287
    %v289 = vmul.f32 %v285, %v287
    %v290 = vadd.f32 %v249, %v288
    %v291 = vadd.f32 %v250, %v289
    %s292 = sld [smem:[#allocation5 + $0x5]]
    %v293 = vstv %s292
    %v294 = vmul.f32 %v72, %v293
    %v295 = vmul.f32 %v73, %v293
    %s296 = sld [smem:[#allocation5 + $0xd]]
    %v297 = vstv %s296
    %v298 = vmul.f32 %v74, %v297
    %v299 = vmul.f32 %v75, %v297
    %v300 = vadd.f32 %v294, %v298
    %v301 = vadd.f32 %v295, %v299
    %s302 = sld [smem:[#allocation5 + $0x15]]
    %v303 = vstv %s302
    %v304 = vmul.f32 %v76, %v303
    %v305 = vmul.f32 %v77, %v303
    %v306 = vadd.f32 %v300, %v304
    %v307 = vadd.f32 %v301, %v305
    %308 = vset.pattern.permute.xlu0 5
    %309 = vperm.xlu0 %308, %v84
    %v310 = vpop.permute.xlu0 %309
    %312 = vset.pattern.permute.xlu0 5
    %313 = vperm.xlu0 %312, %v85
    %v314 = vpop.permute.xlu0 %313
    %v316 = vperm.slane %v86, 5
    %v317 = vadd.f32 %v310, %v316
    %v318 = vadd.f32 %v314, %v316
    %v319 = vadd.f32 %v317, %v306
    %v320 = vadd.f32 %v318, %v307
    %vm321 = vcmp.gt.f32.partialorder %v319, 0.0
    %vm322 = vcmp.gt.f32.partialorder %v320, 0.0
    %v323 = vmul.f32 %v319, 0.2
    %v324 = vmul.f32 %v320, 0.2
    %v325 = vsel %vm321, %v319, %v323
    %v326 = vsel %vm322, %v320, %v324
    %s327 = sld [smem:[#allocation7 + $0x5]]
    %v328 = vstv %s327
    %v329 = vmul.f32 %v325, %v328
    %v330 = vmul.f32 %v326, %v328
    %v331 = vadd.f32 %v290, %v329
    %v332 = vadd.f32 %v291, %v330
    %s333 = sld [smem:[#allocation5 + $0x6]]
    %v334 = vstv %s333
    %v335 = vmul.f32 %v72, %v334
    %v336 = vmul.f32 %v73, %v334
    %s337 = sld [smem:[#allocation5 + $0xe]]
    %v338 = vstv %s337
    %v339 = vmul.f32 %v74, %v338
    %v340 = vmul.f32 %v75, %v338
    %v341 = vadd.f32 %v335, %v339
    %v342 = vadd.f32 %v336, %v340
    %s343 = sld [smem:[#allocation5 + $0x16]]
    %v344 = vstv %s343
    %v345 = vmul.f32 %v76, %v344
    %v346 = vmul.f32 %v77, %v344
    %v347 = vadd.f32 %v341, %v345
    %v348 = vadd.f32 %v342, %v346
    %349 = vset.pattern.permute.xlu0 6
    %350 = vperm.xlu0 %349, %v84
    %v351 = vpop.permute.xlu0 %350
    %353 = vset.pattern.permute.xlu0 6
    %354 = vperm.xlu0 %353, %v85
    %v355 = vpop.permute.xlu0 %354
    %v357 = vperm.slane %v86, 6
    %v358 = vadd.f32 %v351, %v357
    %v359 = vadd.f32 %v355, %v357
    %v360 = vadd.f32 %v358, %v347
    %v361 = vadd.f32 %v359, %v348
    %vm362 = vcmp.gt.f32.partialorder %v360, 0.0
    %vm363 = vcmp.gt.f32.partialorder %v361, 0.0
    %v364 = vmul.f32 %v360, 0.2
    %v365 = vmul.f32 %v361, 0.2
    %v366 = vsel %vm362, %v360, %v364
    %v367 = vsel %vm363, %v361, %v365
    %s368 = sld [smem:[#allocation7 + $0x6]]
    %v369 = vstv %s368
    %v370 = vmul.f32 %v366, %v369
    %v371 = vmul.f32 %v367, %v369
    %v372 = vadd.f32 %v331, %v370
    %v373 = vadd.f32 %v332, %v371
    %s374 = sld [smem:[#allocation5 + $0x7]]
    %v375 = vstv %s374
    %v376 = vmul.f32 %v72, %v375
    %v377 = vmul.f32 %v73, %v375
    %s378 = sld [smem:[#allocation5 + $0xf]]
    %v379 = vstv %s378
    %v380 = vmul.f32 %v74, %v379
    %v381 = vmul.f32 %v75, %v379
    %v382 = vadd.f32 %v376, %v380
    %v383 = vadd.f32 %v377, %v381
    %s384 = sld [smem:[#allocation5 + $0x17]]
    %v385 = vstv %s384
    %v386 = vmul.f32 %v76, %v385
    %v387 = vmul.f32 %v77, %v385
    %v388 = vadd.f32 %v382, %v386
    %v389 = vadd.f32 %v383, %v387
    %390 = vset.pattern.permute.xlu0 7
    %391 = vperm.xlu0 %390, %v84
    %v392 = vpop.permute.xlu0 %391
    %394 = vset.pattern.permute.xlu0 7
    %395 = vperm.xlu0 %394, %v85
    %v396 = vpop.permute.xlu0 %395
    %v398 = vperm.slane %v86, 7
    %v399 = vadd.f32 %v392, %v398
    %v400 = vadd.f32 %v396, %v398
    %v401 = vadd.f32 %v399, %v388
    %v402 = vadd.f32 %v400, %v389
    %vm403 = vcmp.gt.f32.partialorder %v401, 0.0
    %vm404 = vcmp.gt.f32.partialorder %v402, 0.0
    %v405 = vmul.f32 %v401, 0.2
    %v406 = vmul.f32 %v402, 0.2
    %v407 = vsel %vm403, %v401, %v405
    %v408 = vsel %vm404, %v402, %v406
    %s409 = sld [smem:[#allocation7 + $0x7]]
    %v410 = vstv %s409
    %v411 = vmul.f32 %v407, %v410
    %v412 = vmul.f32 %v408, %v410
    %v413 = vadd.f32 %v372, %v411
    %v414 = vadd.f32 %v373, %v412
    %v415 = vsel %vm82, %v413, -1e+30
    %v416 = vsel %vm83, %v414, -1e+30
    %v417 = vld [vmem:[#allocation2] sm:$0xff]
    %v418 = vld [vmem:[#allocation2 + $0x8] sm:$0xff]
    %vm419 = vcmask 130048
    %v420 = vsel %vm419, %v415, -inf
    %421 = vmax.xlane.f32.xlu0 %v420
    %v422 = vpop.xlane.xlu0 %421
    %v423 = vsel %vm419, %v416, -inf
    %424 = vmax.xlane.f32.xlu0 %v423
    %v425 = vpop.xlane.xlu0 %424
    %v426 = vmax.f32 %v417, %v422
    %v427 = vmax.f32 %v418, %v425
    %v428 = vsub.f32 %v417, %v426
    %v429 = vsub.f32 %v418, %v427
    %v430 = vmul.f32 %v428, 1.442695
    %v431 = vpow.pop %v430
    %v432 = vmul.f32 %v429, 1.442695
    %v433 = vpow.pop %v432
    %435 = vset.pattern.permute.xlu0 0
    %436 = vperm.xlu0 %435, %v426
    %v437 = vpop.permute.xlu0 %436
    %440 = vset.pattern.permute.xlu0 0
    %441 = vperm.xlu0 %440, %v427
    %v442 = vpop.permute.xlu0 %441
    %v444 = vsub.f32 %v415, %v437
    %v445 = vsub.f32 %v416, %v442
    %v446 = vmul.f32 %v444, 1.442695
    %v447 = vpow.pop %v446
    %v448 = vmul.f32 %v445, 1.442695
    %v449 = vpow.pop %v448
    %v450 = vsel %vm82, %v447, 0.0
    %v451 = vsel %vm83, %v449, 0.0
    %v452 = vld [vmem:[#allocation3] sm:$0xff]
    %v453 = vld [vmem:[#allocation3 + $0x8] sm:$0xff]
    %v454 = vmul.f32 %v431, %v452
    %v455 = vmul.f32 %v433, %v453
    %v456 = vsel %vm419, %v450, 0.0
    %457 = vadd.xlane.f32.xlu0 %v456
    %v458 = vpop.xlane.xlu0 %457
    %v459 = vsel %vm419, %v451, 0.0
    %460 = vadd.xlane.f32.xlu0 %v459
    %v461 = vpop.xlane.xlu0 %460
    %v462 = vadd.f32 %v454, %v458
    %v463 = vadd.f32 %v455, %v461
    %vm464 = vcmask 7168
    %465 = vst.msk [vmem:[#allocation3] sm:$0xff] %vm464, %v462
    %466 = vst.msk [vmem:[#allocation3 + $0x8] sm:$0xff] %vm464, %v463
    %v467 = vld [vmem:[#allocation4] sm:$0xff]
    %v468 = vld [vmem:[#allocation4 + $0x8] sm:$0xff]
    %470 = vset.pattern.permute.xlu0 0
    %471 = vperm.xlu0 %470, %v431
    %v472 = vpop.permute.xlu0 %471
    %475 = vset.pattern.permute.xlu0 0
    %476 = vperm.xlu0 %475, %v433
    %v477 = vpop.permute.xlu0 %476
    %v479 = vmul.f32 %v472, %v467
    %v480 = vmul.f32 %v477, %v468
    %v481 = vld [vmem:[%s2] sm:$0xff]
    %v482 = vld [vmem:[%s2 + $0x8] sm:$0xff]
    %v484 = vsel %vm419, %v450, 0
    %v487 = vsel %vm419, %v451, 0
    %489 = vmatpush.msra.mxu0 0.0
    %490 = vmatpush.msra.mxu0 0.0
    %491 = vmatpush.msra.mxu0 0.0
    %492 = vmatpush.msra.mxu0 0.0
    %493 = vmatpush.msra.mxu0 0.0
    %494 = vmatpush.msra.mxu0 0.0
    %495 = vmatpush.msra.mxu0 0.0
    %496 = vmatpush.msra.mxu0 0.0
    %497 = vmatpush.msra.mxu0 0.0
    %498 = vmatpush.msra.mxu0 0.0
    %499 = vmatpush.msra.mxu0 0.0
    %500 = vmatpush.msra.mxu0 0.0
    %501 = vmatpush.msra.mxu0 0.0
    %502 = vmatpush.msra.mxu0 0.0
    %503 = vmatpush.msra.mxu0 %v482
    %504 = vmatpush.msra.mxu0 %v481
    %505 = vmatmul.f32.gmra.mxu0 %v484
    %v506 = vpop.f32.mrf.mxu0
    %v507 = vadd.f32 0.0, %v506
    %508 = vmatmul.f32.gmra.mxu0 %v487
    %v509 = vpop.f32.mrf.mxu0
    %v510 = vadd.f32 0.0, %v509
    %511 = vdwg.mxu0
    %v512 = vadd.f32 %v479, %v507
    %v513 = vadd.f32 %v480, %v510
    %vm514 = vcmask 64512
    %515 = vst.msk [vmem:[#allocation4] sm:$0xff] %vm514, %v512
    %516 = vst.msk [vmem:[#allocation4 + $0x8] sm:$0xff] %vm514, %v513
    %517 = vst.msk [vmem:[#allocation2] sm:$0xff] %vm464, %v426
    %518 = vst.msk [vmem:[#allocation2 + $0x8] sm:$0xff] %vm464, %v427
    %s519 = scalar_lea.vmem %s0, 16
    %v520 = vld [vmem:[%s519] sm:$0xff]
    %v521 = vld [vmem:[%s519 + $0x8] sm:$0xff]
    %s522 = scalar_lea.vmem %s1, 8
    %v523 = vld [vmem:[%s522] sm:$0xff]
    %s524 = sld [smem:[#allocation5 + $0x18]]
    %v525 = vstv %s524
    %v526 = vmul.f32 %v72, %v525
    %v527 = vmul.f32 %v73, %v525
    %s528 = sld [smem:[#allocation5 + $0x20]]
    %v529 = vstv %s528
    %v530 = vmul.f32 %v74, %v529
    %v531 = vmul.f32 %v75, %v529
    %v532 = vadd.f32 %v526, %v530
    %v533 = vadd.f32 %v527, %v531
    %s534 = sld [smem:[#allocation5 + $0x28]]
    %v535 = vstv %s534
    %v536 = vmul.f32 %v76, %v535
    %v537 = vmul.f32 %v77, %v535
    %v538 = vadd.f32 %v532, %v536
    %v539 = vadd.f32 %v533, %v537
    %541 = vset.pattern.permute.xlu0 0
    %542 = vperm.xlu0 %541, %v520
    %v543 = vpop.permute.xlu0 %542
    %546 = vset.pattern.permute.xlu0 0
    %547 = vperm.xlu0 %546, %v521
    %v548 = vpop.permute.xlu0 %547
    %v550 = vperm.slane %v523, 0
    %v551 = vadd.f32 %v543, %v550
    %v552 = vadd.f32 %v548, %v550
    %v553 = vadd.f32 %v551, %v538
    %v554 = vadd.f32 %v552, %v539
    %vm555 = vcmp.gt.f32.partialorder %v553, 0.0
    %vm556 = vcmp.gt.f32.partialorder %v554, 0.0
    %v557 = vmul.f32 %v553, 0.2
    %v558 = vmul.f32 %v554, 0.2
    %v559 = vsel %vm555, %v553, %v557
    %v560 = vsel %vm556, %v554, %v558
    %s561 = sld [smem:[#allocation7 + $0x8]]
    %v562 = vstv %s561
    %v563 = vmul.f32 %v559, %v562
    %v564 = vmul.f32 %v560, %v562
    %s565 = sld [smem:[#allocation5 + $0x19]]
    %v566 = vstv %s565
    %v567 = vmul.f32 %v72, %v566
    %v568 = vmul.f32 %v73, %v566
    %s569 = sld [smem:[#allocation5 + $0x21]]
    %v570 = vstv %s569
    %v571 = vmul.f32 %v74, %v570
    %v572 = vmul.f32 %v75, %v570
    %v573 = vadd.f32 %v567, %v571
    %v574 = vadd.f32 %v568, %v572
    %s575 = sld [smem:[#allocation5 + $0x29]]
    %v576 = vstv %s575
    %v577 = vmul.f32 %v76, %v576
    %v578 = vmul.f32 %v77, %v576
    %v579 = vadd.f32 %v573, %v577
    %v580 = vadd.f32 %v574, %v578
    %581 = vset.pattern.permute.xlu0 1
    %582 = vperm.xlu0 %581, %v520
    %v583 = vpop.permute.xlu0 %582
    %585 = vset.pattern.permute.xlu0 1
    %586 = vperm.xlu0 %585, %v521
    %v587 = vpop.permute.xlu0 %586
    %v589 = vperm.slane %v523, 1
    %v590 = vadd.f32 %v583, %v589
    %v591 = vadd.f32 %v587, %v589
    %v592 = vadd.f32 %v590, %v579
    %v593 = vadd.f32 %v591, %v580
    %vm594 = vcmp.gt.f32.partialorder %v592, 0.0
    %vm595 = vcmp.gt.f32.partialorder %v593, 0.0
    %v596 = vmul.f32 %v592, 0.2
    %v597 = vmul.f32 %v593, 0.2
    %v598 = vsel %vm594, %v592, %v596
    %v599 = vsel %vm595, %v593, %v597
    %s600 = sld [smem:[#allocation7 + $0x9]]
    %v601 = vstv %s600
    %v602 = vmul.f32 %v598, %v601
    %v603 = vmul.f32 %v599, %v601
    %v604 = vadd.f32 %v563, %v602
    %v605 = vadd.f32 %v564, %v603
    %s606 = sld [smem:[#allocation5 + $0x1a]]
    %v607 = vstv %s606
    %v608 = vmul.f32 %v72, %v607
    %v609 = vmul.f32 %v73, %v607
    %s610 = sld [smem:[#allocation5 + $0x22]]
    %v611 = vstv %s610
    %v612 = vmul.f32 %v74, %v611
    %v613 = vmul.f32 %v75, %v611
    %v614 = vadd.f32 %v608, %v612
    %v615 = vadd.f32 %v609, %v613
    %s616 = sld [smem:[#allocation5 + $0x2a]]
    %v617 = vstv %s616
    %v618 = vmul.f32 %v76, %v617
    %v619 = vmul.f32 %v77, %v617
    %v620 = vadd.f32 %v614, %v618
    %v621 = vadd.f32 %v615, %v619
    %622 = vset.pattern.permute.xlu0 2
    %623 = vperm.xlu0 %622, %v520
    %v624 = vpop.permute.xlu0 %623
    %626 = vset.pattern.permute.xlu0 2
    %627 = vperm.xlu0 %626, %v521
    %v628 = vpop.permute.xlu0 %627
    %v630 = vperm.slane %v523, 2
    %v631 = vadd.f32 %v624, %v630
    %v632 = vadd.f32 %v628, %v630
    %v633 = vadd.f32 %v631, %v620
    %v634 = vadd.f32 %v632, %v621
    %vm635 = vcmp.gt.f32.partialorder %v633, 0.0
    %vm636 = vcmp.gt.f32.partialorder %v634, 0.0
    %v637 = vmul.f32 %v633, 0.2
    %v638 = vmul.f32 %v634, 0.2
    %v639 = vsel %vm635, %v633, %v637
    %v640 = vsel %vm636, %v634, %v638
    %s641 = sld [smem:[#allocation7 + $0xa]]
    %v642 = vstv %s641
    %v643 = vmul.f32 %v639, %v642
    %v644 = vmul.f32 %v640, %v642
    %v645 = vadd.f32 %v604, %v643
    %v646 = vadd.f32 %v605, %v644
    %s647 = sld [smem:[#allocation5 + $0x1b]]
    %v648 = vstv %s647
    %v649 = vmul.f32 %v72, %v648
    %v650 = vmul.f32 %v73, %v648
    %s651 = sld [smem:[#allocation5 + $0x23]]
    %v652 = vstv %s651
    %v653 = vmul.f32 %v74, %v652
    %v654 = vmul.f32 %v75, %v652
    %v655 = vadd.f32 %v649, %v653
    %v656 = vadd.f32 %v650, %v654
    %s657 = sld [smem:[#allocation5 + $0x2b]]
    %v658 = vstv %s657
    %v659 = vmul.f32 %v76, %v658
    %v660 = vmul.f32 %v77, %v658
    %v661 = vadd.f32 %v655, %v659
    %v662 = vadd.f32 %v656, %v660
    %663 = vset.pattern.permute.xlu0 3
    %664 = vperm.xlu0 %663, %v520
    %v665 = vpop.permute.xlu0 %664
    %667 = vset.pattern.permute.xlu0 3
    %668 = vperm.xlu0 %667, %v521
    %v669 = vpop.permute.xlu0 %668
    %v671 = vperm.slane %v523, 3
    %v672 = vadd.f32 %v665, %v671
    %v673 = vadd.f32 %v669, %v671
    %v674 = vadd.f32 %v672, %v661
    %v675 = vadd.f32 %v673, %v662
    %vm676 = vcmp.gt.f32.partialorder %v674, 0.0
    %vm677 = vcmp.gt.f32.partialorder %v675, 0.0
    %v678 = vmul.f32 %v674, 0.2
    %v679 = vmul.f32 %v675, 0.2
    %v680 = vsel %vm676, %v674, %v678
    %v681 = vsel %vm677, %v675, %v679
    %s682 = sld [smem:[#allocation7 + $0xb]]
    %v683 = vstv %s682
    %v684 = vmul.f32 %v680, %v683
    %v685 = vmul.f32 %v681, %v683
    %v686 = vadd.f32 %v645, %v684
    %v687 = vadd.f32 %v646, %v685
    %s688 = sld [smem:[#allocation5 + $0x1c]]
    %v689 = vstv %s688
    %v690 = vmul.f32 %v72, %v689
    %v691 = vmul.f32 %v73, %v689
    %s692 = sld [smem:[#allocation5 + $0x24]]
    %v693 = vstv %s692
    %v694 = vmul.f32 %v74, %v693
    %v695 = vmul.f32 %v75, %v693
    %v696 = vadd.f32 %v690, %v694
    %v697 = vadd.f32 %v691, %v695
    %s698 = sld [smem:[#allocation5 + $0x2c]]
    %v699 = vstv %s698
    %v700 = vmul.f32 %v76, %v699
    %v701 = vmul.f32 %v77, %v699
    %v702 = vadd.f32 %v696, %v700
    %v703 = vadd.f32 %v697, %v701
    %704 = vset.pattern.permute.xlu0 4
    %705 = vperm.xlu0 %704, %v520
    %v706 = vpop.permute.xlu0 %705
    %708 = vset.pattern.permute.xlu0 4
    %709 = vperm.xlu0 %708, %v521
    %v710 = vpop.permute.xlu0 %709
    %v712 = vperm.slane %v523, 4
    %v713 = vadd.f32 %v706, %v712
    %v714 = vadd.f32 %v710, %v712
    %v715 = vadd.f32 %v713, %v702
    %v716 = vadd.f32 %v714, %v703
    %vm717 = vcmp.gt.f32.partialorder %v715, 0.0
    %vm718 = vcmp.gt.f32.partialorder %v716, 0.0
    %v719 = vmul.f32 %v715, 0.2
    %v720 = vmul.f32 %v716, 0.2
    %v721 = vsel %vm717, %v715, %v719
    %v722 = vsel %vm718, %v716, %v720
    %s723 = sld [smem:[#allocation7 + $0xc]]
    %v724 = vstv %s723
    %v725 = vmul.f32 %v721, %v724
    %v726 = vmul.f32 %v722, %v724
    %v727 = vadd.f32 %v686, %v725
    %v728 = vadd.f32 %v687, %v726
    %s729 = sld [smem:[#allocation5 + $0x1d]]
    %v730 = vstv %s729
    %v731 = vmul.f32 %v72, %v730
    %v732 = vmul.f32 %v73, %v730
    %s733 = sld [smem:[#allocation5 + $0x25]]
    %v734 = vstv %s733
    %v735 = vmul.f32 %v74, %v734
    %v736 = vmul.f32 %v75, %v734
    %v737 = vadd.f32 %v731, %v735
    %v738 = vadd.f32 %v732, %v736
    %s739 = sld [smem:[#allocation5 + $0x2d]]
    %v740 = vstv %s739
    %v741 = vmul.f32 %v76, %v740
    %v742 = vmul.f32 %v77, %v740
    %v743 = vadd.f32 %v737, %v741
    %v744 = vadd.f32 %v738, %v742
    %745 = vset.pattern.permute.xlu0 5
    %746 = vperm.xlu0 %745, %v520
    %v747 = vpop.permute.xlu0 %746
    %749 = vset.pattern.permute.xlu0 5
    %750 = vperm.xlu0 %749, %v521
    %v751 = vpop.permute.xlu0 %750
    %v753 = vperm.slane %v523, 5
    %v754 = vadd.f32 %v747, %v753
    %v755 = vadd.f32 %v751, %v753
    %v756 = vadd.f32 %v754, %v743
    %v757 = vadd.f32 %v755, %v744
    %vm758 = vcmp.gt.f32.partialorder %v756, 0.0
    %vm759 = vcmp.gt.f32.partialorder %v757, 0.0
    %v760 = vmul.f32 %v756, 0.2
    %v761 = vmul.f32 %v757, 0.2
    %v762 = vsel %vm758, %v756, %v760
    %v763 = vsel %vm759, %v757, %v761
    %s764 = sld [smem:[#allocation7 + $0xd]]
    %v765 = vstv %s764
    %v766 = vmul.f32 %v762, %v765
    %v767 = vmul.f32 %v763, %v765
    %v768 = vadd.f32 %v727, %v766
    %v769 = vadd.f32 %v728, %v767
    %s770 = sld [smem:[#allocation5 + $0x1e]]
    %v771 = vstv %s770
    %v772 = vmul.f32 %v72, %v771
    %v773 = vmul.f32 %v73, %v771
    %s774 = sld [smem:[#allocation5 + $0x26]]
    %v775 = vstv %s774
    %v776 = vmul.f32 %v74, %v775
    %v777 = vmul.f32 %v75, %v775
    %v778 = vadd.f32 %v772, %v776
    %v779 = vadd.f32 %v773, %v777
    %s780 = sld [smem:[#allocation5 + $0x2e]]
    %v781 = vstv %s780
    %v782 = vmul.f32 %v76, %v781
    %v783 = vmul.f32 %v77, %v781
    %v784 = vadd.f32 %v778, %v782
    %v785 = vadd.f32 %v779, %v783
    %786 = vset.pattern.permute.xlu0 6
    %787 = vperm.xlu0 %786, %v520
    %v788 = vpop.permute.xlu0 %787
    %790 = vset.pattern.permute.xlu0 6
    %791 = vperm.xlu0 %790, %v521
    %v792 = vpop.permute.xlu0 %791
    %v794 = vperm.slane %v523, 6
    %v795 = vadd.f32 %v788, %v794
    %v796 = vadd.f32 %v792, %v794
    %v797 = vadd.f32 %v795, %v784
    %v798 = vadd.f32 %v796, %v785
    %vm799 = vcmp.gt.f32.partialorder %v797, 0.0
    %vm800 = vcmp.gt.f32.partialorder %v798, 0.0
    %v801 = vmul.f32 %v797, 0.2
    %v802 = vmul.f32 %v798, 0.2
    %v803 = vsel %vm799, %v797, %v801
    %v804 = vsel %vm800, %v798, %v802
    %s805 = sld [smem:[#allocation7 + $0xe]]
    %v806 = vstv %s805
    %v807 = vmul.f32 %v803, %v806
    %v808 = vmul.f32 %v804, %v806
    %v809 = vadd.f32 %v768, %v807
    %v810 = vadd.f32 %v769, %v808
    %s811 = sld [smem:[#allocation5 + $0x1f]]
    %v812 = vstv %s811
    %v813 = vmul.f32 %v72, %v812
    %v814 = vmul.f32 %v73, %v812
    %s815 = sld [smem:[#allocation5 + $0x27]]
    %v816 = vstv %s815
    %v817 = vmul.f32 %v74, %v816
    %v818 = vmul.f32 %v75, %v816
    %v819 = vadd.f32 %v813, %v817
    %v820 = vadd.f32 %v814, %v818
    %s821 = sld [smem:[#allocation5 + $0x2f]]
    %v822 = vstv %s821
    %v823 = vmul.f32 %v76, %v822
    %v824 = vmul.f32 %v77, %v822
    %v825 = vadd.f32 %v819, %v823
    %v826 = vadd.f32 %v820, %v824
    %827 = vset.pattern.permute.xlu0 7
    %828 = vperm.xlu0 %827, %v520
    %v829 = vpop.permute.xlu0 %828
    %831 = vset.pattern.permute.xlu0 7
    %832 = vperm.xlu0 %831, %v521
    %v833 = vpop.permute.xlu0 %832
    %v835 = vperm.slane %v523, 7
    %v836 = vadd.f32 %v829, %v835
    %v837 = vadd.f32 %v833, %v835
    %v838 = vadd.f32 %v836, %v825
    %v839 = vadd.f32 %v837, %v826
    %vm840 = vcmp.gt.f32.partialorder %v838, 0.0
    %vm841 = vcmp.gt.f32.partialorder %v839, 0.0
    %v842 = vmul.f32 %v838, 0.2
    %v843 = vmul.f32 %v839, 0.2
    %v844 = vsel %vm840, %v838, %v842
    %v845 = vsel %vm841, %v839, %v843
    %s846 = sld [smem:[#allocation7 + $0xf]]
    %v847 = vstv %s846
    %v848 = vmul.f32 %v844, %v847
    %v849 = vmul.f32 %v845, %v847
    %v850 = vadd.f32 %v809, %v848
    %v851 = vadd.f32 %v810, %v849
    %v852 = vsel %vm82, %v850, -1e+30
    %v853 = vsel %vm83, %v851, -1e+30
    %v854 = vld [vmem:[#allocation2] sm:$0xff]
    %v855 = vld [vmem:[#allocation2 + $0x8] sm:$0xff]
    %v856 = vsel %vm419, %v852, -inf
    %857 = vmax.xlane.f32.xlu0 %v856
    %v858 = vpop.xlane.xlu0 %857
    %v859 = vsel %vm419, %v853, -inf
    %860 = vmax.xlane.f32.xlu0 %v859
    %v861 = vpop.xlane.xlu0 %860
    %v862 = vmax.f32 %v854, %v858
    %v863 = vmax.f32 %v855, %v861
    %v864 = vsub.f32 %v854, %v862
    %v865 = vsub.f32 %v855, %v863
    %v866 = vmul.f32 %v864, 1.442695
    %v867 = vpow.pop %v866
    %v868 = vmul.f32 %v865, 1.442695
    %v869 = vpow.pop %v868
    %871 = vset.pattern.permute.xlu0 1
    %872 = vperm.xlu0 %871, %v862
    %v873 = vpop.permute.xlu0 %872
    %876 = vset.pattern.permute.xlu0 1
    %877 = vperm.xlu0 %876, %v863
    %v878 = vpop.permute.xlu0 %877
    %v880 = vsub.f32 %v852, %v873
    %v881 = vsub.f32 %v853, %v878
    %v882 = vmul.f32 %v880, 1.442695
    %v883 = vpow.pop %v882
    %v884 = vmul.f32 %v881, 1.442695
    %v885 = vpow.pop %v884
    %v886 = vsel %vm82, %v883, 0.0
    %v887 = vsel %vm83, %v885, 0.0
    %v888 = vld [vmem:[#allocation3] sm:$0xff]
    %v889 = vld [vmem:[#allocation3 + $0x8] sm:$0xff]
    %v890 = vmul.f32 %v867, %v888
    %v891 = vmul.f32 %v869, %v889
    %v892 = vsel %vm419, %v886, 0.0
    %893 = vadd.xlane.f32.xlu0 %v892
    %v894 = vpop.xlane.xlu0 %893
    %v895 = vsel %vm419, %v887, 0.0
    %896 = vadd.xlane.f32.xlu0 %v895
    %v897 = vpop.xlane.xlu0 %896
    %v898 = vadd.f32 %v890, %v894
    %v899 = vadd.f32 %v891, %v897
    %vm900 = vcmask 15368
    %901 = vst.msk [vmem:[#allocation3] sm:$0xff] %vm900, %v898
    %902 = vst.msk [vmem:[#allocation3 + $0x8] sm:$0xff] %vm900, %v899
    %v903 = vld [vmem:[#allocation4] sm:$0xff]
    %v904 = vld [vmem:[#allocation4 + $0x8] sm:$0xff]
    %906 = vset.pattern.permute.xlu0 1
    %907 = vperm.xlu0 %906, %v867
    %v908 = vpop.permute.xlu0 %907
    %911 = vset.pattern.permute.xlu0 1
    %912 = vperm.xlu0 %911, %v869
    %v913 = vpop.permute.xlu0 %912
    %v915 = vmul.f32 %v908, %v903
    %v916 = vmul.f32 %v913, %v904
    %s917 = scalar_lea.vmem %s2, 16
    %v918 = vld [vmem:[%s917] sm:$0xff]
    %v919 = vld [vmem:[%s917 + $0x8] sm:$0xff]
    %v921 = vsel %vm419, %v886, 0
    %v924 = vsel %vm419, %v887, 0
    %926 = vmatpush.msra.mxu0 0.0
    %927 = vmatpush.msra.mxu0 0.0
    %928 = vmatpush.msra.mxu0 0.0
    %929 = vmatpush.msra.mxu0 0.0
    %930 = vmatpush.msra.mxu0 0.0
    %931 = vmatpush.msra.mxu0 0.0
    %932 = vmatpush.msra.mxu0 0.0
    %933 = vmatpush.msra.mxu0 0.0
    %934 = vmatpush.msra.mxu0 0.0
    %935 = vmatpush.msra.mxu0 0.0
    %936 = vmatpush.msra.mxu0 0.0
    %937 = vmatpush.msra.mxu0 0.0
    %938 = vmatpush.msra.mxu0 0.0
    %939 = vmatpush.msra.mxu0 0.0
    %940 = vmatpush.msra.mxu0 %v919
    %941 = vmatpush.msra.mxu0 %v918
    %942 = vmatmul.f32.gmra.mxu0 %v921
    %v943 = vpop.f32.mrf.mxu0
    %v944 = vadd.f32 0.0, %v943
    %945 = vmatmul.f32.gmra.mxu0 %v924
    %v946 = vpop.f32.mrf.mxu0
    %v947 = vadd.f32 0.0, %v946
    %948 = vdwg.mxu0
    %951 = vrot.lane.b32.xlu0 %v944, 8
    %v952 = vpop.permute.xlu0 %951
    %953 = vrot.lane.b32.xlu0 %v947, 8
    %v954 = vpop.permute.xlu0 %953
    %v957 = vadd.f32 %v915, %v952
    %v958 = vadd.f32 %v916, %v954
    %vm959 = vcmask 130112
    %960 = vst.msk [vmem:[#allocation4] sm:$0xff] %vm959, %v957
    %961 = vst.msk [vmem:[#allocation4 + $0x8] sm:$0xff] %vm959, %v958
    %962 = vst.msk [vmem:[#allocation2] sm:$0xff] %vm900, %v862
    %963 = vst.msk [vmem:[#allocation2 + $0x8] sm:$0xff] %vm900, %v863
    // Predicated region
    $region46: #{gat_forward.5} parent=1 // pred_check
      %p964 = pneg %p54
    $region47: #{gat_forward.5} parent=1 // pred_check_branch
      %966 = sbr.rel (%p964) target = $region49
    $region48: #{gat_forward.5} parent=1 // pred_region
      %v967 = vld [vmem:[#allocation3] sm:$0xff]
      %v968 = vld [vmem:[#allocation3 + $0x8] sm:$0xff]
      %v969 = vmax.f32 %v967, 1e-30
      %v970 = vmax.f32 %v968, 1e-30
      %v971 = vrcp.pop %v969
      %v972 = vmul.f32 %v969, %v971
      %v973 = vsub.f32 1.0, %v972
      %v974 = vmul.f32 %v971, %v973
      %v975 = vadd.f32 %v971, %v974
      %vm976 = vweird.f32 %v969
      %vm977 = vweird.f32 %v971
      %vm978 = vmor %vm976, %vm977
      %v979 = vsel %vm978, %v971, %v975
      %v980 = vand.u32 2147483647, %v969
      %vm981 = vcmp.eq.f32.partialorder %v980, 8.507059e+37
      %v982 = vand.u32 %v969, 2147483648
      %v983 = vor.u32 1.1754944e-38, %v982
      %v984 = vsel %vm981, %v983, %v979
      %v985 = vrcp.pop %v970
      %v986 = vmul.f32 %v970, %v985
      %v987 = vsub.f32 1.0, %v986
      %v988 = vmul.f32 %v985, %v987
      %v989 = vadd.f32 %v985, %v988
      %vm990 = vweird.f32 %v970
      %vm991 = vweird.f32 %v985
      %vm992 = vmor %vm990, %vm991
      %v993 = vsel %vm992, %v985, %v989
      %v994 = vand.u32 2147483647, %v970
      %vm995 = vcmp.eq.f32.partialorder %v994, 8.507059e+37
      %v996 = vand.u32 %v970, 2147483648
      %v997 = vor.u32 1.1754944e-38, %v996
      %v998 = vsel %vm995, %v997, %v993
      %v999 = vld [vmem:[#allocation4] sm:$0xff]
      %v1000 = vld [vmem:[#allocation4 + $0x8] sm:$0xff]
      %1002 = vset.pattern.permute.xlu0 0
      %1003 = vperm.xlu0 %1002, %v984
      %v1004 = vpop.permute.xlu0 %1003
      %1007 = vset.pattern.permute.xlu0 0
      %1008 = vperm.xlu0 %1007, %v998
      %v1009 = vpop.permute.xlu0 %1008
      %v1011 = vmul.f32 %v999, %v1004
      %v1012 = vmul.f32 %v1000, %v1009
      %v1013 = vld [vmem:[%s7] sm:$0x1]
      %v1014 = vperm.slane %v1013, 0
      %v1015 = vadd.f32 %v1011, %v1014
      %v1016 = vadd.f32 %v1012, %v1014
      %vm1017 = vcmp.gt.f32.partialorder %v1015, 0.0
      %vm1018 = vcmp.gt.f32.partialorder %v1016, 0.0
      %v1019 = vmin.f32 %v1015, 0.0
      %v1020 = vmin.f32 %v1016, 0.0
      %v1021 = vmul.f32 %v1019, 1.442695
      %v1022 = vpow.pop %v1021
      %v1023 = vmul.f32 %v1020, 1.442695
      %v1024 = vpow.pop %v1023
      %v1025 = vsub.f32 %v1022, 1.0
      %v1026 = vsub.f32 %v1024, 1.0
      %v1027 = vsel %vm1017, %v1015, %v1025
      %v1028 = vsel %vm1018, %v1016, %v1026
      %1029 = vst.msk [vmem:[%s8] sm:$0xff] %vm514, %v1027
      %1030 = vst.msk [vmem:[%s8 + $0x8] sm:$0xff] %vm514, %v1028
      %v1031 = vld [vmem:[#allocation3] sm:$0xff]
      %v1032 = vld [vmem:[#allocation3 + $0x8] sm:$0xff]
      %v1033 = vmax.f32 %v1031, 1e-30
      %v1034 = vmax.f32 %v1032, 1e-30
      %v1035 = vrcp.pop %v1033
      %v1036 = vmul.f32 %v1033, %v1035
      %v1037 = vsub.f32 1.0, %v1036
      %v1038 = vmul.f32 %v1035, %v1037
      %v1039 = vadd.f32 %v1035, %v1038
      %vm1040 = vweird.f32 %v1033
      %vm1041 = vweird.f32 %v1035
      %vm1042 = vmor %vm1040, %vm1041
      %v1043 = vsel %vm1042, %v1035, %v1039
      %v1044 = vand.u32 2147483647, %v1033
      %vm1045 = vcmp.eq.f32.partialorder %v1044, 8.507059e+37
      %v1046 = vand.u32 %v1033, 2147483648
      %v1047 = vor.u32 1.1754944e-38, %v1046
      %v1048 = vsel %vm1045, %v1047, %v1043
      %v1049 = vrcp.pop %v1034
      %v1050 = vmul.f32 %v1034, %v1049
      %v1051 = vsub.f32 1.0, %v1050
      %v1052 = vmul.f32 %v1049, %v1051
      %v1053 = vadd.f32 %v1049, %v1052
      %vm1054 = vweird.f32 %v1034
      %vm1055 = vweird.f32 %v1049
      %vm1056 = vmor %vm1054, %vm1055
      %v1057 = vsel %vm1056, %v1049, %v1053
      %v1058 = vand.u32 2147483647, %v1034
      %vm1059 = vcmp.eq.f32.partialorder %v1058, 8.507059e+37
      %v1060 = vand.u32 %v1034, 2147483648
      %v1061 = vor.u32 1.1754944e-38, %v1060
      %v1062 = vsel %vm1059, %v1061, %v1057
      %v1063 = vld [vmem:[#allocation4] sm:$0xff]
      %v1064 = vld [vmem:[#allocation4 + $0x8] sm:$0xff]
      %1066 = vset.pattern.permute.xlu0 1
      %1067 = vperm.xlu0 %1066, %v1048
      %v1068 = vpop.permute.xlu0 %1067
      %1071 = vset.pattern.permute.xlu0 1
      %1072 = vperm.xlu0 %1071, %v1062
      %v1073 = vpop.permute.xlu0 %1072
      %v1075 = vmul.f32 %v1063, %v1068
      %v1076 = vmul.f32 %v1064, %v1073
      %v1077 = vld [vmem:[%s7 + $0x1] sm:$0x1]
      %v1078 = vperm.slane %v1077, 0
      %1080 = vrot.lane.b32.xlu0 %v1078, 8
      %v1081 = vpop.permute.xlu0 %1080
      %v1083 = vadd.f32 %v1075, %v1081
      %v1084 = vadd.f32 %v1076, %v1081
      %vm1085 = vcmp.gt.f32.partialorder %v1083, 0.0
      %vm1086 = vcmp.gt.f32.partialorder %v1084, 0.0
      %v1087 = vmin.f32 %v1083, 0.0
      %v1088 = vmin.f32 %v1084, 0.0
      %v1089 = vmul.f32 %v1087, 1.442695
      %v1090 = vpow.pop %v1089
      %v1091 = vmul.f32 %v1088, 1.442695
      %v1092 = vpow.pop %v1091
      %v1093 = vsub.f32 %v1090, 1.0
      %v1094 = vsub.f32 %v1092, 1.0
      %v1095 = vsel %vm1085, %v1083, %v1093
      %v1096 = vsel %vm1086, %v1084, %v1094
      %1097 = vst.msk [vmem:[%s8] sm:$0xff] %vm959, %v1095
      %1098 = vst.msk [vmem:[%s8 + $0x8] sm:$0xff] %vm959, %v1096
    $region49: #{gat_forward.5} parent=1 // pred_fallthru
      _
    // Predicated region
    $region50: #{gat_forward.5} parent=1 // pred_check
      _
    $region51: #{gat_forward.5} parent=1 // pred_check_branch
      %1100 = sbr.rel (0) target = $region53
    $region52: #{gat_forward.5} parent=1 // pred_region
      _
    $region53: #{gat_forward.5} parent=1 // pred_fallthru
      _
    // Predicated region
    $region54: #{gat_forward.5} parent=1 // pred_check
      _
    $region55: #{gat_forward.5} parent=1 // pred_check_branch
      %1102 = sbr.rel (0) target = $region57
    $region56: #{gat_forward.5} parent=1 // pred_region
      _
    $region57: #{gat_forward.5} parent=1 // pred_fallthru
      _
    %1103 = vsyncpa [#allocation6], 1
    %1104 = vsyncpa [#allocation8], 1

// kernel: gat_forward.7
$region0: #{gat_forward.7}
  #allocation0 [shape = 'u32[]', space=smem, size = 0x4, offset = 0x4, fixed_abs, tag = 'smem constant byte address 0x4 - core index']
  #allocation1 [shape = 'u32[72,128]{1,0:T(1,128)}', space=vmem, size = 0x9000, scoped, tag = 'internal scratch']
  #allocation2 [shape = 'f32[16,1]{1,0:T(8,128)}', space=vmem, size = 0x2000, scoped, tag = 'scratch operand']
  #allocation3 [shape = 'f32[16,1]{1,0:T(8,128)}', space=vmem, size = 0x2000, scoped, tag = 'scratch operand']
  #allocation4 [shape = 'f32[16,8]{1,0:T(8,128)}', space=vmem, size = 0x2000, scoped, tag = 'scratch operand']
  %s0 = inlined_call_operand.vmem [shape: f32[1,16,8], index: 0, kind: input, shape index: {}]
  %s1 = inlined_call_operand.vmem [shape: f32[1,8,16], index: 1, kind: input, shape index: {}]
  %s2 = inlined_call_operand.vmem [shape: f32[1,16,8], index: 2, kind: input, shape index: {}]
  %s3 = inlined_call_operand.vmem [shape: bf16[3,16,16], index: 3, kind: input, shape index: {}]
  %s4 = inlined_call_operand.vmem [shape: bf16[16,16], index: 4, kind: input, shape index: {}]
  %s5 = inlined_call_operand.vmem [shape: f32[24], index: 5, kind: input, shape index: {}]
  %s6 = inlined_call_operand.vmem [shape: f32[8], index: 6, kind: input, shape index: {}]
  %s7 = inlined_call_operand.vmem [shape: f32[1,8], index: 7, kind: input, shape index: {}]
  %s8 = inlined_call_operand.vmem [shape: f32[8,3], index: 8, kind: input, shape index: {}]
  %s9 = inlined_call_operand.vmem [shape: f32[1,3], index: 9, kind: input, shape index: {}]
  %s10 = inlined_call_operand.vmem [shape: f32[16,3], index: 10, kind: output, shape index: {}]
  %s11 = sld [smem:[#allocation0]]
  $region66: #{gat_forward.7} parent=0
    _
  %s13 = ssub.s32 1, %s11
  %s14 = scalar_select 0, %s13, %s11
  $region1: #{gat_forward.7} parent=0
    #allocation5 [shape = 'u8[512]{0}', space=smem, size = 0x200, scoped, tag = 'input window, operand 5, single buffered']
    #allocation6 [shape = 's32[1]{0}', space=sflag, size = 0x4, scoped, tag = 'scoped memory for gat_forward.7']
    #allocation7 [shape = 'u8[512]{0}', space=smem, size = 0x200, scoped, tag = 'input window, operand 6, single buffered']
    #allocation8 [shape = 's32[1]{0}', space=sflag, size = 0x4, scoped, tag = 'scoped memory for gat_forward.7']
    %15 = vsyncpa [#allocation6], 0
    %16 = vsyncpa [#allocation8], 0
    // Predicated region
    $region2: #{gat_forward.7} parent=1 // pred_check
      _
    $region3: #{gat_forward.7} parent=1 // pred_check_branch
      %18 = sbr.rel (0) target = $region5
    $region4: #{gat_forward.7} parent=1 // pred_region
      _
    $region5: #{gat_forward.7} parent=1 // pred_fallthru
      _
    // Predicated region
    $region6: #{gat_forward.7} parent=1 // pred_check
      _
    $region7: #{gat_forward.7} parent=1 // pred_check_branch
      %20 = sbr.rel (0) target = $region9
    $region8: #{gat_forward.7} parent=1 // pred_region
      _
    $region9: #{gat_forward.7} parent=1 // pred_fallthru
      _
    // Predicated region
    $region10: #{gat_forward.7} parent=1 // pred_check
      _
    $region11: #{gat_forward.7} parent=1 // pred_check_branch
      %22 = sbr.rel (0) target = $region13
    $region12: #{gat_forward.7} parent=1 // pred_region
      _
    $region13: #{gat_forward.7} parent=1 // pred_fallthru
      _
    // Predicated region
    $region14: #{gat_forward.7} parent=1 // pred_check
      _
    $region15: #{gat_forward.7} parent=1 // pred_check_branch
      %24 = sbr.rel (0) target = $region17
    $region16: #{gat_forward.7} parent=1 // pred_region
      _
    $region17: #{gat_forward.7} parent=1 // pred_fallthru
      _
    // Predicated region
    $region18: #{gat_forward.7} parent=1 // pred_check
      _
    $region19: #{gat_forward.7} parent=1 // pred_check_branch
      %26 = sbr.rel (0) target = $region21
    $region20: #{gat_forward.7} parent=1 // pred_region
      _
    $region21: #{gat_forward.7} parent=1 // pred_fallthru
      _
    // Predicated region
    $region22: #{gat_forward.7} parent=1 // pred_check
      _
    $region23: #{gat_forward.7} parent=1 // pred_check_branch
      %28 = sbr.rel (0) target = $region25
    $region24: #{gat_forward.7} parent=1 // pred_region
      %30 = vsyncadd [#allocation6], 0
      %s32 = sshll.u32 %s5, 4
      %s33 = int_to_ptr.vmem [resolvable:$true] %s32
      %35 = dma.vmem_to_smem %s33, 16, [#allocation5], [#allocation6]
    $region25: #{gat_forward.7} parent=1 // pred_fallthru
      _
    // Predicated region
    $region26: #{gat_forward.7} parent=1 // pred_check
      _
    $region27: #{gat_forward.7} parent=1 // pred_check_branch
      %37 = sbr.rel (0) target = $region29
    $region28: #{gat_forward.7} parent=1 // pred_region
      %39 = vsyncadd [#allocation8], 0
      %s41 = sshll.u32 %s6, 4
      %s42 = int_to_ptr.vmem [resolvable:$true] %s41
      %44 = dma.vmem_to_smem %s42, 16, [#allocation7], [#allocation8]
    $region29: #{gat_forward.7} parent=1 // pred_fallthru
      _
    // Predicated region
    $region30: #{gat_forward.7} parent=1 // pred_check
      _
    $region31: #{gat_forward.7} parent=1 // pred_check_branch
      %46 = sbr.rel (0) target = $region33
    $region32: #{gat_forward.7} parent=1 // pred_region
      _
    $region33: #{gat_forward.7} parent=1 // pred_fallthru
      _
    // Predicated region
    $region34: #{gat_forward.7} parent=1 // pred_check
      _
    $region35: #{gat_forward.7} parent=1 // pred_check_branch
      %48 = sbr.rel (0) target = $region37
    $region36: #{gat_forward.7} parent=1 // pred_region
      _
    $region37: #{gat_forward.7} parent=1 // pred_fallthru
      _
    // Predicated region
    $region38: #{gat_forward.7} parent=1 // pred_check
      _
    $region39: #{gat_forward.7} parent=1 // pred_check_branch
      %50 = sbr.rel (0) target = $region41
    $region40: #{gat_forward.7} parent=1 // pred_region
      _
    $region41: #{gat_forward.7} parent=1 // pred_fallthru
      _
    // Predicated region
    $region42: #{gat_forward.7} parent=1 // pred_check
      _
    $region43: #{gat_forward.7} parent=1 // pred_check_branch
      %52 = sbr.rel (0) target = $region45
    $region44: #{gat_forward.7} parent=1 // pred_region
      %54 = dma.done [#allocation6], 16
    $region45: #{gat_forward.7} parent=1 // pred_fallthru
      _
    // Predicated region
    $region46: #{gat_forward.7} parent=1 // pred_check
      _
    $region47: #{gat_forward.7} parent=1 // pred_check_branch
      %56 = sbr.rel (0) target = $region49
    $region48: #{gat_forward.7} parent=1 // pred_region
      %58 = dma.done [#allocation8], 16
    $region49: #{gat_forward.7} parent=1 // pred_fallthru
      _
    %59 = sfence
    %p60 = scmp.eq.s32.totalorder 0, 0
    // Predicated region
    $region50: #{gat_forward.7} parent=1 // pred_check
      %p61 = pneg %p60
    $region51: #{gat_forward.7} parent=1 // pred_check_branch
      %63 = sbr.rel (%p61) target = $region53
    $region52: #{gat_forward.7} parent=1 // pred_region
      %vm64 = vcmask 7168
      %65 = vst.msk [vmem:[#allocation2] sm:$0xff] %vm64, -1e+30
      %66 = vst.msk [vmem:[#allocation2 + $0x8] sm:$0xff] %vm64, -1e+30
      %67 = vst.msk [vmem:[#allocation3] sm:$0xff] %vm64, 0.0
      %68 = vst.msk [vmem:[#allocation3 + $0x8] sm:$0xff] %vm64, 0.0
      %vm69 = vcmask 64512
      %70 = vst.msk [vmem:[#allocation4] sm:$0xff] %vm69, 0.0
      %71 = vst.msk [vmem:[#allocation4 + $0x8] sm:$0xff] %vm69, 0.0
    $region53: #{gat_forward.7} parent=1 // pred_fallthru
      _
    %v72 = vld [vmem:[%s3] sm:$0xf]
    %v73 = vld [vmem:[%s3 + $0x4] sm:$0xf]
    %v74 = vld [vmem:[%s3 + $0x8] sm:$0xf]
    %v75 = vld [vmem:[%s3 + $0xc] sm:$0xf]
    %v76 = vld [vmem:[%s3 + $0x10] sm:$0xf]
    %v77 = vld [vmem:[%s3 + $0x14] sm:$0xf]
    %v78 = vunpack.c.l.bf16 %v72
    %v79 = vunpack.c.l.bf16 %v73
    %v80 = vunpack.c.l.bf16 %v74
    %v81 = vunpack.c.l.bf16 %v75
    %v82 = vunpack.c.l.bf16 %v76
    %v83 = vunpack.c.l.bf16 %v77
    %v84 = vld [vmem:[%s4] sm:$0xf]
    %v85 = vld [vmem:[%s4 + $0x4] sm:$0xf]
    %v86 = vunpack.c.l.bf16 %v84
    %v87 = vunpack.c.l.bf16 %v85
    %vm88 = vcmp.gt.f32.partialorder %v86, 0.0
    %vm89 = vcmp.gt.f32.partialorder %v87, 0.0
    %v90 = vld [vmem:[%s0] sm:$0xff]
    %v91 = vld [vmem:[%s0 + $0x8] sm:$0xff]
    %v92 = vld [vmem:[%s1] sm:$0xff]
    %s93 = sld [smem:[#allocation5]]
    %v94 = vstv %s93
    %v95 = vmul.f32 %v78, %v94
    %v96 = vmul.f32 %v79, %v94
    %s97 = sld [smem:[#allocation5 + $0x8]]
    %v98 = vstv %s97
    %v99 = vmul.f32 %v80, %v98
    %v100 = vmul.f32 %v81, %v98
    %v101 = vadd.f32 %v95, %v99
    %v102 = vadd.f32 %v96, %v100
    %s103 = sld [smem:[#allocation5 + $0x10]]
    %v104 = vstv %s103
    %v105 = vmul.f32 %v82, %v104
    %v106 = vmul.f32 %v83, %v104
    %v107 = vadd.f32 %v101, %v105
    %v108 = vadd.f32 %v102, %v106
    %110 = vset.pattern.permute.xlu0 0
    %111 = vperm.xlu0 %110, %v90
    %v112 = vpop.permute.xlu0 %111
    %115 = vset.pattern.permute.xlu0 0
    %116 = vperm.xlu0 %115, %v91
    %v117 = vpop.permute.xlu0 %116
    %v119 = vperm.slane %v92, 0
    %v120 = vadd.f32 %v112, %v119
    %v121 = vadd.f32 %v117, %v119
    %v122 = vadd.f32 %v120, %v107
    %v123 = vadd.f32 %v121, %v108
    %vm124 = vcmp.gt.f32.partialorder %v122, 0.0
    %vm125 = vcmp.gt.f32.partialorder %v123, 0.0
    %v126 = vmul.f32 %v122, 0.2
    %v127 = vmul.f32 %v123, 0.2
    %v128 = vsel %vm124, %v122, %v126
    %v129 = vsel %vm125, %v123, %v127
    %s130 = sld [smem:[#allocation7]]
    %v131 = vstv %s130
    %v132 = vmul.f32 %v128, %v131
    %v133 = vmul.f32 %v129, %v131
    %s134 = sld [smem:[#allocation5 + $0x1]]
    %v135 = vstv %s134
    %v136 = vmul.f32 %v78, %v135
    %v137 = vmul.f32 %v79, %v135
    %s138 = sld [smem:[#allocation5 + $0x9]]
    %v139 = vstv %s138
    %v140 = vmul.f32 %v80, %v139
    %v141 = vmul.f32 %v81, %v139
    %v142 = vadd.f32 %v136, %v140
    %v143 = vadd.f32 %v137, %v141
    %s144 = sld [smem:[#allocation5 + $0x11]]
    %v145 = vstv %s144
    %v146 = vmul.f32 %v82, %v145
    %v147 = vmul.f32 %v83, %v145
    %v148 = vadd.f32 %v142, %v146
    %v149 = vadd.f32 %v143, %v147
    %150 = vset.pattern.permute.xlu0 1
    %151 = vperm.xlu0 %150, %v90
    %v152 = vpop.permute.xlu0 %151
    %154 = vset.pattern.permute.xlu0 1
    %155 = vperm.xlu0 %154, %v91
    %v156 = vpop.permute.xlu0 %155
    %v158 = vperm.slane %v92, 1
    %v159 = vadd.f32 %v152, %v158
    %v160 = vadd.f32 %v156, %v158
    %v161 = vadd.f32 %v159, %v148
    %v162 = vadd.f32 %v160, %v149
    %vm163 = vcmp.gt.f32.partialorder %v161, 0.0
    %vm164 = vcmp.gt.f32.partialorder %v162, 0.0
    %v165 = vmul.f32 %v161, 0.2
    %v166 = vmul.f32 %v162, 0.2
    %v167 = vsel %vm163, %v161, %v165
    %v168 = vsel %vm164, %v162, %v166
    %s169 = sld [smem:[#allocation7 + $0x1]]
    %v170 = vstv %s169
    %v171 = vmul.f32 %v167, %v170
    %v172 = vmul.f32 %v168, %v170
    %v173 = vadd.f32 %v132, %v171
    %v174 = vadd.f32 %v133, %v172
    %s175 = sld [smem:[#allocation5 + $0x2]]
    %v176 = vstv %s175
    %v177 = vmul.f32 %v78, %v176
    %v178 = vmul.f32 %v79, %v176
    %s179 = sld [smem:[#allocation5 + $0xa]]
    %v180 = vstv %s179
    %v181 = vmul.f32 %v80, %v180
    %v182 = vmul.f32 %v81, %v180
    %v183 = vadd.f32 %v177, %v181
    %v184 = vadd.f32 %v178, %v182
    %s185 = sld [smem:[#allocation5 + $0x12]]
    %v186 = vstv %s185
    %v187 = vmul.f32 %v82, %v186
    %v188 = vmul.f32 %v83, %v186
    %v189 = vadd.f32 %v183, %v187
    %v190 = vadd.f32 %v184, %v188
    %191 = vset.pattern.permute.xlu0 2
    %192 = vperm.xlu0 %191, %v90
    %v193 = vpop.permute.xlu0 %192
    %195 = vset.pattern.permute.xlu0 2
    %196 = vperm.xlu0 %195, %v91
    %v197 = vpop.permute.xlu0 %196
    %v199 = vperm.slane %v92, 2
    %v200 = vadd.f32 %v193, %v199
    %v201 = vadd.f32 %v197, %v199
    %v202 = vadd.f32 %v200, %v189
    %v203 = vadd.f32 %v201, %v190
    %vm204 = vcmp.gt.f32.partialorder %v202, 0.0
    %vm205 = vcmp.gt.f32.partialorder %v203, 0.0
    %v206 = vmul.f32 %v202, 0.2
    %v207 = vmul.f32 %v203, 0.2
    %v208 = vsel %vm204, %v202, %v206
    %v209 = vsel %vm205, %v203, %v207
    %s210 = sld [smem:[#allocation7 + $0x2]]
    %v211 = vstv %s210
    %v212 = vmul.f32 %v208, %v211
    %v213 = vmul.f32 %v209, %v211
    %v214 = vadd.f32 %v173, %v212
    %v215 = vadd.f32 %v174, %v213
    %s216 = sld [smem:[#allocation5 + $0x3]]
    %v217 = vstv %s216
    %v218 = vmul.f32 %v78, %v217
    %v219 = vmul.f32 %v79, %v217
    %s220 = sld [smem:[#allocation5 + $0xb]]
    %v221 = vstv %s220
    %v222 = vmul.f32 %v80, %v221
    %v223 = vmul.f32 %v81, %v221
    %v224 = vadd.f32 %v218, %v222
    %v225 = vadd.f32 %v219, %v223
    %s226 = sld [smem:[#allocation5 + $0x13]]
    %v227 = vstv %s226
    %v228 = vmul.f32 %v82, %v227
    %v229 = vmul.f32 %v83, %v227
    %v230 = vadd.f32 %v224, %v228
    %v231 = vadd.f32 %v225, %v229
    %232 = vset.pattern.permute.xlu0 3
    %233 = vperm.xlu0 %232, %v90
    %v234 = vpop.permute.xlu0 %233
    %236 = vset.pattern.permute.xlu0 3
    %237 = vperm.xlu0 %236, %v91
    %v238 = vpop.permute.xlu0 %237
    %v240 = vperm.slane %v92, 3
    %v241 = vadd.f32 %v234, %v240
    %v242 = vadd.f32 %v238, %v240
    %v243 = vadd.f32 %v241, %v230
    %v244 = vadd.f32 %v242, %v231
    %vm245 = vcmp.gt.f32.partialorder %v243, 0.0
    %vm246 = vcmp.gt.f32.partialorder %v244, 0.0
    %v247 = vmul.f32 %v243, 0.2
    %v248 = vmul.f32 %v244, 0.2
    %v249 = vsel %vm245, %v243, %v247
    %v250 = vsel %vm246, %v244, %v248
    %s251 = sld [smem:[#allocation7 + $0x3]]
    %v252 = vstv %s251
    %v253 = vmul.f32 %v249, %v252
    %v254 = vmul.f32 %v250, %v252
    %v255 = vadd.f32 %v214, %v253
    %v256 = vadd.f32 %v215, %v254
    %s257 = sld [smem:[#allocation5 + $0x4]]
    %v258 = vstv %s257
    %v259 = vmul.f32 %v78, %v258
    %v260 = vmul.f32 %v79, %v258
    %s261 = sld [smem:[#allocation5 + $0xc]]
    %v262 = vstv %s261
    %v263 = vmul.f32 %v80, %v262
    %v264 = vmul.f32 %v81, %v262
    %v265 = vadd.f32 %v259, %v263
    %v266 = vadd.f32 %v260, %v264
    %s267 = sld [smem:[#allocation5 + $0x14]]
    %v268 = vstv %s267
    %v269 = vmul.f32 %v82, %v268
    %v270 = vmul.f32 %v83, %v268
    %v271 = vadd.f32 %v265, %v269
    %v272 = vadd.f32 %v266, %v270
    %273 = vset.pattern.permute.xlu0 4
    %274 = vperm.xlu0 %273, %v90
    %v275 = vpop.permute.xlu0 %274
    %277 = vset.pattern.permute.xlu0 4
    %278 = vperm.xlu0 %277, %v91
    %v279 = vpop.permute.xlu0 %278
    %v281 = vperm.slane %v92, 4
    %v282 = vadd.f32 %v275, %v281
    %v283 = vadd.f32 %v279, %v281
    %v284 = vadd.f32 %v282, %v271
    %v285 = vadd.f32 %v283, %v272
    %vm286 = vcmp.gt.f32.partialorder %v284, 0.0
    %vm287 = vcmp.gt.f32.partialorder %v285, 0.0
    %v288 = vmul.f32 %v284, 0.2
    %v289 = vmul.f32 %v285, 0.2
    %v290 = vsel %vm286, %v284, %v288
    %v291 = vsel %vm287, %v285, %v289
    %s292 = sld [smem:[#allocation7 + $0x4]]
    %v293 = vstv %s292
    %v294 = vmul.f32 %v290, %v293
    %v295 = vmul.f32 %v291, %v293
    %v296 = vadd.f32 %v255, %v294
    %v297 = vadd.f32 %v256, %v295
    %s298 = sld [smem:[#allocation5 + $0x5]]
    %v299 = vstv %s298
    %v300 = vmul.f32 %v78, %v299
    %v301 = vmul.f32 %v79, %v299
    %s302 = sld [smem:[#allocation5 + $0xd]]
    %v303 = vstv %s302
    %v304 = vmul.f32 %v80, %v303
    %v305 = vmul.f32 %v81, %v303
    %v306 = vadd.f32 %v300, %v304
    %v307 = vadd.f32 %v301, %v305
    %s308 = sld [smem:[#allocation5 + $0x15]]
    %v309 = vstv %s308
    %v310 = vmul.f32 %v82, %v309
    %v311 = vmul.f32 %v83, %v309
    %v312 = vadd.f32 %v306, %v310
    %v313 = vadd.f32 %v307, %v311
    %314 = vset.pattern.permute.xlu0 5
    %315 = vperm.xlu0 %314, %v90
    %v316 = vpop.permute.xlu0 %315
    %318 = vset.pattern.permute.xlu0 5
    %319 = vperm.xlu0 %318, %v91
    %v320 = vpop.permute.xlu0 %319
    %v322 = vperm.slane %v92, 5
    %v323 = vadd.f32 %v316, %v322
    %v324 = vadd.f32 %v320, %v322
    %v325 = vadd.f32 %v323, %v312
    %v326 = vadd.f32 %v324, %v313
    %vm327 = vcmp.gt.f32.partialorder %v325, 0.0
    %vm328 = vcmp.gt.f32.partialorder %v326, 0.0
    %v329 = vmul.f32 %v325, 0.2
    %v330 = vmul.f32 %v326, 0.2
    %v331 = vsel %vm327, %v325, %v329
    %v332 = vsel %vm328, %v326, %v330
    %s333 = sld [smem:[#allocation7 + $0x5]]
    %v334 = vstv %s333
    %v335 = vmul.f32 %v331, %v334
    %v336 = vmul.f32 %v332, %v334
    %v337 = vadd.f32 %v296, %v335
    %v338 = vadd.f32 %v297, %v336
    %s339 = sld [smem:[#allocation5 + $0x6]]
    %v340 = vstv %s339
    %v341 = vmul.f32 %v78, %v340
    %v342 = vmul.f32 %v79, %v340
    %s343 = sld [smem:[#allocation5 + $0xe]]
    %v344 = vstv %s343
    %v345 = vmul.f32 %v80, %v344
    %v346 = vmul.f32 %v81, %v344
    %v347 = vadd.f32 %v341, %v345
    %v348 = vadd.f32 %v342, %v346
    %s349 = sld [smem:[#allocation5 + $0x16]]
    %v350 = vstv %s349
    %v351 = vmul.f32 %v82, %v350
    %v352 = vmul.f32 %v83, %v350
    %v353 = vadd.f32 %v347, %v351
    %v354 = vadd.f32 %v348, %v352
    %355 = vset.pattern.permute.xlu0 6
    %356 = vperm.xlu0 %355, %v90
    %v357 = vpop.permute.xlu0 %356
    %359 = vset.pattern.permute.xlu0 6
    %360 = vperm.xlu0 %359, %v91
    %v361 = vpop.permute.xlu0 %360
    %v363 = vperm.slane %v92, 6
    %v364 = vadd.f32 %v357, %v363
    %v365 = vadd.f32 %v361, %v363
    %v366 = vadd.f32 %v364, %v353
    %v367 = vadd.f32 %v365, %v354
    %vm368 = vcmp.gt.f32.partialorder %v366, 0.0
    %vm369 = vcmp.gt.f32.partialorder %v367, 0.0
    %v370 = vmul.f32 %v366, 0.2
    %v371 = vmul.f32 %v367, 0.2
    %v372 = vsel %vm368, %v366, %v370
    %v373 = vsel %vm369, %v367, %v371
    %s374 = sld [smem:[#allocation7 + $0x6]]
    %v375 = vstv %s374
    %v376 = vmul.f32 %v372, %v375
    %v377 = vmul.f32 %v373, %v375
    %v378 = vadd.f32 %v337, %v376
    %v379 = vadd.f32 %v338, %v377
    %s380 = sld [smem:[#allocation5 + $0x7]]
    %v381 = vstv %s380
    %v382 = vmul.f32 %v78, %v381
    %v383 = vmul.f32 %v79, %v381
    %s384 = sld [smem:[#allocation5 + $0xf]]
    %v385 = vstv %s384
    %v386 = vmul.f32 %v80, %v385
    %v387 = vmul.f32 %v81, %v385
    %v388 = vadd.f32 %v382, %v386
    %v389 = vadd.f32 %v383, %v387
    %s390 = sld [smem:[#allocation5 + $0x17]]
    %v391 = vstv %s390
    %v392 = vmul.f32 %v82, %v391
    %v393 = vmul.f32 %v83, %v391
    %v394 = vadd.f32 %v388, %v392
    %v395 = vadd.f32 %v389, %v393
    %396 = vset.pattern.permute.xlu0 7
    %397 = vperm.xlu0 %396, %v90
    %v398 = vpop.permute.xlu0 %397
    %400 = vset.pattern.permute.xlu0 7
    %401 = vperm.xlu0 %400, %v91
    %v402 = vpop.permute.xlu0 %401
    %v404 = vperm.slane %v92, 7
    %v405 = vadd.f32 %v398, %v404
    %v406 = vadd.f32 %v402, %v404
    %v407 = vadd.f32 %v405, %v394
    %v408 = vadd.f32 %v406, %v395
    %vm409 = vcmp.gt.f32.partialorder %v407, 0.0
    %vm410 = vcmp.gt.f32.partialorder %v408, 0.0
    %v411 = vmul.f32 %v407, 0.2
    %v412 = vmul.f32 %v408, 0.2
    %v413 = vsel %vm409, %v407, %v411
    %v414 = vsel %vm410, %v408, %v412
    %s415 = sld [smem:[#allocation7 + $0x7]]
    %v416 = vstv %s415
    %v417 = vmul.f32 %v413, %v416
    %v418 = vmul.f32 %v414, %v416
    %v419 = vadd.f32 %v378, %v417
    %v420 = vadd.f32 %v379, %v418
    %v421 = vsel %vm88, %v419, -1e+30
    %v422 = vsel %vm89, %v420, -1e+30
    %v423 = vld [vmem:[#allocation2] sm:$0xff]
    %v424 = vld [vmem:[#allocation2 + $0x8] sm:$0xff]
    %vm425 = vcmask 130048
    %v426 = vsel %vm425, %v421, -inf
    %427 = vmax.xlane.f32.xlu0 %v426
    %v428 = vpop.xlane.xlu0 %427
    %v429 = vsel %vm425, %v422, -inf
    %430 = vmax.xlane.f32.xlu0 %v429
    %v431 = vpop.xlane.xlu0 %430
    %v432 = vmax.f32 %v423, %v428
    %v433 = vmax.f32 %v424, %v431
    %v434 = vsub.f32 %v423, %v432
    %v435 = vsub.f32 %v424, %v433
    %v436 = vmul.f32 %v434, 1.442695
    %v437 = vpow.pop %v436
    %v438 = vmul.f32 %v435, 1.442695
    %v439 = vpow.pop %v438
    %441 = vset.pattern.permute.xlu0 0
    %442 = vperm.xlu0 %441, %v432
    %v443 = vpop.permute.xlu0 %442
    %446 = vset.pattern.permute.xlu0 0
    %447 = vperm.xlu0 %446, %v433
    %v448 = vpop.permute.xlu0 %447
    %v450 = vsub.f32 %v421, %v443
    %v451 = vsub.f32 %v422, %v448
    %v452 = vmul.f32 %v450, 1.442695
    %v453 = vpow.pop %v452
    %v454 = vmul.f32 %v451, 1.442695
    %v455 = vpow.pop %v454
    %v456 = vsel %vm88, %v453, 0.0
    %v457 = vsel %vm89, %v455, 0.0
    %v458 = vld [vmem:[#allocation3] sm:$0xff]
    %v459 = vld [vmem:[#allocation3 + $0x8] sm:$0xff]
    %v460 = vmul.f32 %v437, %v458
    %v461 = vmul.f32 %v439, %v459
    %v462 = vsel %vm425, %v456, 0.0
    %463 = vadd.xlane.f32.xlu0 %v462
    %v464 = vpop.xlane.xlu0 %463
    %v465 = vsel %vm425, %v457, 0.0
    %466 = vadd.xlane.f32.xlu0 %v465
    %v467 = vpop.xlane.xlu0 %466
    %v468 = vadd.f32 %v460, %v464
    %v469 = vadd.f32 %v461, %v467
    %vm470 = vcmask 7168
    %471 = vst.msk [vmem:[#allocation3] sm:$0xff] %vm470, %v468
    %472 = vst.msk [vmem:[#allocation3 + $0x8] sm:$0xff] %vm470, %v469
    %v473 = vld [vmem:[#allocation4] sm:$0xff]
    %v474 = vld [vmem:[#allocation4 + $0x8] sm:$0xff]
    %476 = vset.pattern.permute.xlu0 0
    %477 = vperm.xlu0 %476, %v437
    %v478 = vpop.permute.xlu0 %477
    %481 = vset.pattern.permute.xlu0 0
    %482 = vperm.xlu0 %481, %v439
    %v483 = vpop.permute.xlu0 %482
    %v485 = vmul.f32 %v478, %v473
    %v486 = vmul.f32 %v483, %v474
    %v487 = vld [vmem:[%s2] sm:$0xff]
    %v488 = vld [vmem:[%s2 + $0x8] sm:$0xff]
    %v490 = vsel %vm425, %v456, 0
    %v493 = vsel %vm425, %v457, 0
    %495 = vmatpush.msra.mxu0 0.0
    %496 = vmatpush.msra.mxu0 0.0
    %497 = vmatpush.msra.mxu0 0.0
    %498 = vmatpush.msra.mxu0 0.0
    %499 = vmatpush.msra.mxu0 0.0
    %500 = vmatpush.msra.mxu0 0.0
    %501 = vmatpush.msra.mxu0 0.0
    %502 = vmatpush.msra.mxu0 0.0
    %503 = vmatpush.msra.mxu0 0.0
    %504 = vmatpush.msra.mxu0 0.0
    %505 = vmatpush.msra.mxu0 0.0
    %506 = vmatpush.msra.mxu0 0.0
    %507 = vmatpush.msra.mxu0 0.0
    %508 = vmatpush.msra.mxu0 0.0
    %509 = vmatpush.msra.mxu0 %v488
    %510 = vmatpush.msra.mxu0 %v487
    %511 = vmatmul.f32.gmra.mxu0 %v490
    %v512 = vpop.f32.mrf.mxu0
    %v513 = vadd.f32 0.0, %v512
    %514 = vmatmul.f32.gmra.mxu0 %v493
    %v515 = vpop.f32.mrf.mxu0
    %v516 = vadd.f32 0.0, %v515
    %517 = vdwg.mxu0
    %v518 = vadd.f32 %v485, %v513
    %v519 = vadd.f32 %v486, %v516
    %vm520 = vcmask 64512
    %521 = vst.msk [vmem:[#allocation4] sm:$0xff] %vm520, %v518
    %522 = vst.msk [vmem:[#allocation4 + $0x8] sm:$0xff] %vm520, %v519
    %523 = vst.msk [vmem:[#allocation2] sm:$0xff] %vm470, %v432
    %524 = vst.msk [vmem:[#allocation2 + $0x8] sm:$0xff] %vm470, %v433
    // Predicated region
    $region54: #{gat_forward.7} parent=1 // pred_check
      %p525 = pneg %p60
    $region55: #{gat_forward.7} parent=1 // pred_check_branch
      %527 = sbr.rel (%p525) target = $region57
    $region56: #{gat_forward.7} parent=1 // pred_region
      %v528 = vld [vmem:[#allocation3] sm:$0xff]
      %v529 = vld [vmem:[#allocation3 + $0x8] sm:$0xff]
      %v530 = vmax.f32 %v528, 1e-30
      %v531 = vmax.f32 %v529, 1e-30
      %v532 = vrcp.pop %v530
      %v533 = vmul.f32 %v530, %v532
      %v534 = vsub.f32 1.0, %v533
      %v535 = vmul.f32 %v532, %v534
      %v536 = vadd.f32 %v532, %v535
      %vm537 = vweird.f32 %v530
      %vm538 = vweird.f32 %v532
      %vm539 = vmor %vm537, %vm538
      %v540 = vsel %vm539, %v532, %v536
      %v541 = vand.u32 2147483647, %v530
      %vm542 = vcmp.eq.f32.partialorder %v541, 8.507059e+37
      %v543 = vand.u32 %v530, 2147483648
      %v544 = vor.u32 1.1754944e-38, %v543
      %v545 = vsel %vm542, %v544, %v540
      %v546 = vrcp.pop %v531
      %v547 = vmul.f32 %v531, %v546
      %v548 = vsub.f32 1.0, %v547
      %v549 = vmul.f32 %v546, %v548
      %v550 = vadd.f32 %v546, %v549
      %vm551 = vweird.f32 %v531
      %vm552 = vweird.f32 %v546
      %vm553 = vmor %vm551, %vm552
      %v554 = vsel %vm553, %v546, %v550
      %v555 = vand.u32 2147483647, %v531
      %vm556 = vcmp.eq.f32.partialorder %v555, 8.507059e+37
      %v557 = vand.u32 %v531, 2147483648
      %v558 = vor.u32 1.1754944e-38, %v557
      %v559 = vsel %vm556, %v558, %v554
      %v560 = vld [vmem:[#allocation4] sm:$0xff]
      %v561 = vld [vmem:[#allocation4 + $0x8] sm:$0xff]
      %563 = vset.pattern.permute.xlu0 0
      %564 = vperm.xlu0 %563, %v545
      %v565 = vpop.permute.xlu0 %564
      %568 = vset.pattern.permute.xlu0 0
      %569 = vperm.xlu0 %568, %v559
      %v570 = vpop.permute.xlu0 %569
      %v572 = vmul.f32 %v560, %v565
      %v573 = vmul.f32 %v561, %v570
      %v574 = vld [vmem:[%s7] sm:$0x1]
      %v576 = vperm.slane %v574, 0
      %v578 = vadd.f32 %v572, %v576
      %v579 = vadd.f32 %v573, %v576
      %vm580 = vcmp.gt.f32.partialorder %v578, 0.0
      %vm581 = vcmp.gt.f32.partialorder %v579, 0.0
      %v582 = vmin.f32 %v578, 0.0
      %v583 = vmin.f32 %v579, 0.0
      %v584 = vmul.f32 %v582, 1.442695
      %v585 = vpow.pop %v584
      %v586 = vmul.f32 %v583, 1.442695
      %v587 = vpow.pop %v586
      %v588 = vsub.f32 %v585, 1.0
      %v589 = vsub.f32 %v587, 1.0
      %v590 = vsel %vm580, %v578, %v588
      %v591 = vsel %vm581, %v579, %v589
      %v592 = vld [vmem:[%s8] sm:$0xff]
      %v593 = vld [vmem:[%s9] sm:$0x1]
      %v595 = vperm.slane %v593, 0
      %v598 = vsel %vm520, %v590, 0
      %v601 = vsel %vm520, %v591, 0
      %603 = vmatpush.msra.mxu0 0.0
      %604 = vmatpush.msra.mxu0 0.0
      %605 = vmatpush.msra.mxu0 0.0
      %606 = vmatpush.msra.mxu0 0.0
      %607 = vmatpush.msra.mxu0 0.0
      %608 = vmatpush.msra.mxu0 0.0
      %609 = vmatpush.msra.mxu0 0.0
      %610 = vmatpush.msra.mxu0 0.0
      %611 = vmatpush.msra.mxu0 0.0
      %612 = vmatpush.msra.mxu0 0.0
      %613 = vmatpush.msra.mxu0 0.0
      %614 = vmatpush.msra.mxu0 0.0
      %615 = vmatpush.msra.mxu0 0.0
      %616 = vmatpush.msra.mxu0 0.0
      %617 = vmatpush.msra.mxu0 0.0
      %618 = vmatpush.msra.mxu0 %v592
      %619 = vmatmul.f32.gmra.mxu0 %v598
      %v620 = vpop.f32.mrf.mxu0
      %v621 = vadd.f32 %v595, %v620
      %622 = vmatmul.f32.gmra.mxu0 %v601
      %v623 = vpop.f32.mrf.mxu0
      %v624 = vadd.f32 %v595, %v623
      %625 = vdwg.mxu0
      %vm626 = vcmask 23552
      %627 = vst.msk [vmem:[%s10] sm:$0xff] %vm626, %v621
      %628 = vst.msk [vmem:[%s10 + $0x8] sm:$0xff] %vm626, %v624
    $region57: #{gat_forward.7} parent=1 // pred_fallthru
      _
    // Predicated region
    $region58: #{gat_forward.7} parent=1 // pred_check
      _
    $region59: #{gat_forward.7} parent=1 // pred_check_branch
      %630 = sbr.rel (0) target = $region61
    $region60: #{gat_forward.7} parent=1 // pred_region
      _
    $region61: #{gat_forward.7} parent=1 // pred_fallthru
      _
    // Predicated region
    $region62: #{gat_forward.7} parent=1 // pred_check
      _
    $region63: #{gat_forward.7} parent=1 // pred_check_branch
      %632 = sbr.rel (0) target = $region65
    $region64: #{gat_forward.7} parent=1 // pred_region
      _
    $region65: #{gat_forward.7} parent=1 // pred_fallthru
      _
    %633 = vsyncpa [#allocation6], 1
    %634 = vsyncpa [#allocation8], 1

</llo_original>
